<compile_context>
chip_gen: v6e
topology: v6e:2x2x1
jax: 0.10.0
libtpu: 0.0.40
codegen_flags: <defaults>
</compile_context>

<pallas_src>
import functools

import jax
import jax.numpy as jnp
from jax import lax
from jax.experimental import pallas as pl
from jax.experimental.pallas import tpu as pltpu

NHEAD = 16
LN_EPS = 1e-5


def _layer_norm(x, gamma, beta):
    mean = jnp.mean(x, axis=-1, keepdims=True)
    var = jnp.mean((x - mean) ** 2, axis=-1, keepdims=True)
    return (x - mean) * lax.rsqrt(var + LN_EPS) * gamma + beta


def _bf16_dot(a, b):
    # bf16 inputs, f32 accumulation -> single MXU pass.
    return jnp.dot(a.astype(jnp.bfloat16), b.astype(jnp.bfloat16),
                   preferred_element_type=jnp.float32)


# ---------------------------------------------------------------------------
# Fused kernel: all 8 encoder layers + classification head, grid = (B//TB, L).
# ---------------------------------------------------------------------------
def _make_kernel(S, E, TB):
    hd = E // NHEAD
    HS = NHEAD * S
    scale = 1.0 / float(hd) ** 0.5

    def kernel(x_ref, wqkv_ref, bqkv_ref, wo_ref, bo_ref,
               w1_ref, b1_ref, w2_ref, b2_ref,
               g1_ref, beta1_ref, g2_ref, beta2_ref,
               wfc_ref, bfc_ref,
               rep_ref, mask_kt_ref, mask_v_ref, seg_ref, mean_ref,
               out_ref, act_ref, attn_ref):
        l = pl.program_id(1)

        @pl.when(l == 0)
        def _():
            act_ref[...] = x_ref[...]          # load activation block once per batch block

        x = act_ref[...]                       # (TB*S, E) f32, VMEM-resident across layers

        # ---- fused Q/K/V projection for all TB*S rows (one MXU push) -------
        qkv = _bf16_dot(x, wqkv_ref[l]) + bqkv_ref[l]        # (TB*S, 3E) f32

        rep = rep_ref[...]                     # (HS, S)  bf16 : row replication
        mask_kt = mask_kt_ref[...]             # (E, HS)  f32  : per-head feature mask (K^T side)
        mask_v = mask_v_ref[...]               # (HS, E)  f32  : per-head feature mask (V side)
        seg = seg_ref[...]                     # (HS, HS) bf16 : per-head column segments

        # ---- attention: all 16 heads at once per batch element -------------
        for b in range(TB):                    # TB is small; unrolled at trace time
            r0 = b * S
            q = qkv[r0:r0 + S, :E]
            k = qkv[r0:r0 + S, E:2 * E]
            v = qkv[r0:r0 + S, 2 * E:]

            # kt_blocks[e, h*S + j] = K[j, e] if e//hd == h else 0
            kt_blocks = lax.dot_general(
                k.astype(jnp.bfloat16), rep,
                (((0,), (1,)), ((), ())),
                preferred_element_type=jnp.float32) * mask_kt          # (E, HS)
            v_blocks = _bf16_dot(rep, v) * mask_v                      # (HS, E)

            # scores for all heads in one lane-dense matmul
            s_all = _bf16_dot(q, kt_blocks) * scale                    # (S, HS)
            # global row max shared across heads (softmax is per-head shift-invariant)
            s_all = s_all - jnp.max(s_all, axis=-1, keepdims=True)
            p_all = jnp.exp(s_all)
            denom = _bf16_dot(p_all, seg)                              # per-head sums, broadcast
            p_norm = p_all * pl.reciprocal(denom, approx=True)         # EUP reciprocal

            attn_ref[r0:r0 + S, :] = _bf16_dot(p_norm, v_blocks)       # (S, E): heads concat

        attn = _bf16_dot(attn_ref[...], wo_ref[l]) + bo_ref[l]         # output projection
        y = _layer_norm(x + attn, g1_ref[l], beta1_ref[l])             # post-norm residual 1

        # ---- feed-forward ---------------------------------------------------
        h1 = jnp.maximum(_bf16_dot(y, w1_ref[l]) + b1_ref[l], 0.0)     # relu
        h2 = _bf16_dot(h1, w2_ref[l]) + b2_ref[l]
        x_new = _layer_norm(y + h2, g2_ref[l], beta2_ref[l])           # post-norm residual 2

        act_ref[...] = x_new

        # ---- classification head fused into the last layer's epilogue ------
        @pl.when(l == pl.num_programs(1) - 1)
        def _():
            # per-batch-element mean over its S rows via a tiny precomputed matmul (f32)
            m = jnp.dot(mean_ref[...], x_new,
                        preferred_element_type=jnp.float32)            # (TB, E)
            out_ref[...] = _bf16_dot(m, wfc_ref[...]) + bfc_ref[...]   # (TB, C)

    return kernel


# ---------------------------------------------------------------------------
# Wrapper
# ---------------------------------------------------------------------------
def emotion_transformer_forward(x_sbe, params):
    """x_sbe: (S, B, E) float32 (PyTorch seq-first layout). Returns (B, num_classes)."""
    x = jnp.transpose(x_sbe, (1, 0, 2))                  # (B, S, E)
    B, S, E = x.shape
    L = params["wqkv"].shape[0]
    C = params["wfc"].shape[1]
    hd = E // NHEAD
    HS = NHEAD * S

    # batch block: largest divisor of B with TB*S <= 256 rows (fills the MXU M dimension)
    TB = 1
    for t in range(1, B + 1):
        if B % t == 0 and t * S <= 256:
            TB = t

    x_flat = x.reshape(B * S, E)                         # batch-major rows, no in-kernel reshape

    # ---- shape-only constants hoisted out of the kernel (resident inputs) ---
    r = jnp.arange(HS)
    rep = (r[:, None] % S == jnp.arange(S)[None, :]).astype(jnp.bfloat16)          # (HS, S)
    mask_kt = ((jnp.arange(E)[:, None] // hd) == (r[None, :] // S)).astype(jnp.float32)  # (E, HS)
    mask_v = ((r[:, None] // S) == (jnp.arange(E)[None, :] // hd)).astype(jnp.float32)   # (HS, E)
    seg = ((r[:, None] // S) == (r[None, :] // S)).astype(jnp.bfloat16)            # (HS, HS)
    mean_mat = ((jnp.arange(TB)[:, None] == (jnp.arange(TB * S)[None, :] // S))
                .astype(jnp.float32)) / S                                          # (TB, TB*S)

    def resident(arr):
        # full-array block + constant index_map -> DMA'd from HBM once, VMEM-resident thereafter
        nd = arr.ndim
        return pl.BlockSpec(arr.shape, lambda b, l, nd=nd: (0,) * nd)

    in_arrays = [x_flat,
                 params["wqkv"], params["bqkv"], params["wo"], params["bo"],
                 params["w1"], params["b1"], params["w2"], params["b2"],
                 params["g1"], params["beta1"], params["g2"], params["beta2"],
                 params["wfc"], params["bfc"],
                 rep, mask_kt, mask_v, seg, mean_mat]

    in_specs = [pl.BlockSpec((TB * S, E), lambda b, l: (b, 0))] + \
               [resident(a) for a in in_arrays[1:]]

    kernel = _make_kernel(S, E, TB)

    out = pl.pallas_call(
        kernel,
        out_shape=jax.ShapeDtypeStruct((B, C), jnp.float32),
        grid=(B // TB, L),
        in_specs=in_specs,
        out_specs=pl.BlockSpec((TB, C), lambda b, l: (b, 0)),
        scratch_shapes=[pltpu.VMEM((TB * S, E), jnp.float32),   # resident activation
                        pltpu.VMEM((TB * S, E), jnp.float32)],  # attention staging
        compiler_params=pltpu.CompilerParams(
            dimension_semantics=("parallel", "arbitrary")),
    )(*in_arrays)
    return out


# ---------------------------------------------------------------------------
# Deterministic parameter construction + pure-JAX f32 reference.
# ---------------------------------------------------------------------------
def init_params(key, d_model, num_classes, num_layers=8, dff=2048):
    def w(k, shape, scale=0.02):
        return scale * jax.random.normal(k, shape, jnp.float32)

    E, L, F = d_model, num_layers, dff
    ks = jax.random.split(key, 9)
    return dict(
        # MXU weights stored bf16 (half DMA bytes, native MXU path with f32 accumulation)
        wqkv=w(ks[0], (L, E, 3 * E)).astype(jnp.bfloat16),
        bqkv=w(ks[1], (L, 1, 3 * E)),
        wo=w(ks[2], (L, E, E)).astype(jnp.bfloat16),
        bo=w(ks[3], (L, 1, E)),
        w1=w(ks[4], (L, E, F)).astype(jnp.bfloat16),
        b1=w(ks[5], (L, 1, F)),
        w2=w(ks[6], (L, F, E)).astype(jnp.bfloat16),
        b2=w(ks[7], (L, 1, E)),
        g1=jnp.ones((L, 1, E), jnp.float32),
        beta1=jnp.zeros((L, 1, E), jnp.float32),
        g2=jnp.ones((L, 1, E), jnp.float32),
        beta2=jnp.zeros((L, 1, E), jnp.float32),
        wfc=w(ks[8], (E, num_classes)),
        bfc=jnp.zeros((1, num_classes), jnp.float32),
    )


def ref_forward(x_sbe, params):
    mm = functools.partial(jnp.matmul, precision=lax.Precision.HIGHEST)
    x = jnp.transpose(x_sbe, (1, 0, 2)).astype(jnp.float32)
    B, S, E = x.shape
    hd = E // NHEAD
    scale = 1.0 / float(hd) ** 0.5
    L = params["wqkv"].shape[0]
    for l in range(L):
        qkv = mm(x, params["wqkv"][l].astype(jnp.float32)) + params["bqkv"][l]
        q, k, v = qkv[..., :E], qkv[..., E:2 * E], qkv[..., 2 * E:]
        qh = q.reshape(B, S, NHEAD, hd).transpose(0, 2, 1, 3)
        kh = k.reshape(B, S, NHEAD, hd).transpose(0, 2, 1, 3)
        vh = v.reshape(B, S, NHEAD, hd).transpose(0, 2, 1, 3)
        s = jnp.einsum("bhqd,bhkd->bhqk", qh, kh, precision=lax.Precision.HIGHEST) * scale
        a = jax.nn.softmax(s, axis=-1)
        o = jnp.einsum("bhqk,bhkd->bhqd", a, vh, precision=lax.Precision.HIGHEST)
        o = o.transpose(0, 2, 1, 3).reshape(B, S, E)
        o = mm(o, params["wo"][l].astype(jnp.float32)) + params["bo"][l]
        y = _layer_norm(x + o, params["g1"][l], params["beta1"][l])
        h = jnp.maximum(mm(y, params["w1"][l].astype(jnp.float32)) + params["b1"][l], 0.0)
        h = mm(h, params["w2"][l].astype(jnp.float32)) + params["b2"][l]
        x = _layer_norm(y + h, params["g2"][l], params["beta2"][l])
    m = jnp.mean(x, axis=1)
    return mm(m, params["wfc"]) + params["bfc"]


if __name__ == "__main__":
    S, B, E, C = 8, 2, 32, 7      # seq, batch, input_dim (divisible by nhead=16), num_classes
    key = jax.random.PRNGKey(0)
    key, xk = jax.random.split(key)
    x = jax.random.normal(xk, (S, B, E), jnp.float32)        # PyTorch layout: (S, B, E)

    params = init_params(key, E, C, num_layers=8, dff=2048)

    out = jax.jit(emotion_transformer_forward)(x, params)
    out = jax.block_until_ready(out)

    ref = ref_forward(x, params)
    assert out.shape == (B, C), out.shape
    assert jnp.allclose(out, ref, atol=2e-2, rtol=2e-2), (out, ref)
    print("KERNEL_OK")
</pallas_src>

<mosaic_0001>
module attributes {stable_mosaic.version = 11 : i64} {
  func.func @kernel(%arg0: i32, %arg1: i32, %arg2: memref<16x32xf32, #tpu.memory_space<vmem>>, %arg3: memref<8x32x96xbf16, #tpu.memory_space<vmem>>, %arg4: memref<8x1x96xf32, #tpu.memory_space<vmem>>, %arg5: memref<8x32x32xbf16, #tpu.memory_space<vmem>>, %arg6: memref<8x1x32xf32, #tpu.memory_space<vmem>>, %arg7: memref<8x32x2048xbf16, #tpu.memory_space<vmem>>, %arg8: memref<8x1x2048xf32, #tpu.memory_space<vmem>>, %arg9: memref<8x2048x32xbf16, #tpu.memory_space<vmem>>, %arg10: memref<8x1x32xf32, #tpu.memory_space<vmem>>, %arg11: memref<8x1x32xf32, #tpu.memory_space<vmem>>, %arg12: memref<8x1x32xf32, #tpu.memory_space<vmem>>, %arg13: memref<8x1x32xf32, #tpu.memory_space<vmem>>, %arg14: memref<8x1x32xf32, #tpu.memory_space<vmem>>, %arg15: memref<32x7xf32, #tpu.memory_space<vmem>>, %arg16: memref<1x7xf32, #tpu.memory_space<vmem>>, %arg17: memref<128x8xbf16, #tpu.memory_space<vmem>>, %arg18: memref<32x128xf32, #tpu.memory_space<vmem>>, %arg19: memref<128x32xf32, #tpu.memory_space<vmem>>, %arg20: memref<128x128xbf16, #tpu.memory_space<vmem>>, %arg21: memref<2x16xf32, #tpu.memory_space<vmem>>, %arg22: memref<2x7xf32, #tpu.memory_space<vmem>>, %arg23: memref<16x32xf32, #tpu.memory_space<vmem>>, %arg24: memref<16x32xf32, #tpu.memory_space<vmem>>) attributes {dimension_semantics = [#tpu.dimension_semantics<parallel>, #tpu.dimension_semantics<arbitrary>], iteration_bounds = array<i64: 1, 8>, scalar_prefetch = 0 : i64, scratch_operands = 2 : i64, tpu.core_type = #tpu.core_type<tc>, window_params = [{transform_indices = @transform_0, window_bounds = array<i64: 16, 32>}, {pipeline_mode = #tpu.pipeline_mode<synchronous>, transform_indices = @transform_1, window_bounds = array<i64: 8, 32, 96>}, {pipeline_mode = #tpu.pipeline_mode<synchronous>, transform_indices = @transform_2, window_bounds = array<i64: 8, 1, 96>}, {pipeline_mode = #tpu.pipeline_mode<synchronous>, transform_indices = @transform_3, window_bounds = array<i64: 8, 32, 32>}, {pipeline_mode = #tpu.pipeline_mode<synchronous>, transform_indices = @transform_4, window_bounds = array<i64: 8, 1, 32>}, {pipeline_mode = #tpu.pipeline_mode<synchronous>, transform_indices = @transform_5, window_bounds = array<i64: 8, 32, 2048>}, {pipeline_mode = #tpu.pipeline_mode<synchronous>, transform_indices = @transform_6, window_bounds = array<i64: 8, 1, 2048>}, {pipeline_mode = #tpu.pipeline_mode<synchronous>, transform_indices = @transform_7, window_bounds = array<i64: 8, 2048, 32>}, {pipeline_mode = #tpu.pipeline_mode<synchronous>, transform_indices = @transform_8, window_bounds = array<i64: 8, 1, 32>}, {pipeline_mode = #tpu.pipeline_mode<synchronous>, transform_indices = @transform_9, window_bounds = array<i64: 8, 1, 32>}, {pipeline_mode = #tpu.pipeline_mode<synchronous>, transform_indices = @transform_10, window_bounds = array<i64: 8, 1, 32>}, {pipeline_mode = #tpu.pipeline_mode<synchronous>, transform_indices = @transform_11, window_bounds = array<i64: 8, 1, 32>}, {pipeline_mode = #tpu.pipeline_mode<synchronous>, transform_indices = @transform_12, window_bounds = array<i64: 8, 1, 32>}, {pipeline_mode = #tpu.pipeline_mode<synchronous>, transform_indices = @transform_13, window_bounds = array<i64: 32, 7>}, {pipeline_mode = #tpu.pipeline_mode<synchronous>, transform_indices = @transform_14, window_bounds = array<i64: 1, 7>}, {pipeline_mode = #tpu.pipeline_mode<synchronous>, transform_indices = @transform_15, window_bounds = array<i64: 128, 8>}, {pipeline_mode = #tpu.pipeline_mode<synchronous>, transform_indices = @transform_16, window_bounds = array<i64: 32, 128>}, {pipeline_mode = #tpu.pipeline_mode<synchronous>, transform_indices = @transform_17, window_bounds = array<i64: 128, 32>}, {pipeline_mode = #tpu.pipeline_mode<synchronous>, transform_indices = @transform_18, window_bounds = array<i64: 128, 128>}, {pipeline_mode = #tpu.pipeline_mode<synchronous>, transform_indices = @transform_19, window_bounds = array<i64: 2, 16>}, {transform_indices = @transform_20, window_bounds = array<i64: 2, 7>}]} {
    %c0_i32 = arith.constant 0 : i32
    %0 = arith.cmpi eq, %arg1, %c0_i32 : i32
    %1 = arith.extui %0 : i1 to i32
    %c0_i32_0 = arith.constant 0 : i32
    %2 = arith.cmpi ne, %1, %c0_i32_0 : i32
    scf.if %2 {
      %c0_70 = arith.constant 0 : index
      %c0_71 = arith.constant 0 : index
      %167 = vector.load %arg2[%c0_70, %c0_71] : memref<16x32xf32, #tpu.memory_space<vmem>>, vector<16x32xf32>
      %c0_72 = arith.constant 0 : index
      %c0_73 = arith.constant 0 : index
      %168 = vector.load %arg23[%c0_72, %c0_73] : memref<16x32xf32, #tpu.memory_space<vmem>>, vector<16x32xf32>
      tpu.vector_store %arg23[%c0_72, %c0_73], %167 {strides = array<i32>} : memref<16x32xf32, #tpu.memory_space<vmem>>, vector<16x32xf32>,
    } else {
    }
    %c0 = arith.constant 0 : index
    %c0_1 = arith.constant 0 : index
    %3 = vector.load %arg23[%c0, %c0_1] : memref<16x32xf32, #tpu.memory_space<vmem>>, vector<16x32xf32>
    %4 = arith.index_cast %arg1 : i32 to index
    %c0_2 = arith.constant 0 : index
    %c0_3 = arith.constant 0 : index
    %5 = vector.load %arg3[%4, %c0_2, %c0_3] : memref<8x32x96xbf16, #tpu.memory_space<vmem>>, vector<1x32x96xbf16>
    %6 = vector.shape_cast %5 : vector<1x32x96xbf16> to vector<32x96xbf16>
    %7 = arith.truncf %3 : vector<16x32xf32> to vector<16x32xbf16>
    %cst = arith.constant dense<0.000000e+00> : vector<16x96xf32>
    %8 = tpu.matmul %7, %6, %cst {dimension_numbers = #tpu.dot_dimension_numbers<[1], [0], [0], [1], [0, 0, 1, 1], [], []>} : vector<16x32xbf16>, vector<32x96xbf16>, vector<16x96xf32> -> vector<16x96xf32>
    %9 = arith.index_cast %arg1 : i32 to index
    %c0_4 = arith.constant 0 : index
    %c0_5 = arith.constant 0 : index
    %10 = vector.load %arg4[%9, %c0_4, %c0_5] : memref<8x1x96xf32, #tpu.memory_space<vmem>>, vector<1x1x96xf32>
    %11 = vector.shape_cast %10 : vector<1x1x96xf32> to vector<1x96xf32>
    %12 = vector.broadcast %11 : vector<1x96xf32> to vector<16x96xf32>
    %13 = arith.addf %8, %12 : vector<16x96xf32>
    %c0_6 = arith.constant 0 : index
    %c0_7 = arith.constant 0 : index
    %14 = vector.load %arg17[%c0_6, %c0_7] : memref<128x8xbf16, #tpu.memory_space<vmem>>, vector<128x8xbf16>
    %c0_8 = arith.constant 0 : index
    %c0_9 = arith.constant 0 : index
    %15 = vector.load %arg18[%c0_8, %c0_9] : memref<32x128xf32, #tpu.memory_space<vmem>>, vector<32x128xf32>
    %c0_10 = arith.constant 0 : index
    %c0_11 = arith.constant 0 : index
    %16 = vector.load %arg19[%c0_10, %c0_11] : memref<128x32xf32, #tpu.memory_space<vmem>>, vector<128x32xf32>
    %c0_12 = arith.constant 0 : index
    %c0_13 = arith.constant 0 : index
    %17 = vector.load %arg20[%c0_12, %c0_13] : memref<128x128xbf16, #tpu.memory_space<vmem>>, vector<128x128xbf16>
    %18 = vector.extract_strided_slice %13 {offsets = [0, 0], sizes = [8, 32], strides = [1, 1]} : vector<16x96xf32> to vector<8x32xf32>
    %19 = vector.extract_strided_slice %13 {offsets = [0, 32], sizes = [8, 32], strides = [1, 1]} : vector<16x96xf32> to vector<8x32xf32>
    %20 = vector.extract_strided_slice %13 {offsets = [0, 64], sizes = [8, 32], strides = [1, 1]} : vector<16x96xf32> to vector<8x32xf32>
    %21 = arith.truncf %19 : vector<8x32xf32> to vector<8x32xbf16>
    %cst_14 = arith.constant dense<0.000000e+00> : vector<32x128xf32>
    %22 = tpu.matmul %21, %14, %cst_14 {dimension_numbers = #tpu.dot_dimension_numbers<[0], [1], [1], [0], [0, 1, 1, 0], [], []>} : vector<8x32xbf16>, vector<128x8xbf16>, vector<32x128xf32> -> vector<32x128xf32>
    %23 = arith.mulf %22, %15 : vector<32x128xf32>
    %24 = arith.truncf %20 : vector<8x32xf32> to vector<8x32xbf16>
    %cst_15 = arith.constant dense<0.000000e+00> : vector<128x32xf32>
    %25 = tpu.matmul %14, %24, %cst_15 {dimension_numbers = #tpu.dot_dimension_numbers<[1], [0], [0], [1], [0, 0, 1, 1], [], []>} : vector<128x8xbf16>, vector<8x32xbf16>, vector<128x32xf32> -> vector<128x32xf32>
    %26 = arith.mulf %25, %16 : vector<128x32xf32>
    %27 = arith.truncf %18 : vector<8x32xf32> to vector<8x32xbf16>
    %28 = arith.truncf %23 : vector<32x128xf32> to vector<32x128xbf16>
    %cst_16 = arith.constant dense<0.000000e+00> : vector<8x128xf32>
    %29 = tpu.matmul %27, %28, %cst_16 {dimension_numbers = #tpu.dot_dimension_numbers<[1], [0], [0], [1], [0, 0, 1, 1], [], []>} : vector<8x32xbf16>, vector<32x128xbf16>, vector<8x128xf32> -> vector<8x128xf32>
    %cst_17 = arith.constant 0.707106769 : f32
    %30 = vector.broadcast %cst_17 : f32 to vector<8x128xf32>
    %31 = arith.mulf %29, %30 : vector<8x128xf32>
    %cst_18 = arith.constant dense<0xFF800000> : vector<8xf32>
    %32 = vector.multi_reduction <maximumf>, %31, %cst_18 [1] : vector<8x128xf32> to vector<8xf32>
    %33 = vector.shape_cast %32 : vector<8xf32> to vector<8x1xf32>
    %34 = vector.broadcast %33 : vector<8x1xf32> to vector<8x128xf32>
    %35 = arith.subf %31, %34 : vector<8x128xf32>
    %36 = math.exp %35 : vector<8x128xf32>
    %37 = arith.truncf %36 : vector<8x128xf32> to vector<8x128xbf16>
    %cst_19 = arith.constant dense<0.000000e+00> : vector<8x128xf32>
    %38 = tpu.matmul %37, %17, %cst_19 {dimension_numbers = #tpu.dot_dimension_numbers<[1], [0], [0], [1], [0, 0, 1, 1], [], []>} : vector<8x128xbf16>, vector<128x128xbf16>, vector<8x128xf32> -> vector<8x128xf32>
    %39 = tpu.reciprocal %38 {approx = true} : vector<8x128xf32> -> vector<8x128xf32>
    %40 = arith.mulf %36, %39 : vector<8x128xf32>
    %41 = arith.truncf %40 : vector<8x128xf32> to vector<8x128xbf16>
    %42 = arith.truncf %26 : vector<128x32xf32> to vector<128x32xbf16>
    %cst_20 = arith.constant dense<0.000000e+00> : vector<8x32xf32>
    %43 = tpu.matmul %41, %42, %cst_20 {dimension_numbers = #tpu.dot_dimension_numbers<[1], [0], [0], [1], [0, 0, 1, 1], [], []>} : vector<8x128xbf16>, vector<128x32xbf16>, vector<8x32xf32> -> vector<8x32xf32>
    %c0_21 = arith.constant 0 : index
    %c0_22 = arith.constant 0 : index
    %44 = vector.load %arg24[%c0_21, %c0_22] : memref<16x32xf32, #tpu.memory_space<vmem>>, vector<8x32xf32>
    tpu.vector_store %arg24[%c0_21, %c0_22], %43 {strides = array<i32>} : memref<16x32xf32, #tpu.memory_space<vmem>>, vector<8x32xf32>,
    %45 = vector.extract_strided_slice %13 {offsets = [8, 0], sizes = [8, 32], strides = [1, 1]} : vector<16x96xf32> to vector<8x32xf32>
    %46 = vector.extract_strided_slice %13 {offsets = [8, 32], sizes = [8, 32], strides = [1, 1]} : vector<16x96xf32> to vector<8x32xf32>
    %47 = vector.extract_strided_slice %13 {offsets = [8, 64], sizes = [8, 32], strides = [1, 1]} : vector<16x96xf32> to vector<8x32xf32>
    %48 = arith.truncf %46 : vector<8x32xf32> to vector<8x32xbf16>
    %cst_23 = arith.constant dense<0.000000e+00> : vector<32x128xf32>
    %49 = tpu.matmul %48, %14, %cst_23 {dimension_numbers = #tpu.dot_dimension_numbers<[0], [1], [1], [0], [0, 1, 1, 0], [], []>} : vector<8x32xbf16>, vector<128x8xbf16>, vector<32x128xf32> -> vector<32x128xf32>
    %50 = arith.mulf %49, %15 : vector<32x128xf32>
    %51 = arith.truncf %47 : vector<8x32xf32> to vector<8x32xbf16>
    %cst_24 = arith.constant dense<0.000000e+00> : vector<128x32xf32>
    %52 = tpu.matmul %14, %51, %cst_24 {dimension_numbers = #tpu.dot_dimension_numbers<[1], [0], [0], [1], [0, 0, 1, 1], [], []>} : vector<128x8xbf16>, vector<8x32xbf16>, vector<128x32xf32> -> vector<128x32xf32>
    %53 = arith.mulf %52, %16 : vector<128x32xf32>
    %54 = arith.truncf %45 : vector<8x32xf32> to vector<8x32xbf16>
    %55 = arith.truncf %50 : vector<32x128xf32> to vector<32x128xbf16>
    %cst_25 = arith.constant dense<0.000000e+00> : vector<8x128xf32>
    %56 = tpu.matmul %54, %55, %cst_25 {dimension_numbers = #tpu.dot_dimension_numbers<[1], [0], [0], [1], [0, 0, 1, 1], [], []>} : vector<8x32xbf16>, vector<32x128xbf16>, vector<8x128xf32> -> vector<8x128xf32>
    %cst_26 = arith.constant 0.707106769 : f32
    %57 = vector.broadcast %cst_26 : f32 to vector<8x128xf32>
    %58 = arith.mulf %56, %57 : vector<8x128xf32>
    %cst_27 = arith.constant dense<0xFF800000> : vector<8xf32>
    %59 = vector.multi_reduction <maximumf>, %58, %cst_27 [1] : vector<8x128xf32> to vector<8xf32>
    %60 = vector.shape_cast %59 : vector<8xf32> to vector<8x1xf32>
    %61 = vector.broadcast %60 : vector<8x1xf32> to vector<8x128xf32>
    %62 = arith.subf %58, %61 : vector<8x128xf32>
    %63 = math.exp %62 : vector<8x128xf32>
    %64 = arith.truncf %63 : vector<8x128xf32> to vector<8x128xbf16>
    %cst_28 = arith.constant dense<0.000000e+00> : vector<8x128xf32>
    %65 = tpu.matmul %64, %17, %cst_28 {dimension_numbers = #tpu.dot_dimension_numbers<[1], [0], [0], [1], [0, 0, 1, 1], [], []>} : vector<8x128xbf16>, vector<128x128xbf16>, vector<8x128xf32> -> vector<8x128xf32>
    %66 = tpu.reciprocal %65 {approx = true} : vector<8x128xf32> -> vector<8x128xf32>
    %67 = arith.mulf %63, %66 : vector<8x128xf32>
    %68 = arith.truncf %67 : vector<8x128xf32> to vector<8x128xbf16>
    %69 = arith.truncf %53 : vector<128x32xf32> to vector<128x32xbf16>
    %cst_29 = arith.constant dense<0.000000e+00> : vector<8x32xf32>
    %70 = tpu.matmul %68, %69, %cst_29 {dimension_numbers = #tpu.dot_dimension_numbers<[1], [0], [0], [1], [0, 0, 1, 1], [], []>} : vector<8x128xbf16>, vector<128x32xbf16>, vector<8x32xf32> -> vector<8x32xf32>
    %c8 = arith.constant 8 : index
    %c0_30 = arith.constant 0 : index
    %71 = vector.load %arg24[%c8, %c0_30] : memref<16x32xf32, #tpu.memory_space<vmem>>, vector<8x32xf32>
    tpu.vector_store %arg24[%c8, %c0_30], %70 {strides = array<i32>} : memref<16x32xf32, #tpu.memory_space<vmem>>, vector<8x32xf32>,
    %c0_31 = arith.constant 0 : index
    %c0_32 = arith.constant 0 : index
    %72 = vector.load %arg24[%c0_31, %c0_32] : memref<16x32xf32, #tpu.memory_space<vmem>>, vector<16x32xf32>
    %73 = arith.index_cast %arg1 : i32 to index
    %c0_33 = arith.constant 0 : index
    %c0_34 = arith.constant 0 : index
    %74 = vector.load %arg5[%73, %c0_33, %c0_34] : memref<8x32x32xbf16, #tpu.memory_space<vmem>>, vector<1x32x32xbf16>
    %75 = vector.shape_cast %74 : vector<1x32x32xbf16> to vector<32x32xbf16>
    %76 = arith.truncf %72 : vector<16x32xf32> to vector<16x32xbf16>
    %cst_35 = arith.constant dense<0.000000e+00> : vector<16x32xf32>
    %77 = tpu.matmul %76, %75, %cst_35 {dimension_numbers = #tpu.dot_dimension_numbers<[1], [0], [0], [1], [0, 0, 1, 1], [], []>} : vector<16x32xbf16>, vector<32x32xbf16>, vector<16x32xf32> -> vector<16x32xf32>
    %78 = arith.index_cast %arg1 : i32 to index
    %c0_36 = arith.constant 0 : index
    %c0_37 = arith.constant 0 : index
    %79 = vector.load %arg6[%78, %c0_36, %c0_37] : memref<8x1x32xf32, #tpu.memory_space<vmem>>, vector<1x1x32xf32>
    %80 = vector.shape_cast %79 : vector<1x1x32xf32> to vector<1x32xf32>
    %81 = vector.broadcast %80 : vector<1x32xf32> to vector<16x32xf32>
    %82 = arith.addf %77, %81 : vector<16x32xf32>
    %83 = arith.addf %3, %82 : vector<16x32xf32>
    %84 = arith.index_cast %arg1 : i32 to index
    %c0_38 = arith.constant 0 : index
    %c0_39 = arith.constant 0 : index
    %85 = vector.load %arg11[%84, %c0_38, %c0_39] : memref<8x1x32xf32, #tpu.memory_space<vmem>>, vector<1x1x32xf32>
    %86 = vector.shape_cast %85 : vector<1x1x32xf32> to vector<1x32xf32>
    %87 = arith.index_cast %arg1 : i32 to index
    %c0_40 = arith.constant 0 : index
    %c0_41 = arith.constant 0 : index
    %88 = vector.load %arg12[%87, %c0_40, %c0_41] : memref<8x1x32xf32, #tpu.memory_space<vmem>>, vector<1x1x32xf32>
    %89 = vector.shape_cast %88 : vector<1x1x32xf32> to vector<1x32xf32>
    %cst_42 = arith.constant dense<0.000000e+00> : vector<16xf32>
    %90 = vector.multi_reduction <add>, %83, %cst_42 [1] : vector<16x32xf32> to vector<16xf32>
    %91 = vector.shape_cast %90 : vector<16xf32> to vector<16x1xf32>
    %cst_43 = arith.constant 3.200000e+01 : f32
    %92 = vector.broadcast %cst_43 : f32 to vector<16x1xf32>
    %93 = arith.divf %91, %92 : vector<16x1xf32>
    %94 = vector.broadcast %93 : vector<16x1xf32> to vector<16x32xf32>
    %95 = arith.subf %83, %94 : vector<16x32xf32>
    %96 = arith.mulf %95, %95 : vector<16x32xf32>
    %cst_44 = arith.constant dense<0.000000e+00> : vector<16xf32>
    %97 = vector.multi_reduction <add>, %96, %cst_44 [1] : vector<16x32xf32> to vector<16xf32>
    %98 = vector.shape_cast %97 : vector<16xf32> to vector<16x1xf32>
    %cst_45 = arith.constant 3.200000e+01 : f32
    %99 = vector.broadcast %cst_45 : f32 to vector<16x1xf32>
    %100 = arith.divf %98, %99 : vector<16x1xf32>
    %101 = vector.broadcast %93 : vector<16x1xf32> to vector<16x32xf32>
    %102 = arith.subf %83, %101 : vector<16x32xf32>
    %cst_46 = arith.constant 9.99999974E-6 : f32
    %103 = vector.broadcast %cst_46 : f32 to vector<16x1xf32>
    %104 = arith.addf %100, %103 : vector<16x1xf32>
    %105 = math.rsqrt %104 : vector<16x1xf32>
    %106 = vector.broadcast %105 : vector<16x1xf32> to vector<16x32xf32>
    %107 = arith.mulf %102, %106 : vector<16x32xf32>
    %108 = vector.broadcast %86 : vector<1x32xf32> to vector<16x32xf32>
    %109 = arith.mulf %107, %108 : vector<16x32xf32>
    %110 = vector.broadcast %89 : vector<1x32xf32> to vector<16x32xf32>
    %111 = arith.addf %109, %110 : vector<16x32xf32>
    %112 = arith.index_cast %arg1 : i32 to index
    %c0_47 = arith.constant 0 : index
    %c0_48 = arith.constant 0 : index
    %113 = vector.load %arg7[%112, %c0_47, %c0_48] : memref<8x32x2048xbf16, #tpu.memory_space<vmem>>, vector<1x32x2048xbf16>
    %114 = vector.shape_cast %113 : vector<1x32x2048xbf16> to vector<32x2048xbf16>
    %115 = arith.truncf %111 : vector<16x32xf32> to vector<16x32xbf16>
    %cst_49 = arith.constant dense<0.000000e+00> : vector<16x2048xf32>
    %116 = tpu.matmul %115, %114, %cst_49 {dimension_numbers = #tpu.dot_dimension_numbers<[1], [0], [0], [1], [0, 0, 1, 1], [], []>} : vector<16x32xbf16>, vector<32x2048xbf16>, vector<16x2048xf32> -> vector<16x2048xf32>
    %117 = arith.index_cast %arg1 : i32 to index
    %c0_50 = arith.constant 0 : index
    %c0_51 = arith.constant 0 : index
    %118 = vector.load %arg8[%117, %c0_50, %c0_51] : memref<8x1x2048xf32, #tpu.memory_space<vmem>>, vector<1x1x2048xf32>
    %119 = vector.shape_cast %118 : vector<1x1x2048xf32> to vector<1x2048xf32>
    %120 = vector.broadcast %119 : vector<1x2048xf32> to vector<16x2048xf32>
    %121 = arith.addf %116, %120 : vector<16x2048xf32>
    %cst_52 = arith.constant 0.000000e+00 : f32
    %122 = vector.broadcast %cst_52 : f32 to vector<16x2048xf32>
    %123 = arith.maximumf %121, %122 : vector<16x2048xf32>
    %124 = arith.index_cast %arg1 : i32 to index
    %c0_53 = arith.constant 0 : index
    %c0_54 = arith.constant 0 : index
    %125 = vector.load %arg9[%124, %c0_53, %c0_54] : memref<8x2048x32xbf16, #tpu.memory_space<vmem>>, vector<1x2048x32xbf16>
    %126 = vector.shape_cast %125 : vector<1x2048x32xbf16> to vector<2048x32xbf16>
    %127 = arith.truncf %123 : vector<16x2048xf32> to vector<16x2048xbf16>
    %cst_55 = arith.constant dense<0.000000e+00> : vector<16x32xf32>
    %128 = tpu.matmul %127, %126, %cst_55 {dimension_numbers = #tpu.dot_dimension_numbers<[1], [0], [0], [1], [0, 0, 1, 1], [], []>} : vector<16x2048xbf16>, vector<2048x32xbf16>, vector<16x32xf32> -> vector<16x32xf32>
    %129 = arith.index_cast %arg1 : i32 to index
    %c0_56 = arith.constant 0 : index
    %c0_57 = arith.constant 0 : index
    %130 = vector.load %arg10[%129, %c0_56, %c0_57] : memref<8x1x32xf32, #tpu.memory_space<vmem>>, vector<1x1x32xf32>
    %131 = vector.shape_cast %130 : vector<1x1x32xf32> to vector<1x32xf32>
    %132 = vector.broadcast %131 : vector<1x32xf32> to vector<16x32xf32>
    %133 = arith.addf %128, %132 : vector<16x32xf32>
    %134 = arith.addf %111, %133 : vector<16x32xf32>
    %135 = arith.index_cast %arg1 : i32 to index
    %c0_58 = arith.constant 0 : index
    %c0_59 = arith.constant 0 : index
    %136 = vector.load %arg13[%135, %c0_58, %c0_59] : memref<8x1x32xf32, #tpu.memory_space<vmem>>, vector<1x1x32xf32>
    %137 = vector.shape_cast %136 : vector<1x1x32xf32> to vector<1x32xf32>
    %138 = arith.index_cast %arg1 : i32 to index
    %c0_60 = arith.constant 0 : index
    %c0_61 = arith.constant 0 : index
    %139 = vector.load %arg14[%138, %c0_60, %c0_61] : memref<8x1x32xf32, #tpu.memory_space<vmem>>, vector<1x1x32xf32>
    %140 = vector.shape_cast %139 : vector<1x1x32xf32> to vector<1x32xf32>
    %cst_62 = arith.constant dense<0.000000e+00> : vector<16xf32>
    %141 = vector.multi_reduction <add>, %134, %cst_62 [1] : vector<16x32xf32> to vector<16xf32>
    %142 = vector.shape_cast %141 : vector<16xf32> to vector<16x1xf32>
    %cst_63 = arith.constant 3.200000e+01 : f32
    %143 = vector.broadcast %cst_63 : f32 to vector<16x1xf32>
    %144 = arith.divf %142, %143 : vector<16x1xf32>
    %145 = vector.broadcast %144 : vector<16x1xf32> to vector<16x32xf32>
    %146 = arith.subf %134, %145 : vector<16x32xf32>
    %147 = arith.mulf %146, %146 : vector<16x32xf32>
    %cst_64 = arith.constant dense<0.000000e+00> : vector<16xf32>
    %148 = vector.multi_reduction <add>, %147, %cst_64 [1] : vector<16x32xf32> to vector<16xf32>
    %149 = vector.shape_cast %148 : vector<16xf32> to vector<16x1xf32>
    %cst_65 = arith.constant 3.200000e+01 : f32
    %150 = vector.broadcast %cst_65 : f32 to vector<16x1xf32>
    %151 = arith.divf %149, %150 : vector<16x1xf32>
    %152 = vector.broadcast %144 : vector<16x1xf32> to vector<16x32xf32>
    %153 = arith.subf %134, %152 : vector<16x32xf32>
    %cst_66 = arith.constant 9.99999974E-6 : f32
    %154 = vector.broadcast %cst_66 : f32 to vector<16x1xf32>
    %155 = arith.addf %151, %154 : vector<16x1xf32>
    %156 = math.rsqrt %155 : vector<16x1xf32>
    %157 = vector.broadcast %156 : vector<16x1xf32> to vector<16x32xf32>
    %158 = arith.mulf %153, %157 : vector<16x32xf32>
    %159 = vector.broadcast %137 : vector<1x32xf32> to vector<16x32xf32>
    %160 = arith.mulf %158, %159 : vector<16x32xf32>
    %161 = vector.broadcast %140 : vector<1x32xf32> to vector<16x32xf32>
    %162 = arith.addf %160, %161 : vector<16x32xf32>
    %c0_67 = arith.constant 0 : index
    %c0_68 = arith.constant 0 : index
    %163 = vector.load %arg23[%c0_67, %c0_68] : memref<16x32xf32, #tpu.memory_space<vmem>>, vector<16x32xf32>
    tpu.vector_store %arg23[%c0_67, %c0_68], %162 {strides = array<i32>} : memref<16x32xf32, #tpu.memory_space<vmem>>, vector<16x32xf32>,
    %c7_i32 = arith.constant 7 : i32
    %164 = arith.cmpi eq, %arg1, %c7_i32 : i32
    %165 = arith.extui %164 : i1 to i32
    %c0_i32_69 = arith.constant 0 : i32
    %166 = arith.cmpi ne, %165, %c0_i32_69 : i32
    scf.if %166 {
      %c0_70 = arith.constant 0 : index
      %c0_71 = arith.constant 0 : index
      %167 = vector.load %arg21[%c0_70, %c0_71] : memref<2x16xf32, #tpu.memory_space<vmem>>, vector<2x16xf32>
      %cst_72 = arith.constant dense<0.000000e+00> : vector<2x32xf32>
      %168 = tpu.matmul %167, %162, %cst_72 {dimension_numbers = #tpu.dot_dimension_numbers<[1], [0], [0], [1], [0, 0, 1, 1], [], []>} : vector<2x16xf32>, vector<16x32xf32>, vector<2x32xf32> -> vector<2x32xf32>
      %c0_73 = arith.constant 0 : index
      %c0_74 = arith.constant 0 : index
      %169 = vector.load %arg15[%c0_73, %c0_74] : memref<32x7xf32, #tpu.memory_space<vmem>>, vector<32x7xf32>
      %170 = arith.truncf %168 : vector<2x32xf32> to vector<2x32xbf16>
      %171 = arith.truncf %169 : vector<32x7xf32> to vector<32x7xbf16>
      %cst_75 = arith.constant dense<0.000000e+00> : vector<2x7xf32>
      %172 = tpu.matmul %170, %171, %cst_75 {dimension_numbers = #tpu.dot_dimension_numbers<[1], [0], [0], [1], [0, 0, 1, 1], [], []>} : vector<2x32xbf16>, vector<32x7xbf16>, vector<2x7xf32> -> vector<2x7xf32>
      %c0_76 = arith.constant 0 : index
      %c0_77 = arith.constant 0 : index
      %173 = vector.load %arg16[%c0_76, %c0_77] : memref<1x7xf32, #tpu.memory_space<vmem>>, vector<1x7xf32>
      %174 = vector.broadcast %173 : vector<1x7xf32> to vector<2x7xf32>
      %175 = arith.addf %172, %174 : vector<2x7xf32>
      %c0_78 = arith.constant 0 : index
      %c0_79 = arith.constant 0 : index
      %176 = vector.load %arg22[%c0_78, %c0_79] : memref<2x7xf32, #tpu.memory_space<vmem>>, vector<2x7xf32>
      tpu.vector_store %arg22[%c0_78, %c0_79], %175 {strides = array<i32>} : memref<2x7xf32, #tpu.memory_space<vmem>>, vector<2x7xf32>,
    } else {
    }
    return
  }
  func.func @transform_0(%arg0: i32, %arg1: i32) -> (i32, i32) {
    %c0_i32 = arith.constant 0 : i32
    %c0_i32_0 = arith.constant 0 : i32
    return %arg0, %c0_i32 : i32, i32
  }
  func.func @transform_1(%arg0: i32, %arg1: i32) -> (i32, i32, i32) {
    %c0_i32 = arith.constant 0 : i32
    %c0_i32_0 = arith.constant 0 : i32
    %c0_i32_1 = arith.constant 0 : i32
    %c0_i32_2 = arith.constant 0 : i32
    return %c0_i32, %c0_i32_0, %c0_i32_1 : i32, i32, i32
  }
  func.func @transform_2(%arg0: i32, %arg1: i32) -> (i32, i32, i32) {
    %c0_i32 = arith.constant 0 : i32
    %c0_i32_0 = arith.constant 0 : i32
    %c0_i32_1 = arith.constant 0 : i32
    %c0_i32_2 = arith.constant 0 : i32
    return %c0_i32, %c0_i32_0, %c0_i32_1 : i32, i32, i32
  }
  func.func @transform_3(%arg0: i32, %arg1: i32) -> (i32, i32, i32) {
    %c0_i32 = arith.constant 0 : i32
    %c0_i32_0 = arith.constant 0 : i32
    %c0_i32_1 = arith.constant 0 : i32
    %c0_i32_2 = arith.constant 0 : i32
    return %c0_i32, %c0_i32_0, %c0_i32_1 : i32, i32, i32
  }
  func.func @transform_4(%arg0: i32, %arg1: i32) -> (i32, i32, i32) {
    %c0_i32 = arith.constant 0 : i32
    %c0_i32_0 = arith.constant 0 : i32
    %c0_i32_1 = arith.constant 0 : i32
    %c0_i32_2 = arith.constant 0 : i32
    return %c0_i32, %c0_i32_0, %c0_i32_1 : i32, i32, i32
  }
  func.func @transform_5(%arg0: i32, %arg1: i32) -> (i32, i32, i32) {
    %c0_i32 = arith.constant 0 : i32
    %c0_i32_0 = arith.constant 0 : i32
    %c0_i32_1 = arith.constant 0 : i32
    %c0_i32_2 = arith.constant 0 : i32
    return %c0_i32, %c0_i32_0, %c0_i32_1 : i32, i32, i32
  }
  func.func @transform_6(%arg0: i32, %arg1: i32) -> (i32, i32, i32) {
    %c0_i32 = arith.constant 0 : i32
    %c0_i32_0 = arith.constant 0 : i32
    %c0_i32_1 = arith.constant 0 : i32
    %c0_i32_2 = arith.constant 0 : i32
    return %c0_i32, %c0_i32_0, %c0_i32_1 : i32, i32, i32
  }
  func.func @transform_7(%arg0: i32, %arg1: i32) -> (i32, i32, i32) {
    %c0_i32 = arith.constant 0 : i32
    %c0_i32_0 = arith.constant 0 : i32
    %c0_i32_1 = arith.constant 0 : i32
    %c0_i32_2 = arith.constant 0 : i32
    return %c0_i32, %c0_i32_0, %c0_i32_1 : i32, i32, i32
  }
  func.func @transform_8(%arg0: i32, %arg1: i32) -> (i32, i32, i32) {
    %c0_i32 = arith.constant 0 : i32
    %c0_i32_0 = arith.constant 0 : i32
    %c0_i32_1 = arith.constant 0 : i32
    %c0_i32_2 = arith.constant 0 : i32
    return %c0_i32, %c0_i32_0, %c0_i32_1 : i32, i32, i32
  }
  func.func @transform_9(%arg0: i32, %arg1: i32) -> (i32, i32, i32) {
    %c0_i32 = arith.constant 0 : i32
    %c0_i32_0 = arith.constant 0 : i32
    %c0_i32_1 = arith.constant 0 : i32
    %c0_i32_2 = arith.constant 0 : i32
    return %c0_i32, %c0_i32_0, %c0_i32_1 : i32, i32, i32
  }
  func.func @transform_10(%arg0: i32, %arg1: i32) -> (i32, i32, i32) {
    %c0_i32 = arith.constant 0 : i32
    %c0_i32_0 = arith.constant 0 : i32
    %c0_i32_1 = arith.constant 0 : i32
    %c0_i32_2 = arith.constant 0 : i32
    return %c0_i32, %c0_i32_0, %c0_i32_1 : i32, i32, i32
  }
  func.func @transform_11(%arg0: i32, %arg1: i32) -> (i32, i32, i32) {
    %c0_i32 = arith.constant 0 : i32
    %c0_i32_0 = arith.constant 0 : i32
    %c0_i32_1 = arith.constant 0 : i32
    %c0_i32_2 = arith.constant 0 : i32
    return %c0_i32, %c0_i32_0, %c0_i32_1 : i32, i32, i32
  }
  func.func @transform_12(%arg0: i32, %arg1: i32) -> (i32, i32, i32) {
    %c0_i32 = arith.constant 0 : i32
    %c0_i32_0 = arith.constant 0 : i32
    %c0_i32_1 = arith.constant 0 : i32
    %c0_i32_2 = arith.constant 0 : i32
    return %c0_i32, %c0_i32_0, %c0_i32_1 : i32, i32, i32
  }
  func.func @transform_13(%arg0: i32, %arg1: i32) -> (i32, i32) {
    %c0_i32 = arith.constant 0 : i32
    %c0_i32_0 = arith.constant 0 : i32
    %c0_i32_1 = arith.constant 0 : i32
    return %c0_i32, %c0_i32_0 : i32, i32
  }
  func.func @transform_14(%arg0: i32, %arg1: i32) -> (i32, i32) {
    %c0_i32 = arith.constant 0 : i32
    %c0_i32_0 = arith.constant 0 : i32
    %c0_i32_1 = arith.constant 0 : i32
    return %c0_i32, %c0_i32_0 : i32, i32
  }
  func.func @transform_15(%arg0: i32, %arg1: i32) -> (i32, i32) {
    %c0_i32 = arith.constant 0 : i32
    %c0_i32_0 = arith.constant 0 : i32
    %c0_i32_1 = arith.constant 0 : i32
    return %c0_i32, %c0_i32_0 : i32, i32
  }
  func.func @transform_16(%arg0: i32, %arg1: i32) -> (i32, i32) {
    %c0_i32 = arith.constant 0 : i32
    %c0_i32_0 = arith.constant 0 : i32
    %c0_i32_1 = arith.constant 0 : i32
    return %c0_i32, %c0_i32_0 : i32, i32
  }
  func.func @transform_17(%arg0: i32, %arg1: i32) -> (i32, i32) {
    %c0_i32 = arith.constant 0 : i32
    %c0_i32_0 = arith.constant 0 : i32
    %c0_i32_1 = arith.constant 0 : i32
    return %c0_i32, %c0_i32_0 : i32, i32
  }
  func.func @transform_18(%arg0: i32, %arg1: i32) -> (i32, i32) {
    %c0_i32 = arith.constant 0 : i32
    %c0_i32_0 = arith.constant 0 : i32
    %c0_i32_1 = arith.constant 0 : i32
    return %c0_i32, %c0_i32_0 : i32, i32
  }
  func.func @transform_19(%arg0: i32, %arg1: i32) -> (i32, i32) {
    %c0_i32 = arith.constant 0 : i32
    %c0_i32_0 = arith.constant 0 : i32
    %c0_i32_1 = arith.constant 0 : i32
    return %c0_i32, %c0_i32_0 : i32, i32
  }
  func.func @transform_20(%arg0: i32, %arg1: i32) -> (i32, i32) {
    %c0_i32 = arith.constant 0 : i32
    %c0_i32_0 = arith.constant 0 : i32
    return %arg0, %c0_i32 : i32, i32
  }
}

</mosaic_0001>

<llo_original>
// kernel: emotion_transformer_forward.1
$region0: #{emotion_transformer_forward.1}
  #allocation0 [shape = 'u32[]', space=smem, size = 0x4, offset = 0x4, fixed_abs, tag = 'smem constant byte address 0x4 - core index']
  #allocation1 [shape = 'u32[144,128]{1,0:T(1,128)}', space=vmem, size = 0x12000, scoped, tag = 'internal scratch']
  #allocation2 [shape = 'f32[16,32]{1,0:T(8,128)}', space=vmem, size = 0x2000, scoped, tag = 'scratch operand']
  #allocation3 [shape = 'f32[16,32]{1,0:T(8,128)}', space=vmem, size = 0x2000, scoped, tag = 'scratch operand']
  %s0 = inlined_call_operand.vmem [shape: f32[16,32], index: 0, kind: input, shape index: {}]
  %s1 = inlined_call_operand.vmem [shape: bf16[8,32,96], index: 1, kind: input, shape index: {}]
  %s2 = inlined_call_operand.vmem [shape: f32[8,1,96], index: 2, kind: input, shape index: {}]
  %s3 = inlined_call_operand.vmem [shape: bf16[8,32,32], index: 3, kind: input, shape index: {}]
  %s4 = inlined_call_operand.vmem [shape: f32[8,1,32], index: 4, kind: input, shape index: {}]
  %s5 = inlined_call_operand.vmem [shape: bf16[8,32,2048], index: 5, kind: input, shape index: {}]
  %s6 = inlined_call_operand.vmem [shape: f32[8,1,2048], index: 6, kind: input, shape index: {}]
  %s7 = inlined_call_operand.vmem [shape: bf16[8,2048,32], index: 7, kind: input, shape index: {}]
  %s8 = inlined_call_operand.vmem [shape: f32[8,1,32], index: 8, kind: input, shape index: {}]
  %s9 = inlined_call_operand.vmem [shape: f32[8,1,32], index: 9, kind: input, shape index: {}]
  %s10 = inlined_call_operand.vmem [shape: f32[8,1,32], index: 10, kind: input, shape index: {}]
  %s11 = inlined_call_operand.vmem [shape: f32[8,1,32], index: 11, kind: input, shape index: {}]
  %s12 = inlined_call_operand.vmem [shape: f32[8,1,32], index: 12, kind: input, shape index: {}]
  %s13 = inlined_call_operand.vmem [shape: f32[32,7], index: 13, kind: input, shape index: {}]
  %s14 = inlined_call_operand.vmem [shape: f32[1,7], index: 14, kind: input, shape index: {}]
  %s15 = inlined_call_operand.vmem [shape: bf16[128,8], index: 15, kind: input, shape index: {}]
  %s16 = inlined_call_operand.vmem [shape: f32[32,128], index: 16, kind: input, shape index: {}]
  %s17 = inlined_call_operand.vmem [shape: f32[128,32], index: 17, kind: input, shape index: {}]
  %s18 = inlined_call_operand.vmem [shape: bf16[128,128], index: 18, kind: input, shape index: {}]
  %s19 = inlined_call_operand.vmem [shape: f32[2,16], index: 19, kind: input, shape index: {}]
  %s20 = inlined_call_operand.hbm [shape: f32[2,7], index: 20, kind: output, shape index: {}]
  %s21 = sld [smem:[#allocation0]]
  $region121: #{emotion_transformer_forward.1} parent=0
    _
  %s23 = ssub.s32 1, %s21
  %s24 = scalar_select 0, %s23, %s21
  $region1: #{emotion_transformer_forward.1} parent=0
    #allocation4 [shape = 'u8[1024]{0}', space=vmem, size = 0x400, scoped, tag = 'output window, operand 0, single buffered']
    #allocation5 [shape = 's32[2]{0}', space=sflag, size = 0x8, scoped, tag = 'scoped memory for emotion_transformer_forward.1']
    %25 = vsyncpa [#allocation5], 0
    loop: start=0, step=1, limit=10
    $region2: #{emotion_transformer_forward.1} parent=1 // loop_pre_header
      _
    $region3: #{emotion_transformer_forward.1} parent=1 // loop_header
      %s27 = sphi 0, %s31
      %p28 = scmp.ge.s32.totalorder %s27, 10
      %s34 = sphi 0, %s46
      %s35 = sphi 0, %s42
      %s36 = sphi 0, %s34
      %s37 = sphi 0, %s35
      %s38 = sphi 0, %s36
      %s39 = sphi 0, %s37
      %s49 = sphi 0, %s51
      %s52 = sphi 0, %s49
      %s53 = sphi 0, %s52
      %s69 = sphi 0, %s53
      %s73 = sphi 0, %s73
      %s75 = sphi 0, %s73
      %s76 = sphi 0, %s75
      %s90 = sphi 0, %s76
      %s94 = sphi 0, %s94
      %s96 = sphi 0, %s94
      %s97 = sphi 0, %s96
      %s111 = sphi 0, %s97
      %s115 = sphi 0, %s115
      %s117 = sphi 0, %s115
      %s118 = sphi 0, %s117
      %s132 = sphi 0, %s118
      %s136 = sphi 0, %s136
      %s138 = sphi 0, %s136
      %s139 = sphi 0, %s138
      %s153 = sphi 0, %s139
      %s157 = sphi 0, %s157
      %s159 = sphi 0, %s157
      %s160 = sphi 0, %s159
      %s174 = sphi 0, %s160
      %s178 = sphi 0, %s178
      %s180 = sphi 0, %s178
      %s181 = sphi 0, %s180
      %s195 = sphi 0, %s181
      %s199 = sphi 0, %s199
      %s201 = sphi 0, %s199
      %s202 = sphi 0, %s201
      %s216 = sphi 0, %s202
      %s220 = sphi 0, %s220
      %s222 = sphi 0, %s220
      %s223 = sphi 0, %s222
      %s237 = sphi 0, %s223
      %s241 = sphi 0, %s241
      %s243 = sphi 0, %s241
      %s244 = sphi 0, %s243
      %s258 = sphi 0, %s244
      %s262 = sphi 0, %s262
      %s264 = sphi 0, %s262
      %s265 = sphi 0, %s264
      %s279 = sphi 0, %s265
      %s283 = sphi 0, %s283
      %s285 = sphi 0, %s283
      %s286 = sphi 0, %s285
      %s300 = sphi 0, %s286
      %s304 = sphi 0, %s304
      %s306 = sphi 0, %s304
      %s307 = sphi 0, %s306
      %s321 = sphi 0, %s307
      %s325 = sphi 0, %s325
      %s327 = sphi 0, %s325
      %s328 = sphi 0, %s327
      %s342 = sphi 0, %s328
      %s346 = sphi 0, %s346
      %s348 = sphi 0, %s346
      %s349 = sphi 0, %s348
      %s363 = sphi 0, %s349
      %s367 = sphi 0, %s367
      %s369 = sphi 0, %s367
      %s370 = sphi 0, %s369
      %s384 = sphi 0, %s370
      %s388 = sphi 0, %s388
      %s390 = sphi 0, %s388
      %s391 = sphi 0, %s390
      %s405 = sphi 0, %s391
      %s409 = sphi 0, %s409
      %s411 = sphi 0, %s409
      %s412 = sphi 0, %s411
      %s426 = sphi 0, %s412
      %s430 = sphi 0, %s430
      %s432 = sphi 0, %s430
      %s433 = sphi 0, %s432
      %s447 = sphi 0, %s433
      %s451 = sphi 0, %s451
      %s453 = sphi 0, %s451
      %s454 = sphi 0, %s453
      %s468 = sphi 0, %s454
      %s474 = sphi 0, %s476
      %s477 = sphi 0, %s474
      %s478 = sphi 0, %s477
      %s494 = sphi 0, %s478
    $region4: #{emotion_transformer_forward.1} parent=1 // loop_header_branch
      %30 = sbr.rel (%p28) target = $region8
    $region5: #{emotion_transformer_forward.1} parent=1 // loop_body
      %s32 = ssub.s32 %s27, 1
      %s33 = ssub.s32 %s27, 2
      %s40 = sadd.s32 1, %s35
      %p41 = scmp.ge.s32.totalorder %s40, 8
      %s42 = scalar_select %p41, 0, %s40
      %s43 = sadd.s32 1, %s34
      %s44 = scalar_select %p41, %s43, %s34
      %p45 = scmp.ge.s32.totalorder %s44, 1
      %s46 = scalar_select %p45, 0, %s44
      %s47 = ssub.s32 %s34, %s46
      %p48 = scmp.eq.s32.totalorder %s47, 0
      %s50 = sadd.s32 %s49, 1
      %s51 = scalar_select %p48, %s49, %s50
      %p54 = pneg %p48
      %p55 = scmp.eq.s32.totalorder %s27, 7
      %p56 = por %p54, %p55
      %p57 = scmp.ne.s32.totalorder %s49, %s52
      %p58 = scmp.eq.s32.totalorder %s27, 0
      %p59 = por %p57, %p58
      %p60 = scmp.ne.s32.totalorder %s49, %s52
      %p61 = scmp.eq.s32.totalorder %s32, 7
      %p62 = por %p60, %p61
      %p63 = scmp.ne.s32.totalorder %s52, %s53
      %p64 = scmp.eq.s32.totalorder %s32, 0
      %p65 = por %p63, %p64
      %p66 = scmp.ne.s32.totalorder %s52, %s53
      %p67 = scmp.eq.s32.totalorder %s33, 7
      %p68 = por %p66, %p67
      %p70 = scmp.ne.s32.totalorder %s53, %s69
      %p71 = scmp.eq.s32.totalorder %s33, 0
      %p72 = por %p70, %p71
      %s74 = sadd.s32 %s73, 1
      %p77 = scmp.eq.s32.totalorder %s27, 7
      %p78 = scmp.ne.s32.totalorder %s73, %s75
      %p79 = scmp.eq.s32.totalorder %s27, 0
      %p80 = por %p78, %p79
      %p81 = scmp.ne.s32.totalorder %s73, %s75
      %p82 = scmp.eq.s32.totalorder %s32, 7
      %p83 = por %p81, %p82
      %p84 = scmp.ne.s32.totalorder %s75, %s76
      %p85 = scmp.eq.s32.totalorder %s32, 0
      %p86 = por %p84, %p85
      %p87 = scmp.ne.s32.totalorder %s75, %s76
      %p88 = scmp.eq.s32.totalorder %s33, 7
      %p89 = por %p87, %p88
      %p91 = scmp.ne.s32.totalorder %s76, %s90
      %p92 = scmp.eq.s32.totalorder %s33, 0
      %p93 = por %p91, %p92
      %s95 = sadd.s32 %s94, 1
      %p98 = scmp.eq.s32.totalorder %s27, 7
      %p99 = scmp.ne.s32.totalorder %s94, %s96
      %p100 = scmp.eq.s32.totalorder %s27, 0
      %p101 = por %p99, %p100
      %p102 = scmp.ne.s32.totalorder %s94, %s96
      %p103 = scmp.eq.s32.totalorder %s32, 7
      %p104 = por %p102, %p103
      %p105 = scmp.ne.s32.totalorder %s96, %s97
      %p106 = scmp.eq.s32.totalorder %s32, 0
      %p107 = por %p105, %p106
      %p108 = scmp.ne.s32.totalorder %s96, %s97
      %p109 = scmp.eq.s32.totalorder %s33, 7
      %p110 = por %p108, %p109
      %p112 = scmp.ne.s32.totalorder %s97, %s111
      %p113 = scmp.eq.s32.totalorder %s33, 0
      %p114 = por %p112, %p113
      %s116 = sadd.s32 %s115, 1
      %p119 = scmp.eq.s32.totalorder %s27, 7
      %p120 = scmp.ne.s32.totalorder %s115, %s117
      %p121 = scmp.eq.s32.totalorder %s27, 0
      %p122 = por %p120, %p121
      %p123 = scmp.ne.s32.totalorder %s115, %s117
      %p124 = scmp.eq.s32.totalorder %s32, 7
      %p125 = por %p123, %p124
      %p126 = scmp.ne.s32.totalorder %s117, %s118
      %p127 = scmp.eq.s32.totalorder %s32, 0
      %p128 = por %p126, %p127
      %p129 = scmp.ne.s32.totalorder %s117, %s118
      %p130 = scmp.eq.s32.totalorder %s33, 7
      %p131 = por %p129, %p130
      %p133 = scmp.ne.s32.totalorder %s118, %s132
      %p134 = scmp.eq.s32.totalorder %s33, 0
      %p135 = por %p133, %p134
      %s137 = sadd.s32 %s136, 1
      %p140 = scmp.eq.s32.totalorder %s27, 7
      %p141 = scmp.ne.s32.totalorder %s136, %s138
      %p142 = scmp.eq.s32.totalorder %s27, 0
      %p143 = por %p141, %p142
      %p144 = scmp.ne.s32.totalorder %s136, %s138
      %p145 = scmp.eq.s32.totalorder %s32, 7
      %p146 = por %p144, %p145
      %p147 = scmp.ne.s32.totalorder %s138, %s139
      %p148 = scmp.eq.s32.totalorder %s32, 0
      %p149 = por %p147, %p148
      %p150 = scmp.ne.s32.totalorder %s138, %s139
      %p151 = scmp.eq.s32.totalorder %s33, 7
      %p152 = por %p150, %p151
      %p154 = scmp.ne.s32.totalorder %s139, %s153
      %p155 = scmp.eq.s32.totalorder %s33, 0
      %p156 = por %p154, %p155
      %s158 = sadd.s32 %s157, 1
      %p161 = scmp.eq.s32.totalorder %s27, 7
      %p162 = scmp.ne.s32.totalorder %s157, %s159
      %p163 = scmp.eq.s32.totalorder %s27, 0
      %p164 = por %p162, %p163
      %p165 = scmp.ne.s32.totalorder %s157, %s159
      %p166 = scmp.eq.s32.totalorder %s32, 7
      %p167 = por %p165, %p166
      %p168 = scmp.ne.s32.totalorder %s159, %s160
      %p169 = scmp.eq.s32.totalorder %s32, 0
      %p170 = por %p168, %p169
      %p171 = scmp.ne.s32.totalorder %s159, %s160
      %p172 = scmp.eq.s32.totalorder %s33, 7
      %p173 = por %p171, %p172
      %p175 = scmp.ne.s32.totalorder %s160, %s174
      %p176 = scmp.eq.s32.totalorder %s33, 0
      %p177 = por %p175, %p176
      %s179 = sadd.s32 %s178, 1
      %p182 = scmp.eq.s32.totalorder %s27, 7
      %p183 = scmp.ne.s32.totalorder %s178, %s180
      %p184 = scmp.eq.s32.totalorder %s27, 0
      %p185 = por %p183, %p184
      %p186 = scmp.ne.s32.totalorder %s178, %s180
      %p187 = scmp.eq.s32.totalorder %s32, 7
      %p188 = por %p186, %p187
      %p189 = scmp.ne.s32.totalorder %s180, %s181
      %p190 = scmp.eq.s32.totalorder %s32, 0
      %p191 = por %p189, %p190
      %p192 = scmp.ne.s32.totalorder %s180, %s181
      %p193 = scmp.eq.s32.totalorder %s33, 7
      %p194 = por %p192, %p193
      %p196 = scmp.ne.s32.totalorder %s181, %s195
      %p197 = scmp.eq.s32.totalorder %s33, 0
      %p198 = por %p196, %p197
      %s200 = sadd.s32 %s199, 1
      %p203 = scmp.eq.s32.totalorder %s27, 7
      %p204 = scmp.ne.s32.totalorder %s199, %s201
      %p205 = scmp.eq.s32.totalorder %s27, 0
      %p206 = por %p204, %p205
      %p207 = scmp.ne.s32.totalorder %s199, %s201
      %p208 = scmp.eq.s32.totalorder %s32, 7
      %p209 = por %p207, %p208
      %p210 = scmp.ne.s32.totalorder %s201, %s202
      %p211 = scmp.eq.s32.totalorder %s32, 0
      %p212 = por %p210, %p211
      %p213 = scmp.ne.s32.totalorder %s201, %s202
      %p214 = scmp.eq.s32.totalorder %s33, 7
      %p215 = por %p213, %p214
      %p217 = scmp.ne.s32.totalorder %s202, %s216
      %p218 = scmp.eq.s32.totalorder %s33, 0
      %p219 = por %p217, %p218
      %s221 = sadd.s32 %s220, 1
      %p224 = scmp.eq.s32.totalorder %s27, 7
      %p225 = scmp.ne.s32.totalorder %s220, %s222
      %p226 = scmp.eq.s32.totalorder %s27, 0
      %p227 = por %p225, %p226
      %p228 = scmp.ne.s32.totalorder %s220, %s222
      %p229 = scmp.eq.s32.totalorder %s32, 7
      %p230 = por %p228, %p229
      %p231 = scmp.ne.s32.totalorder %s222, %s223
      %p232 = scmp.eq.s32.totalorder %s32, 0
      %p233 = por %p231, %p232
      %p234 = scmp.ne.s32.totalorder %s222, %s223
      %p235 = scmp.eq.s32.totalorder %s33, 7
      %p236 = por %p234, %p235
      %p238 = scmp.ne.s32.totalorder %s223, %s237
      %p239 = scmp.eq.s32.totalorder %s33, 0
      %p240 = por %p238, %p239
      %s242 = sadd.s32 %s241, 1
      %p245 = scmp.eq.s32.totalorder %s27, 7
      %p246 = scmp.ne.s32.totalorder %s241, %s243
      %p247 = scmp.eq.s32.totalorder %s27, 0
      %p248 = por %p246, %p247
      %p249 = scmp.ne.s32.totalorder %s241, %s243
      %p250 = scmp.eq.s32.totalorder %s32, 7
      %p251 = por %p249, %p250
      %p252 = scmp.ne.s32.totalorder %s243, %s244
      %p253 = scmp.eq.s32.totalorder %s32, 0
      %p254 = por %p252, %p253
      %p255 = scmp.ne.s32.totalorder %s243, %s244
      %p256 = scmp.eq.s32.totalorder %s33, 7
      %p257 = por %p255, %p256
      %p259 = scmp.ne.s32.totalorder %s244, %s258
      %p260 = scmp.eq.s32.totalorder %s33, 0
      %p261 = por %p259, %p260
      %s263 = sadd.s32 %s262, 1
      %p266 = scmp.eq.s32.totalorder %s27, 7
      %p267 = scmp.ne.s32.totalorder %s262, %s264
      %p268 = scmp.eq.s32.totalorder %s27, 0
      %p269 = por %p267, %p268
      %p270 = scmp.ne.s32.totalorder %s262, %s264
      %p271 = scmp.eq.s32.totalorder %s32, 7
      %p272 = por %p270, %p271
      %p273 = scmp.ne.s32.totalorder %s264, %s265
      %p274 = scmp.eq.s32.totalorder %s32, 0
      %p275 = por %p273, %p274
      %p276 = scmp.ne.s32.totalorder %s264, %s265
      %p277 = scmp.eq.s32.totalorder %s33, 7
      %p278 = por %p276, %p277
      %p280 = scmp.ne.s32.totalorder %s265, %s279
      %p281 = scmp.eq.s32.totalorder %s33, 0
      %p282 = por %p280, %p281
      %s284 = sadd.s32 %s283, 1
      %p287 = scmp.eq.s32.totalorder %s27, 7
      %p288 = scmp.ne.s32.totalorder %s283, %s285
      %p289 = scmp.eq.s32.totalorder %s27, 0
      %p290 = por %p288, %p289
      %p291 = scmp.ne.s32.totalorder %s283, %s285
      %p292 = scmp.eq.s32.totalorder %s32, 7
      %p293 = por %p291, %p292
      %p294 = scmp.ne.s32.totalorder %s285, %s286
      %p295 = scmp.eq.s32.totalorder %s32, 0
      %p296 = por %p294, %p295
      %p297 = scmp.ne.s32.totalorder %s285, %s286
      %p298 = scmp.eq.s32.totalorder %s33, 7
      %p299 = por %p297, %p298
      %p301 = scmp.ne.s32.totalorder %s286, %s300
      %p302 = scmp.eq.s32.totalorder %s33, 0
      %p303 = por %p301, %p302
      %s305 = sadd.s32 %s304, 1
      %p308 = scmp.eq.s32.totalorder %s27, 7
      %p309 = scmp.ne.s32.totalorder %s304, %s306
      %p310 = scmp.eq.s32.totalorder %s27, 0
      %p311 = por %p309, %p310
      %p312 = scmp.ne.s32.totalorder %s304, %s306
      %p313 = scmp.eq.s32.totalorder %s32, 7
      %p314 = por %p312, %p313
      %p315 = scmp.ne.s32.totalorder %s306, %s307
      %p316 = scmp.eq.s32.totalorder %s32, 0
      %p317 = por %p315, %p316
      %p318 = scmp.ne.s32.totalorder %s306, %s307
      %p319 = scmp.eq.s32.totalorder %s33, 7
      %p320 = por %p318, %p319
      %p322 = scmp.ne.s32.totalorder %s307, %s321
      %p323 = scmp.eq.s32.totalorder %s33, 0
      %p324 = por %p322, %p323
      %s326 = sadd.s32 %s325, 1
      %p329 = scmp.eq.s32.totalorder %s27, 7
      %p330 = scmp.ne.s32.totalorder %s325, %s327
      %p331 = scmp.eq.s32.totalorder %s27, 0
      %p332 = por %p330, %p331
      %p333 = scmp.ne.s32.totalorder %s325, %s327
      %p334 = scmp.eq.s32.totalorder %s32, 7
      %p335 = por %p333, %p334
      %p336 = scmp.ne.s32.totalorder %s327, %s328
      %p337 = scmp.eq.s32.totalorder %s32, 0
      %p338 = por %p336, %p337
      %p339 = scmp.ne.s32.totalorder %s327, %s328
      %p340 = scmp.eq.s32.totalorder %s33, 7
      %p341 = por %p339, %p340
      %p343 = scmp.ne.s32.totalorder %s328, %s342
      %p344 = scmp.eq.s32.totalorder %s33, 0
      %p345 = por %p343, %p344
      %s347 = sadd.s32 %s346, 1
      %p350 = scmp.eq.s32.totalorder %s27, 7
      %p351 = scmp.ne.s32.totalorder %s346, %s348
      %p352 = scmp.eq.s32.totalorder %s27, 0
      %p353 = por %p351, %p352
      %p354 = scmp.ne.s32.totalorder %s346, %s348
      %p355 = scmp.eq.s32.totalorder %s32, 7
      %p356 = por %p354, %p355
      %p357 = scmp.ne.s32.totalorder %s348, %s349
      %p358 = scmp.eq.s32.totalorder %s32, 0
      %p359 = por %p357, %p358
      %p360 = scmp.ne.s32.totalorder %s348, %s349
      %p361 = scmp.eq.s32.totalorder %s33, 7
      %p362 = por %p360, %p361
      %p364 = scmp.ne.s32.totalorder %s349, %s363
      %p365 = scmp.eq.s32.totalorder %s33, 0
      %p366 = por %p364, %p365
      %s368 = sadd.s32 %s367, 1
      %p371 = scmp.eq.s32.totalorder %s27, 7
      %p372 = scmp.ne.s32.totalorder %s367, %s369
      %p373 = scmp.eq.s32.totalorder %s27, 0
      %p374 = por %p372, %p373
      %p375 = scmp.ne.s32.totalorder %s367, %s369
      %p376 = scmp.eq.s32.totalorder %s32, 7
      %p377 = por %p375, %p376
      %p378 = scmp.ne.s32.totalorder %s369, %s370
      %p379 = scmp.eq.s32.totalorder %s32, 0
      %p380 = por %p378, %p379
      %p381 = scmp.ne.s32.totalorder %s369, %s370
      %p382 = scmp.eq.s32.totalorder %s33, 7
      %p383 = por %p381, %p382
      %p385 = scmp.ne.s32.totalorder %s370, %s384
      %p386 = scmp.eq.s32.totalorder %s33, 0
      %p387 = por %p385, %p386
      %s389 = sadd.s32 %s388, 1
      %p392 = scmp.eq.s32.totalorder %s27, 7
      %p393 = scmp.ne.s32.totalorder %s388, %s390
      %p394 = scmp.eq.s32.totalorder %s27, 0
      %p395 = por %p393, %p394
      %p396 = scmp.ne.s32.totalorder %s388, %s390
      %p397 = scmp.eq.s32.totalorder %s32, 7
      %p398 = por %p396, %p397
      %p399 = scmp.ne.s32.totalorder %s390, %s391
      %p400 = scmp.eq.s32.totalorder %s32, 0
      %p401 = por %p399, %p400
      %p402 = scmp.ne.s32.totalorder %s390, %s391
      %p403 = scmp.eq.s32.totalorder %s33, 7
      %p404 = por %p402, %p403
      %p406 = scmp.ne.s32.totalorder %s391, %s405
      %p407 = scmp.eq.s32.totalorder %s33, 0
      %p408 = por %p406, %p407
      %s410 = sadd.s32 %s409, 1
      %p413 = scmp.eq.s32.totalorder %s27, 7
      %p414 = scmp.ne.s32.totalorder %s409, %s411
      %p415 = scmp.eq.s32.totalorder %s27, 0
      %p416 = por %p414, %p415
      %p417 = scmp.ne.s32.totalorder %s409, %s411
      %p418 = scmp.eq.s32.totalorder %s32, 7
      %p419 = por %p417, %p418
      %p420 = scmp.ne.s32.totalorder %s411, %s412
      %p421 = scmp.eq.s32.totalorder %s32, 0
      %p422 = por %p420, %p421
      %p423 = scmp.ne.s32.totalorder %s411, %s412
      %p424 = scmp.eq.s32.totalorder %s33, 7
      %p425 = por %p423, %p424
      %p427 = scmp.ne.s32.totalorder %s412, %s426
      %p428 = scmp.eq.s32.totalorder %s33, 0
      %p429 = por %p427, %p428
      %s431 = sadd.s32 %s430, 1
      %p434 = scmp.eq.s32.totalorder %s27, 7
      %p435 = scmp.ne.s32.totalorder %s430, %s432
      %p436 = scmp.eq.s32.totalorder %s27, 0
      %p437 = por %p435, %p436
      %p438 = scmp.ne.s32.totalorder %s430, %s432
      %p439 = scmp.eq.s32.totalorder %s32, 7
      %p440 = por %p438, %p439
      %p441 = scmp.ne.s32.totalorder %s432, %s433
      %p442 = scmp.eq.s32.totalorder %s32, 0
      %p443 = por %p441, %p442
      %p444 = scmp.ne.s32.totalorder %s432, %s433
      %p445 = scmp.eq.s32.totalorder %s33, 7
      %p446 = por %p444, %p445
      %p448 = scmp.ne.s32.totalorder %s433, %s447
      %p449 = scmp.eq.s32.totalorder %s33, 0
      %p450 = por %p448, %p449
      %s452 = sadd.s32 %s451, 1
      %p455 = scmp.eq.s32.totalorder %s27, 7
      %p456 = scmp.ne.s32.totalorder %s451, %s453
      %p457 = scmp.eq.s32.totalorder %s27, 0
      %p458 = por %p456, %p457
      %p459 = scmp.ne.s32.totalorder %s451, %s453
      %p460 = scmp.eq.s32.totalorder %s32, 7
      %p461 = por %p459, %p460
      %p462 = scmp.ne.s32.totalorder %s453, %s454
      %p463 = scmp.eq.s32.totalorder %s32, 0
      %p464 = por %p462, %p463
      %p465 = scmp.ne.s32.totalorder %s453, %s454
      %p466 = scmp.eq.s32.totalorder %s33, 7
      %p467 = por %p465, %p466
      %p469 = scmp.ne.s32.totalorder %s454, %s468
      %p470 = scmp.eq.s32.totalorder %s33, 0
      %p471 = por %p469, %p470
      %s472 = ssub.s32 %s34, %s46
      %p473 = scmp.eq.s32.totalorder %s472, 0
      %s475 = sadd.s32 %s474, 1
      %s476 = scalar_select %p473, %s474, %s475
      %p479 = pneg %p473
      %p480 = scmp.eq.s32.totalorder %s27, 7
      %p481 = por %p479, %p480
      %p482 = scmp.ne.s32.totalorder %s474, %s477
      %p483 = scmp.eq.s32.totalorder %s27, 0
      %p484 = por %p482, %p483
      %p485 = scmp.ne.s32.totalorder %s474, %s477
      %p486 = scmp.eq.s32.totalorder %s32, 7
      %p487 = por %p485, %p486
      %p488 = scmp.ne.s32.totalorder %s477, %s478
      %p489 = scmp.eq.s32.totalorder %s32, 0
      %p490 = por %p488, %p489
      %p491 = scmp.ne.s32.totalorder %s477, %s478
      %p492 = scmp.eq.s32.totalorder %s33, 7
      %p493 = por %p491, %p492
      %p495 = scmp.ne.s32.totalorder %s478, %s494
      %p496 = scmp.eq.s32.totalorder %s33, 0
      %p497 = por %p495, %p496
      %p498 = scmp.le.s32.totalorder 1, %s27
      %p499 = scmp.lt.s32.totalorder %s27, 9
      %p500 = pnand %p498, %p499
      %p501 = pneg %p500
      // Predicated region
      $region9: #{emotion_transformer_forward.1} parent=5 // pred_check
        _
      $region10: #{emotion_transformer_forward.1} parent=5 // pred_check_branch
        %503 = sbr.rel (%p500) target = $region12
      $region11: #{emotion_transformer_forward.1} parent=5 // pred_region
        %s504 = ssub.s32 %s27, 1
        // Predicated region
        $region13: #{emotion_transformer_forward.1} parent=11 // pred_check
          %p505 = pneg %p65
        $region14: #{emotion_transformer_forward.1} parent=11 // pred_check_branch
          %507 = sbr.rel (%p505) target = $region16
        $region15: #{emotion_transformer_forward.1} parent=11 // pred_region
          %s508 = smul.u32 2, %s36
          %p509 = scmp.lt.s32.totalorder %s508, 1
          %s510 = scalar_select %p509, %s508, 1
          %s511 = smul.addr %s510, 8
          %s512 = scalar_lea.vmem %s0, %s511
          %s513 = smul.u32 2, %s36
        $region16: #{emotion_transformer_forward.1} parent=11 // pred_fallthru
          _
        // Predicated region
        $region17: #{emotion_transformer_forward.1} parent=11 // pred_check
          %p514 = pneg %p86
        $region18: #{emotion_transformer_forward.1} parent=11 // pred_check_branch
          %516 = sbr.rel (%p514) target = $region20
        $region19: #{emotion_transformer_forward.1} parent=11 // pred_region
          _
        $region20: #{emotion_transformer_forward.1} parent=11 // pred_fallthru
          _
        // Predicated region
        $region21: #{emotion_transformer_forward.1} parent=11 // pred_check
          %p517 = pneg %p107
        $region22: #{emotion_transformer_forward.1} parent=11 // pred_check_branch
          %519 = sbr.rel (%p517) target = $region24
        $region23: #{emotion_transformer_forward.1} parent=11 // pred_region
          _
        $region24: #{emotion_transformer_forward.1} parent=11 // pred_fallthru
          _
        // Predicated region
        $region25: #{emotion_transformer_forward.1} parent=11 // pred_check
          %p520 = pneg %p128
        $region26: #{emotion_transformer_forward.1} parent=11 // pred_check_branch
          %522 = sbr.rel (%p520) target = $region28
        $region27: #{emotion_transformer_forward.1} parent=11 // pred_region
          _
        $region28: #{emotion_transformer_forward.1} parent=11 // pred_fallthru
          _
        // Predicated region
        $region29: #{emotion_transformer_forward.1} parent=11 // pred_check
          %p523 = pneg %p149
        $region30: #{emotion_transformer_forward.1} parent=11 // pred_check_branch
          %525 = sbr.rel (%p523) target = $region32
        $region31: #{emotion_transformer_forward.1} parent=11 // pred_region
          _
        $region32: #{emotion_transformer_forward.1} parent=11 // pred_fallthru
          _
        // Predicated region
        $region33: #{emotion_transformer_forward.1} parent=11 // pred_check
          %p526 = pneg %p170
        $region34: #{emotion_transformer_forward.1} parent=11 // pred_check_branch
          %528 = sbr.rel (%p526) target = $region36
        $region35: #{emotion_transformer_forward.1} parent=11 // pred_region
          _
        $region36: #{emotion_transformer_forward.1} parent=11 // pred_fallthru
          _
        // Predicated region
        $region37: #{emotion_transformer_forward.1} parent=11 // pred_check
          %p529 = pneg %p191
        $region38: #{emotion_transformer_forward.1} parent=11 // pred_check_branch
          %531 = sbr.rel (%p529) target = $region40
        $region39: #{emotion_transformer_forward.1} parent=11 // pred_region
          _
        $region40: #{emotion_transformer_forward.1} parent=11 // pred_fallthru
          _
        // Predicated region
        $region41: #{emotion_transformer_forward.1} parent=11 // pred_check
          %p532 = pneg %p212
        $region42: #{emotion_transformer_forward.1} parent=11 // pred_check_branch
          %534 = sbr.rel (%p532) target = $region44
        $region43: #{emotion_transformer_forward.1} parent=11 // pred_region
          _
        $region44: #{emotion_transformer_forward.1} parent=11 // pred_fallthru
          _
        // Predicated region
        $region45: #{emotion_transformer_forward.1} parent=11 // pred_check
          %p535 = pneg %p233
        $region46: #{emotion_transformer_forward.1} parent=11 // pred_check_branch
          %537 = sbr.rel (%p535) target = $region48
        $region47: #{emotion_transformer_forward.1} parent=11 // pred_region
          _
        $region48: #{emotion_transformer_forward.1} parent=11 // pred_fallthru
          _
        // Predicated region
        $region49: #{emotion_transformer_forward.1} parent=11 // pred_check
          %p538 = pneg %p254
        $region50: #{emotion_transformer_forward.1} parent=11 // pred_check_branch
          %540 = sbr.rel (%p538) target = $region52
        $region51: #{emotion_transformer_forward.1} parent=11 // pred_region
          _
        $region52: #{emotion_transformer_forward.1} parent=11 // pred_fallthru
          _
        // Predicated region
        $region53: #{emotion_transformer_forward.1} parent=11 // pred_check
          %p541 = pneg %p275
        $region54: #{emotion_transformer_forward.1} parent=11 // pred_check_branch
          %543 = sbr.rel (%p541) target = $region56
        $region55: #{emotion_transformer_forward.1} parent=11 // pred_region
          _
        $region56: #{emotion_transformer_forward.1} parent=11 // pred_fallthru
          _
        // Predicated region
        $region57: #{emotion_transformer_forward.1} parent=11 // pred_check
          %p544 = pneg %p296
        $region58: #{emotion_transformer_forward.1} parent=11 // pred_check_branch
          %546 = sbr.rel (%p544) target = $region60
        $region59: #{emotion_transformer_forward.1} parent=11 // pred_region
          _
        $region60: #{emotion_transformer_forward.1} parent=11 // pred_fallthru
          _
        // Predicated region
        $region61: #{emotion_transformer_forward.1} parent=11 // pred_check
          %p547 = pneg %p317
        $region62: #{emotion_transformer_forward.1} parent=11 // pred_check_branch
          %549 = sbr.rel (%p547) target = $region64
        $region63: #{emotion_transformer_forward.1} parent=11 // pred_region
          _
        $region64: #{emotion_transformer_forward.1} parent=11 // pred_fallthru
          _
        // Predicated region
        $region65: #{emotion_transformer_forward.1} parent=11 // pred_check
          %p550 = pneg %p338
        $region66: #{emotion_transformer_forward.1} parent=11 // pred_check_branch
          %552 = sbr.rel (%p550) target = $region68
        $region67: #{emotion_transformer_forward.1} parent=11 // pred_region
          _
        $region68: #{emotion_transformer_forward.1} parent=11 // pred_fallthru
          _
        // Predicated region
        $region69: #{emotion_transformer_forward.1} parent=11 // pred_check
          %p553 = pneg %p359
        $region70: #{emotion_transformer_forward.1} parent=11 // pred_check_branch
          %555 = sbr.rel (%p553) target = $region72
        $region71: #{emotion_transformer_forward.1} parent=11 // pred_region
          _
        $region72: #{emotion_transformer_forward.1} parent=11 // pred_fallthru
          _
        // Predicated region
        $region73: #{emotion_transformer_forward.1} parent=11 // pred_check
          %p556 = pneg %p380
        $region74: #{emotion_transformer_forward.1} parent=11 // pred_check_branch
          %558 = sbr.rel (%p556) target = $region76
        $region75: #{emotion_transformer_forward.1} parent=11 // pred_region
          _
        $region76: #{emotion_transformer_forward.1} parent=11 // pred_fallthru
          _
        // Predicated region
        $region77: #{emotion_transformer_forward.1} parent=11 // pred_check
          %p559 = pneg %p401
        $region78: #{emotion_transformer_forward.1} parent=11 // pred_check_branch
          %561 = sbr.rel (%p559) target = $region80
        $region79: #{emotion_transformer_forward.1} parent=11 // pred_region
          _
        $region80: #{emotion_transformer_forward.1} parent=11 // pred_fallthru
          _
        // Predicated region
        $region81: #{emotion_transformer_forward.1} parent=11 // pred_check
          %p562 = pneg %p422
        $region82: #{emotion_transformer_forward.1} parent=11 // pred_check_branch
          %564 = sbr.rel (%p562) target = $region84
        $region83: #{emotion_transformer_forward.1} parent=11 // pred_region
          _
        $region84: #{emotion_transformer_forward.1} parent=11 // pred_fallthru
          _
        // Predicated region
        $region85: #{emotion_transformer_forward.1} parent=11 // pred_check
          %p565 = pneg %p443
        $region86: #{emotion_transformer_forward.1} parent=11 // pred_check_branch
          %567 = sbr.rel (%p565) target = $region88
        $region87: #{emotion_transformer_forward.1} parent=11 // pred_region
          _
        $region88: #{emotion_transformer_forward.1} parent=11 // pred_fallthru
          _
        // Predicated region
        $region89: #{emotion_transformer_forward.1} parent=11 // pred_check
          %p568 = pneg %p464
        $region90: #{emotion_transformer_forward.1} parent=11 // pred_check_branch
          %570 = sbr.rel (%p568) target = $region92
        $region91: #{emotion_transformer_forward.1} parent=11 // pred_region
          _
        $region92: #{emotion_transformer_forward.1} parent=11 // pred_fallthru
          _
      $region12: #{emotion_transformer_forward.1} parent=5 // pred_fallthru
        _
      %p571 = scmp.lt.s32.totalorder %s27, 8
      // Predicated region
      $region93: #{emotion_transformer_forward.1} parent=5 // pred_check
        %p572 = pneg %p571
      $region94: #{emotion_transformer_forward.1} parent=5 // pred_check_branch
        %574 = sbr.rel (%p572) target = $region96
      $region95: #{emotion_transformer_forward.1} parent=5 // pred_region
        _
      $region96: #{emotion_transformer_forward.1} parent=5 // pred_fallthru
        _
      %p575 = scmp.le.s32.totalorder 1, %s27
      %p576 = scmp.lt.s32.totalorder %s27, 9
      %p577 = pnand %p575, %p576
      %p578 = pneg %p577
      // Predicated region
      $region97: #{emotion_transformer_forward.1} parent=5 // pred_check
        _
      $region98: #{emotion_transformer_forward.1} parent=5 // pred_check_branch
        %580 = sbr.rel (%p577) target = $region100
      $region99: #{emotion_transformer_forward.1} parent=5 // pred_region
        %s581 = ssub.s32 %s27, 1
        %s582 = smul.u32 2, %s36
        %p583 = scmp.lt.s32.totalorder %s582, 1
        %s584 = scalar_select %p583, %s582, 1
        %s585 = smul.addr %s584, 8
        %s586 = scalar_lea.vmem %s0, %s585
        %p587 = pneg %p65
        %p588 = pneg %p62
        %p589 = pneg %p86
        %p590 = pneg %p83
        %p591 = pneg %p107
        %p592 = pneg %p104
        %p593 = pneg %p128
        %p594 = pneg %p125
        %p595 = pneg %p149
        %p596 = pneg %p146
        %p597 = pneg %p170
        %p598 = pneg %p167
        %p599 = pneg %p191
        %p600 = pneg %p188
        %p601 = pneg %p212
        %p602 = pneg %p209
        %p603 = pneg %p233
        %p604 = pneg %p230
        %p605 = pneg %p254
        %p606 = pneg %p251
        %p607 = pneg %p275
        %p608 = pneg %p272
        %p609 = pneg %p296
        %p610 = pneg %p293
        %p611 = pneg %p317
        %p612 = pneg %p314
        %p613 = pneg %p338
        %p614 = pneg %p335
        %p615 = pneg %p359
        %p616 = pneg %p356
        %p617 = pneg %p380
        %p618 = pneg %p377
        %p619 = pneg %p401
        %p620 = pneg %p398
        %p621 = pneg %p422
        %p622 = pneg %p419
        %p623 = pneg %p443
        %p624 = pneg %p440
        %p625 = pneg %p464
        %p626 = pneg %p461
        %p627 = pneg %p490
        %p628 = pneg %p487
        %s629 = smul.u32 2, %s36
        %p630 = scmp.lt.s32.totalorder %s629, 1
        %s631 = scalar_select %p630, %s629, 1
        %s632 = smul.addr %s631, 8
        %s633 = scalar_lea.vmem %s0, %s632
        %s634 = smul.u32 2, %s36
        %p636 = scmp.eq.s32.totalorder %s37, 0
        // Predicated region
        $region101: #{emotion_transformer_forward.1} parent=99 // pred_check
          %p637 = pneg %p636
        $region102: #{emotion_transformer_forward.1} parent=99 // pred_check_branch
          %639 = sbr.rel (%p637) target = $region104
        $region103: #{emotion_transformer_forward.1} parent=99 // pred_region
          %v640 = vld [vmem:[%s633] sm:$0xff]
          %v641 = vld [vmem:[%s633 + $0x8] sm:$0xff]
          %vm642 = vcmask 261120
          %643 = vst.msk [vmem:[#allocation2] sm:$0xff] %vm642, %v640
          %644 = vst.msk [vmem:[#allocation2 + $0x8] sm:$0xff] %vm642, %v641
        $region104: #{emotion_transformer_forward.1} parent=99 // pred_fallthru
          _
        %v645 = vld [vmem:[#allocation2] sm:$0xff]
        %v646 = vld [vmem:[#allocation2 + $0x8] sm:$0xff]
        %s647 = smul.u32 %s37, 4
        %s648 = smul.addr %s647, 4
        %s649 = scalar_lea.vmem %s1, %s648
        %v650 = vld [vmem:[%s649] sm:$0xf]
        %v651 = vld [vmem:[%s649 + $0x4] sm:$0xf]
        %v652 = vld [vmem:[%s649 + $0x8] sm:$0xf]
        %v653 = vld [vmem:[%s649 + $0xc] sm:$0xf]
        %v654 = vpack.c.bf16 %v646, %v645
        %s655 = scalar_lea.vmem %s2, %s37
        %v656 = vld [vmem:[%s655] sm:$0x1]
        %v658 = vlaneseq
        %v659 = vshrl.u32 %v658, 7
        %v660 = vsub.s32 0, %v659
        %v661 = vrot.slane %v656, %v660
        %v667 = vunpack.c.l.b16 %v650
        %v668 = vunpack.c.l.b16 %v651
        %v669 = vunpack.c.l.b16 %v652
        %v670 = vunpack.c.l.b16 %v653
        %v671 = vpack.c.b16 %v668, %v667
        %v672 = vpack.c.b16 %v670, %v669
        %vm675 = vcmask 261120
        %v677 = vsel %vm675, %v654, 0
        %679 = vmatprep.subr.bf16.mxu0 0
        %680 = vmatpush1.bf16.msra.mxu0 0
        %681 = vmatprep.subr.bf16.mxu0 0
        %682 = vmatpush1.bf16.msra.mxu0 0
        %683 = vmatprep.subr.bf16.mxu0 0
        %684 = vmatpush1.bf16.msra.mxu0 0
        %685 = vmatprep.subr.bf16.mxu0 0
        %686 = vmatpush1.bf16.msra.mxu0 0
        %687 = vmatprep.subr.bf16.mxu0 0
        %688 = vmatpush1.bf16.msra.mxu0 0
        %689 = vmatprep.subr.bf16.mxu0 0
        %690 = vmatpush1.bf16.msra.mxu0 0
        %691 = vmatprep.subr.bf16.mxu0 0
        %692 = vmatpush1.bf16.msra.mxu0 %v672
        %693 = vmatprep.subr.bf16.mxu0 0
        %694 = vmatpush1.bf16.msra.mxu0 %v671
        %695 = vmatprep.subr.bf16.mxu0 0
        %696 = vmatpush2.bf16.msra.mxu0 0
        %697 = vmatprep.subr.bf16.mxu0 0
        %698 = vmatpush2.bf16.msra.mxu0 0
        %699 = vmatprep.subr.bf16.mxu0 0
        %700 = vmatpush2.bf16.msra.mxu0 0
        %701 = vmatprep.subr.bf16.mxu0 0
        %702 = vmatpush2.bf16.msra.mxu0 0
        %703 = vmatprep.subr.bf16.mxu0 0
        %704 = vmatpush2.bf16.msra.mxu0 0
        %705 = vmatprep.subr.bf16.mxu0 0
        %706 = vmatpush2.bf16.msra.mxu0 0
        %707 = vmatprep.subr.bf16.mxu0 0
        %708 = vmatpush2.bf16.msra.mxu0 0
        %709 = vmatprep.subr.bf16.mxu0 0
        %710 = vmatpush2.bf16.msra.mxu0 0
        %711 = vmatprep.mubr.bf16.mxu0 0
        %712 = vmatmul.mubr.bf16.gmra.mxu0 %v677
        %v713 = vpop.f32.mrf.mxu0
        %v714 = vadd.f32 %v661, %v713
        %v715 = vpop.f32.mrf.mxu0
        %v716 = vpop.f32.mrf.mxu0
        %v717 = vadd.f32 %v661, %v716
        %v718 = vpop.f32.mrf.mxu0
        %719 = vdwg.mxu0
        %v720 = vld [vmem:[%s15] sm:$0xf]
        %v721 = vld [vmem:[%s15 + $0x4] sm:$0xf]
        %v722 = vld [vmem:[%s15 + $0x8] sm:$0xf]
        %v723 = vld [vmem:[%s15 + $0xc] sm:$0xf]
        %v724 = vld [vmem:[%s15 + $0x10] sm:$0xf]
        %v725 = vld [vmem:[%s15 + $0x14] sm:$0xf]
        %v726 = vld [vmem:[%s15 + $0x18] sm:$0xf]
        %v727 = vld [vmem:[%s15 + $0x1c] sm:$0xf]
        %v728 = vld [vmem:[%s15 + $0x20] sm:$0xf]
        %v729 = vld [vmem:[%s15 + $0x24] sm:$0xf]
        %v730 = vld [vmem:[%s15 + $0x28] sm:$0xf]
        %v731 = vld [vmem:[%s15 + $0x2c] sm:$0xf]
        %v732 = vld [vmem:[%s15 + $0x30] sm:$0xf]
        %v733 = vld [vmem:[%s15 + $0x34] sm:$0xf]
        %v734 = vld [vmem:[%s15 + $0x38] sm:$0xf]
        %v735 = vld [vmem:[%s15 + $0x3c] sm:$0xf]
        %v736 = vld [vmem:[%s16] sm:$0xff]
        %v737 = vld [vmem:[%s16 + $0x8] sm:$0xff]
        %v738 = vld [vmem:[%s16 + $0x10] sm:$0xff]
        %v739 = vld [vmem:[%s16 + $0x18] sm:$0xff]
        %v740 = vld [vmem:[%s17] sm:$0xff]
        %v741 = vld [vmem:[%s17 + $0x8] sm:$0xff]
        %v742 = vld [vmem:[%s17 + $0x10] sm:$0xff]
        %v743 = vld [vmem:[%s17 + $0x18] sm:$0xff]
        %v744 = vld [vmem:[%s17 + $0x20] sm:$0xff]
        %v745 = vld [vmem:[%s17 + $0x28] sm:$0xff]
        %v746 = vld [vmem:[%s17 + $0x30] sm:$0xff]
        %v747 = vld [vmem:[%s17 + $0x38] sm:$0xff]
        %v748 = vld [vmem:[%s17 + $0x40] sm:$0xff]
        %v749 = vld [vmem:[%s17 + $0x48] sm:$0xff]
        %v750 = vld [vmem:[%s17 + $0x50] sm:$0xff]
        %v751 = vld [vmem:[%s17 + $0x58] sm:$0xff]
        %v752 = vld [vmem:[%s17 + $0x60] sm:$0xff]
        %v753 = vld [vmem:[%s17 + $0x68] sm:$0xff]
        %v754 = vld [vmem:[%s17 + $0x70] sm:$0xff]
        %v755 = vld [vmem:[%s17 + $0x78] sm:$0xff]
        %v756 = vld [vmem:[%s18] sm:$0xf]
        %v757 = vld [vmem:[%s18 + $0x4] sm:$0xf]
        %v758 = vld [vmem:[%s18 + $0x8] sm:$0xf]
        %v759 = vld [vmem:[%s18 + $0xc] sm:$0xf]
        %v760 = vld [vmem:[%s18 + $0x10] sm:$0xf]
        %v761 = vld [vmem:[%s18 + $0x14] sm:$0xf]
        %v762 = vld [vmem:[%s18 + $0x18] sm:$0xf]
        %v763 = vld [vmem:[%s18 + $0x1c] sm:$0xf]
        %v764 = vld [vmem:[%s18 + $0x20] sm:$0xf]
        %v765 = vld [vmem:[%s18 + $0x24] sm:$0xf]
        %v766 = vld [vmem:[%s18 + $0x28] sm:$0xf]
        %v767 = vld [vmem:[%s18 + $0x2c] sm:$0xf]
        %v768 = vld [vmem:[%s18 + $0x30] sm:$0xf]
        %v769 = vld [vmem:[%s18 + $0x34] sm:$0xf]
        %v770 = vld [vmem:[%s18 + $0x38] sm:$0xf]
        %v771 = vld [vmem:[%s18 + $0x3c] sm:$0xf]
        %v772 = vpack.c.bf16 %v714, %v714
        %774 = vrot.lane.b32.xlu0 %v772, 96
        %v775 = vpop.permute.xlu0 %774
        %777 = vxpose.xlu0.c.b16.start [1/8] %v775, 128
        %778 = vxpose.xlu0.c.b16.cont [2/8] 0, 128
        %779 = vxpose.xlu0.c.b16.cont [3/8] 0, 128
        %780 = vxpose.xlu0.c.b16.cont [4/8] 0, 128
        %781 = vxpose.xlu0.c.b16.cont [5/8] 0, 128
        %782 = vxpose.xlu0.c.b16.cont [6/8] 0, 128
        %783 = vxpose.xlu0.c.b16.cont [7/8] 0, 128
        %784 = vxpose.xlu0.c.b16.end [8/8] 0, 128
        %v785 = vpop.trf.xlu0
        %v786 = vpop.trf.xlu0
        %v787 = vpop.trf.xlu0
        %v788 = vpop.trf.xlu0
        %v789 = vpop.trf.xlu0
        %v790 = vpop.trf.xlu0
        %v791 = vpop.trf.xlu0
        %v792 = vpop.trf.xlu0
        %v809 = vunpack.c.l.b16 %v720
        %v810 = vunpack.c.l.b16 %v721
        %v811 = vunpack.c.l.b16 %v722
        %v812 = vunpack.c.l.b16 %v723
        %v813 = vunpack.c.l.b16 %v724
        %v814 = vunpack.c.l.b16 %v725
        %v815 = vunpack.c.l.b16 %v726
        %v816 = vunpack.c.l.b16 %v727
        %v817 = vunpack.c.l.b16 %v728
        %v818 = vunpack.c.l.b16 %v729
        %v819 = vunpack.c.l.b16 %v730
        %v820 = vunpack.c.l.b16 %v731
        %v821 = vunpack.c.l.b16 %v732
        %v822 = vunpack.c.l.b16 %v733
        %v823 = vunpack.c.l.b16 %v734
        %v824 = vunpack.c.l.b16 %v735
        %v825 = vpack.c.b16 %v810, %v809
        %v826 = vpack.c.b16 %v812, %v811
        %v827 = vpack.c.b16 %v814, %v813
        %v828 = vpack.c.b16 %v816, %v815
        %v829 = vpack.c.b16 %v818, %v817
        %v830 = vpack.c.b16 %v820, %v819
        %v831 = vpack.c.b16 %v822, %v821
        %v832 = vpack.c.b16 %v824, %v823
        %vm833 = vcmask 64512
        %v835 = vsel %vm833, %v785, 0
        %v838 = vsel %vm833, %v786, 0
        %v841 = vsel %vm833, %v825, 0
        %v844 = vsel %vm833, %v826, 0
        %v847 = vsel %vm833, %v827, 0
        %v850 = vsel %vm833, %v828, 0
        %v853 = vsel %vm833, %v829, 0
        %v856 = vsel %vm833, %v830, 0
        %v859 = vsel %vm833, %v831, 0
        %v862 = vsel %vm833, %v832, 0
        %864 = vmatprep.subr.bf16.mxu0 0
        %865 = vmatpush1.bf16.xpose.msra.mxu0 %v862
        %866 = vmatprep.subr.bf16.mxu0 0
        %867 = vmatpush1.bf16.xpose.msra.mxu0 %v859
        %868 = vmatprep.subr.bf16.mxu0 0
        %869 = vmatpush1.bf16.xpose.msra.mxu0 %v856
        %870 = vmatprep.subr.bf16.mxu0 0
        %871 = vmatpush1.bf16.xpose.msra.mxu0 %v853
        %872 = vmatprep.subr.bf16.mxu0 0
        %873 = vmatpush1.bf16.xpose.msra.mxu0 %v850
        %874 = vmatprep.subr.bf16.mxu0 0
        %875 = vmatpush1.bf16.xpose.msra.mxu0 %v847
        %876 = vmatprep.subr.bf16.mxu0 0
        %877 = vmatpush1.bf16.xpose.msra.mxu0 %v844
        %878 = vmatprep.subr.bf16.mxu0 0
        %879 = vmatpush1.bf16.xpose.msra.mxu0 %v841
        %880 = vmatprep.subr.bf16.mxu0 0
        %881 = vmatpush2.bf16.xpose.msra.mxu0 0
        %882 = vmatprep.subr.bf16.mxu0 0
        %883 = vmatpush2.bf16.xpose.msra.mxu0 0
        %884 = vmatprep.subr.bf16.mxu0 0
        %885 = vmatpush2.bf16.xpose.msra.mxu0 0
        %886 = vmatprep.subr.bf16.mxu0 0
        %887 = vmatpush2.bf16.xpose.msra.mxu0 0
        %888 = vmatprep.subr.bf16.mxu0 0
        %889 = vmatpush2.bf16.xpose.msra.mxu0 0
        %890 = vmatprep.subr.bf16.mxu0 0
        %891 = vmatpush2.bf16.xpose.msra.mxu0 0
        %892 = vmatprep.subr.bf16.mxu0 0
        %893 = vmatpush2.bf16.xpose.msra.mxu0 0
        %894 = vmatprep.subr.bf16.mxu0 0
        %895 = vmatpush2.bf16.xpose.msra.mxu0 0
        %896 = vmatprep.mubr.bf16.mxu0 0
        %897 = vmatmul.mubr.bf16.gmra.mxu0 %v835
        %v898 = vpop.f32.mrf.mxu0
        %v899 = vadd.f32 0.0, %v898
        %v900 = vpop.f32.mrf.mxu0
        %v901 = vpop.f32.mrf.mxu0
        %v902 = vadd.f32 0.0, %v901
        %v903 = vpop.f32.mrf.mxu0
        %904 = vmatprep.mubr.bf16.mxu0 0
        %905 = vmatmul.mubr.bf16.gmra.mxu0 %v838
        %v906 = vpop.f32.mrf.mxu0
        %v907 = vadd.f32 0.0, %v906
        %v908 = vpop.f32.mrf.mxu0
        %v909 = vpop.f32.mrf.mxu0
        %v910 = vadd.f32 0.0, %v909
        %v911 = vpop.f32.mrf.mxu0
        %912 = vdwg.mxu0
        %v913 = vmul.f32 %v899, %v736
        %v914 = vmul.f32 %v902, %v737
        %v915 = vmul.f32 %v907, %v738
        %v916 = vmul.f32 %v910, %v739
        %917 = vrot.lane.b32.xlu0 %v772, 64
        %v918 = vpop.permute.xlu0 %917
        %vm919 = vcmask 1043456
        %v921 = vsel %vm919, %v918, 0
        %923 = vmatprep.subr.bf16.mxu0 0
        %924 = vmatpush1.bf16.msra.mxu0 0
        %925 = vmatprep.subr.bf16.mxu0 0
        %926 = vmatpush1.bf16.msra.mxu0 0
        %927 = vmatprep.subr.bf16.mxu0 0
        %928 = vmatpush1.bf16.msra.mxu0 0
        %929 = vmatprep.subr.bf16.mxu0 0
        %930 = vmatpush1.bf16.msra.mxu0 0
        %931 = vmatprep.subr.bf16.mxu0 0
        %932 = vmatpush1.bf16.msra.mxu0 0
        %933 = vmatprep.subr.bf16.mxu0 0
        %934 = vmatpush1.bf16.msra.mxu0 0
        %935 = vmatprep.subr.bf16.mxu0 0
        %936 = vmatpush1.bf16.msra.mxu0 0
        %937 = vmatprep.subr.bf16.mxu0 0
        %938 = vmatpush1.bf16.msra.mxu0 %v921
        %939 = vmatprep.subr.bf16.mxu0 0
        %940 = vmatpush2.bf16.msra.mxu0 0
        %941 = vmatprep.subr.bf16.mxu0 0
        %942 = vmatpush2.bf16.msra.mxu0 0
        %943 = vmatprep.subr.bf16.mxu0 0
        %944 = vmatpush2.bf16.msra.mxu0 0
        %945 = vmatprep.subr.bf16.mxu0 0
        %946 = vmatpush2.bf16.msra.mxu0 0
        %947 = vmatprep.subr.bf16.mxu0 0
        %948 = vmatpush2.bf16.msra.mxu0 0
        %949 = vmatprep.subr.bf16.mxu0 0
        %950 = vmatpush2.bf16.msra.mxu0 0
        %951 = vmatprep.subr.bf16.mxu0 0
        %952 = vmatpush2.bf16.msra.mxu0 0
        %953 = vmatprep.subr.bf16.mxu0 0
        %954 = vmatpush2.bf16.msra.mxu0 0
        %955 = vmatprep.mubr.bf16.mxu0 0
        %956 = vmatmul.mubr.bf16.gmra.mxu0 %v841
        %v957 = vpop.f32.mrf.mxu0
        %v958 = vadd.f32 0.0, %v957
        %v959 = vpop.f32.mrf.mxu0
        %v960 = vpop.f32.mrf.mxu0
        %v961 = vadd.f32 0.0, %v960
        %v962 = vpop.f32.mrf.mxu0
        %963 = vmatprep.mubr.bf16.mxu0 0
        %964 = vmatmul.mubr.bf16.gmra.mxu0 %v844
        %v965 = vpop.f32.mrf.mxu0
        %v966 = vadd.f32 0.0, %v965
        %v967 = vpop.f32.mrf.mxu0
        %v968 = vpop.f32.mrf.mxu0
        %v969 = vadd.f32 0.0, %v968
        %v970 = vpop.f32.mrf.mxu0
        %971 = vmatprep.mubr.bf16.mxu0 0
        %972 = vmatmul.mubr.bf16.gmra.mxu0 %v847
        %v973 = vpop.f32.mrf.mxu0
        %v974 = vadd.f32 0.0, %v973
        %v975 = vpop.f32.mrf.mxu0
        %v976 = vpop.f32.mrf.mxu0
        %v977 = vadd.f32 0.0, %v976
        %v978 = vpop.f32.mrf.mxu0
        %979 = vmatprep.mubr.bf16.mxu0 0
        %980 = vmatmul.mubr.bf16.gmra.mxu0 %v850
        %v981 = vpop.f32.mrf.mxu0
        %v982 = vadd.f32 0.0, %v981
        %v983 = vpop.f32.mrf.mxu0
        %v984 = vpop.f32.mrf.mxu0
        %v985 = vadd.f32 0.0, %v984
        %v986 = vpop.f32.mrf.mxu0
        %987 = vmatprep.mubr.bf16.mxu0 0
        %988 = vmatmul.mubr.bf16.gmra.mxu0 %v853
        %v989 = vpop.f32.mrf.mxu0
        %v990 = vadd.f32 0.0, %v989
        %v991 = vpop.f32.mrf.mxu0
        %v992 = vpop.f32.mrf.mxu0
        %v993 = vadd.f32 0.0, %v992
        %v994 = vpop.f32.mrf.mxu0
        %995 = vmatprep.mubr.bf16.mxu0 0
        %996 = vmatmul.mubr.bf16.gmra.mxu0 %v856
        %v997 = vpop.f32.mrf.mxu0
        %v998 = vadd.f32 0.0, %v997
        %v999 = vpop.f32.mrf.mxu0
        %v1000 = vpop.f32.mrf.mxu0
        %v1001 = vadd.f32 0.0, %v1000
        %v1002 = vpop.f32.mrf.mxu0
        %1003 = vmatprep.mubr.bf16.mxu0 0
        %1004 = vmatmul.mubr.bf16.gmra.mxu0 %v859
        %v1005 = vpop.f32.mrf.mxu0
        %v1006 = vadd.f32 0.0, %v1005
        %v1007 = vpop.f32.mrf.mxu0
        %v1008 = vpop.f32.mrf.mxu0
        %v1009 = vadd.f32 0.0, %v1008
        %v1010 = vpop.f32.mrf.mxu0
        %1011 = vmatprep.mubr.bf16.mxu0 0
        %1012 = vmatmul.mubr.bf16.gmra.mxu0 %v862
        %v1013 = vpop.f32.mrf.mxu0
        %v1014 = vadd.f32 0.0, %v1013
        %v1015 = vpop.f32.mrf.mxu0
        %v1016 = vpop.f32.mrf.mxu0
        %v1017 = vadd.f32 0.0, %v1016
        %v1018 = vpop.f32.mrf.mxu0
        %1019 = vdwg.mxu0
        %v1020 = vmul.f32 %v958, %v740
        %v1021 = vmul.f32 %v961, %v741
        %v1022 = vmul.f32 %v966, %v742
        %v1023 = vmul.f32 %v969, %v743
        %v1024 = vmul.f32 %v974, %v744
        %v1025 = vmul.f32 %v977, %v745
        %v1026 = vmul.f32 %v982, %v746
        %v1027 = vmul.f32 %v985, %v747
        %v1028 = vmul.f32 %v990, %v748
        %v1029 = vmul.f32 %v993, %v749
        %v1030 = vmul.f32 %v998, %v750
        %v1031 = vmul.f32 %v1001, %v751
        %v1032 = vmul.f32 %v1006, %v752
        %v1033 = vmul.f32 %v1009, %v753
        %v1034 = vmul.f32 %v1014, %v754
        %v1035 = vmul.f32 %v1017, %v755
        %v1036 = vpack.c.bf16 %v914, %v913
        %v1037 = vpack.c.bf16 %v916, %v915
        %v1039 = vsel %vm675, %v772, 0
        %1041 = vmatprep.subr.bf16.mxu0 0
        %1042 = vmatpush1.bf16.msra.mxu0 0
        %1043 = vmatprep.subr.bf16.mxu0 0
        %1044 = vmatpush1.bf16.msra.mxu0 0
        %1045 = vmatprep.subr.bf16.mxu0 0
        %1046 = vmatpush1.bf16.msra.mxu0 0
        %1047 = vmatprep.subr.bf16.mxu0 0
        %1048 = vmatpush1.bf16.msra.mxu0 0
        %1049 = vmatprep.subr.bf16.mxu0 0
        %1050 = vmatpush1.bf16.msra.mxu0 0
        %1051 = vmatprep.subr.bf16.mxu0 0
        %1052 = vmatpush1.bf16.msra.mxu0 0
        %1053 = vmatprep.subr.bf16.mxu0 0
        %1054 = vmatpush1.bf16.msra.mxu0 %v1037
        %1055 = vmatprep.subr.bf16.mxu0 0
        %1056 = vmatpush1.bf16.msra.mxu0 %v1036
        %1057 = vmatprep.subr.bf16.mxu0 0
        %1058 = vmatpush2.bf16.msra.mxu0 0
        %1059 = vmatprep.subr.bf16.mxu0 0
        %1060 = vmatpush2.bf16.msra.mxu0 0
        %1061 = vmatprep.subr.bf16.mxu0 0
        %1062 = vmatpush2.bf16.msra.mxu0 0
        %1063 = vmatprep.subr.bf16.mxu0 0
        %1064 = vmatpush2.bf16.msra.mxu0 0
        %1065 = vmatprep.subr.bf16.mxu0 0
        %1066 = vmatpush2.bf16.msra.mxu0 0
        %1067 = vmatprep.subr.bf16.mxu0 0
        %1068 = vmatpush2.bf16.msra.mxu0 0
        %1069 = vmatprep.subr.bf16.mxu0 0
        %1070 = vmatpush2.bf16.msra.mxu0 0
        %1071 = vmatprep.subr.bf16.mxu0 0
        %1072 = vmatpush2.bf16.msra.mxu0 0
        %1073 = vmatprep.mubr.bf16.mxu0 0
        %1074 = vmatmul.mubr.bf16.gmra.mxu0 %v1039
        %v1075 = vpop.f32.mrf.mxu0
        %v1076 = vadd.f32 0.0, %v1075
        %v1077 = vpop.f32.mrf.mxu0
        %v1078 = vpop.f32.mrf.mxu0
        %v1079 = vpop.f32.mrf.mxu0
        %1080 = vdwg.mxu0
        %v1081 = vmul.f32 %v1076, 0.70710677
        %1082 = vmax.xlane.f32.xlu0 %v1081
        %v1083 = vpop.xlane.xlu0 %1082
        %v1084 = vsub.f32 %v1081, %v1083
        %v1085 = vmul.f32 %v1084, 1.442695
        %v1086 = vpow.pop %v1085
        %v1087 = vpack.c.bf16 %v1086, %v1086
        %v1104 = vunpack.c.l.b16 %v756
        %v1105 = vunpack.c.l.b16 %v757
        %v1106 = vunpack.c.l.b16 %v758
        %v1107 = vunpack.c.l.b16 %v759
        %v1108 = vunpack.c.l.b16 %v760
        %v1109 = vunpack.c.l.b16 %v761
        %v1110 = vunpack.c.l.b16 %v762
        %v1111 = vunpack.c.l.b16 %v763
        %v1112 = vunpack.c.l.b16 %v764
        %v1113 = vunpack.c.l.b16 %v765
        %v1114 = vunpack.c.l.b16 %v766
        %v1115 = vunpack.c.l.b16 %v767
        %v1116 = vunpack.c.l.b16 %v768
        %v1117 = vunpack.c.l.b16 %v769
        %v1118 = vunpack.c.l.b16 %v770
        %v1119 = vunpack.c.l.b16 %v771
        %v1120 = vpack.c.b16 %v1105, %v1104
        %v1121 = vpack.c.b16 %v1107, %v1106
        %v1122 = vpack.c.b16 %v1109, %v1108
        %v1123 = vpack.c.b16 %v1111, %v1110
        %v1124 = vpack.c.b16 %v1113, %v1112
        %v1125 = vpack.c.b16 %v1115, %v1114
        %v1126 = vpack.c.b16 %v1117, %v1116
        %v1127 = vpack.c.b16 %v1119, %v1118
        %1136 = vmatprep.subr.bf16.mxu0 0
        %1137 = vmatpush1.bf16.msra.mxu0 %v1127
        %1138 = vmatprep.subr.bf16.mxu0 0
        %1139 = vmatpush1.bf16.msra.mxu0 %v1126
        %1140 = vmatprep.subr.bf16.mxu0 0
        %1141 = vmatpush1.bf16.msra.mxu0 %v1125
        %1142 = vmatprep.subr.bf16.mxu0 0
        %1143 = vmatpush1.bf16.msra.mxu0 %v1124
        %1144 = vmatprep.subr.bf16.mxu0 0
        %1145 = vmatpush1.bf16.msra.mxu0 %v1123
        %1146 = vmatprep.subr.bf16.mxu0 0
        %1147 = vmatpush1.bf16.msra.mxu0 %v1122
        %1148 = vmatprep.subr.bf16.mxu0 0
        %1149 = vmatpush1.bf16.msra.mxu0 %v1121
        %1150 = vmatprep.subr.bf16.mxu0 0
        %1151 = vmatpush1.bf16.msra.mxu0 %v1120
        %1152 = vmatprep.subr.bf16.mxu0 0
        %1153 = vmatpush2.bf16.msra.mxu0 0
        %1154 = vmatprep.subr.bf16.mxu0 0
        %1155 = vmatpush2.bf16.msra.mxu0 0
        %1156 = vmatprep.subr.bf16.mxu0 0
        %1157 = vmatpush2.bf16.msra.mxu0 0
        %1158 = vmatprep.subr.bf16.mxu0 0
        %1159 = vmatpush2.bf16.msra.mxu0 0
        %1160 = vmatprep.subr.bf16.mxu0 0
        %1161 = vmatpush2.bf16.msra.mxu0 0
        %1162 = vmatprep.subr.bf16.mxu0 0
        %1163 = vmatpush2.bf16.msra.mxu0 0
        %1164 = vmatprep.subr.bf16.mxu0 0
        %1165 = vmatpush2.bf16.msra.mxu0 0
        %1166 = vmatprep.subr.bf16.mxu0 0
        %1167 = vmatpush2.bf16.msra.mxu0 0
        %1168 = vmatprep.mubr.bf16.mxu0 0
        %1169 = vmatmul.mubr.bf16.gmra.mxu0 %v1087
        %v1170 = vpop.f32.mrf.mxu0
        %v1171 = vadd.f32 0.0, %v1170
        %v1172 = vpop.f32.mrf.mxu0
        %v1173 = vpop.f32.mrf.mxu0
        %v1174 = vpop.f32.mrf.mxu0
        %1175 = vdwg.mxu0
        %v1176 = vrcp.pop %v1171
        %v1177 = vmul.f32 %v1086, %v1176
        %v1178 = vpack.c.bf16 %v1177, %v1177
        %v1179 = vpack.c.bf16 %v1021, %v1020
        %v1180 = vpack.c.bf16 %v1023, %v1022
        %v1181 = vpack.c.bf16 %v1025, %v1024
        %v1182 = vpack.c.bf16 %v1027, %v1026
        %v1183 = vpack.c.bf16 %v1029, %v1028
        %v1184 = vpack.c.bf16 %v1031, %v1030
        %v1185 = vpack.c.bf16 %v1033, %v1032
        %v1186 = vpack.c.bf16 %v1035, %v1034
        %1187 = vmatprep.subr.bf16.mxu0 0
        %1188 = vmatpush1.bf16.msra.mxu0 %v1186
        %1189 = vmatprep.subr.bf16.mxu0 0
        %1190 = vmatpush1.bf16.msra.mxu0 %v1185
        %1191 = vmatprep.subr.bf16.mxu0 0
        %1192 = vmatpush1.bf16.msra.mxu0 %v1184
        %1193 = vmatprep.subr.bf16.mxu0 0
        %1194 = vmatpush1.bf16.msra.mxu0 %v1183
        %1195 = vmatprep.subr.bf16.mxu0 0
        %1196 = vmatpush1.bf16.msra.mxu0 %v1182
        %1197 = vmatprep.subr.bf16.mxu0 0
        %1198 = vmatpush1.bf16.msra.mxu0 %v1181
        %1199 = vmatprep.subr.bf16.mxu0 0
        %1200 = vmatpush1.bf16.msra.mxu0 %v1180
        %1201 = vmatprep.subr.bf16.mxu0 0
        %1202 = vmatpush1.bf16.msra.mxu0 %v1179
        %1203 = vmatprep.subr.bf16.mxu0 0
        %1204 = vmatpush2.bf16.msra.mxu0 0
        %1205 = vmatprep.subr.bf16.mxu0 0
        %1206 = vmatpush2.bf16.msra.mxu0 0
        %1207 = vmatprep.subr.bf16.mxu0 0
        %1208 = vmatpush2.bf16.msra.mxu0 0
        %1209 = vmatprep.subr.bf16.mxu0 0
        %1210 = vmatpush2.bf16.msra.mxu0 0
        %1211 = vmatprep.subr.bf16.mxu0 0
        %1212 = vmatpush2.bf16.msra.mxu0 0
        %1213 = vmatprep.subr.bf16.mxu0 0
        %1214 = vmatpush2.bf16.msra.mxu0 0
        %1215 = vmatprep.subr.bf16.mxu0 0
        %1216 = vmatpush2.bf16.msra.mxu0 0
        %1217 = vmatprep.subr.bf16.mxu0 0
        %1218 = vmatpush2.bf16.msra.mxu0 0
        %1219 = vmatprep.mubr.bf16.mxu0 0
        %1220 = vmatmul.mubr.bf16.gmra.mxu0 %v1178
        %v1221 = vpop.f32.mrf.mxu0
        %v1222 = vadd.f32 0.0, %v1221
        %v1223 = vpop.f32.mrf.mxu0
        %v1224 = vpop.f32.mrf.mxu0
        %v1225 = vpop.f32.mrf.mxu0
        %1226 = vdwg.mxu0
        %1227 = vst.msk [vmem:[#allocation3] sm:$0xff] %vm675, %v1222
        %v1228 = vpack.c.bf16 %v717, %v717
        %1230 = vrot.lane.b32.xlu0 %v1228, 96
        %v1231 = vpop.permute.xlu0 %1230
        %1233 = vxpose.xlu0.c.b16.start [1/8] %v1231, 128
        %1234 = vxpose.xlu0.c.b16.cont [2/8] 0, 128
        %1235 = vxpose.xlu0.c.b16.cont [3/8] 0, 128
        %1236 = vxpose.xlu0.c.b16.cont [4/8] 0, 128
        %1237 = vxpose.xlu0.c.b16.cont [5/8] 0, 128
        %1238 = vxpose.xlu0.c.b16.cont [6/8] 0, 128
        %1239 = vxpose.xlu0.c.b16.cont [7/8] 0, 128
        %1240 = vxpose.xlu0.c.b16.end [8/8] 0, 128
        %v1241 = vpop.trf.xlu0
        %v1242 = vpop.trf.xlu0
        %v1243 = vpop.trf.xlu0
        %v1244 = vpop.trf.xlu0
        %v1245 = vpop.trf.xlu0
        %v1246 = vpop.trf.xlu0
        %v1247 = vpop.trf.xlu0
        %v1248 = vpop.trf.xlu0
        %v1250 = vsel %vm833, %v1241, 0
        %v1253 = vsel %vm833, %v1242, 0
        %1255 = vmatprep.subr.bf16.mxu0 0
        %1256 = vmatpush1.bf16.xpose.msra.mxu0 %v862
        %1257 = vmatprep.subr.bf16.mxu0 0
        %1258 = vmatpush1.bf16.xpose.msra.mxu0 %v859
        %1259 = vmatprep.subr.bf16.mxu0 0
        %1260 = vmatpush1.bf16.xpose.msra.mxu0 %v856
        %1261 = vmatprep.subr.bf16.mxu0 0
        %1262 = vmatpush1.bf16.xpose.msra.mxu0 %v853
        %1263 = vmatprep.subr.bf16.mxu0 0
        %1264 = vmatpush1.bf16.xpose.msra.mxu0 %v850
        %1265 = vmatprep.subr.bf16.mxu0 0
        %1266 = vmatpush1.bf16.xpose.msra.mxu0 %v847
        %1267 = vmatprep.subr.bf16.mxu0 0
        %1268 = vmatpush1.bf16.xpose.msra.mxu0 %v844
        %1269 = vmatprep.subr.bf16.mxu0 0
        %1270 = vmatpush1.bf16.xpose.msra.mxu0 %v841
        %1271 = vmatprep.subr.bf16.mxu0 0
        %1272 = vmatpush2.bf16.xpose.msra.mxu0 0
        %1273 = vmatprep.subr.bf16.mxu0 0
        %1274 = vmatpush2.bf16.xpose.msra.mxu0 0
        %1275 = vmatprep.subr.bf16.mxu0 0
        %1276 = vmatpush2.bf16.xpose.msra.mxu0 0
        %1277 = vmatprep.subr.bf16.mxu0 0
        %1278 = vmatpush2.bf16.xpose.msra.mxu0 0
        %1279 = vmatprep.subr.bf16.mxu0 0
        %1280 = vmatpush2.bf16.xpose.msra.mxu0 0
        %1281 = vmatprep.subr.bf16.mxu0 0
        %1282 = vmatpush2.bf16.xpose.msra.mxu0 0
        %1283 = vmatprep.subr.bf16.mxu0 0
        %1284 = vmatpush2.bf16.xpose.msra.mxu0 0
        %1285 = vmatprep.subr.bf16.mxu0 0
        %1286 = vmatpush2.bf16.xpose.msra.mxu0 0
        %1287 = vmatprep.mubr.bf16.mxu0 0
        %1288 = vmatmul.mubr.bf16.gmra.mxu0 %v1250
        %v1289 = vpop.f32.mrf.mxu0
        %v1290 = vadd.f32 0.0, %v1289
        %v1291 = vpop.f32.mrf.mxu0
        %v1292 = vpop.f32.mrf.mxu0
        %v1293 = vadd.f32 0.0, %v1292
        %v1294 = vpop.f32.mrf.mxu0
        %1295 = vmatprep.mubr.bf16.mxu0 0
        %1296 = vmatmul.mubr.bf16.gmra.mxu0 %v1253
        %v1297 = vpop.f32.mrf.mxu0
        %v1298 = vadd.f32 0.0, %v1297
        %v1299 = vpop.f32.mrf.mxu0
        %v1300 = vpop.f32.mrf.mxu0
        %v1301 = vadd.f32 0.0, %v1300
        %v1302 = vpop.f32.mrf.mxu0
        %1303 = vdwg.mxu0
        %v1304 = vmul.f32 %v1290, %v736
        %v1305 = vmul.f32 %v1293, %v737
        %v1306 = vmul.f32 %v1298, %v738
        %v1307 = vmul.f32 %v1301, %v739
        %1308 = vrot.lane.b32.xlu0 %v1228, 64
        %v1309 = vpop.permute.xlu0 %1308
        %v1311 = vsel %vm919, %v1309, 0
        %1313 = vmatprep.subr.bf16.mxu0 0
        %1314 = vmatpush1.bf16.msra.mxu0 0
        %1315 = vmatprep.subr.bf16.mxu0 0
        %1316 = vmatpush1.bf16.msra.mxu0 0
        %1317 = vmatprep.subr.bf16.mxu0 0
        %1318 = vmatpush1.bf16.msra.mxu0 0
        %1319 = vmatprep.subr.bf16.mxu0 0
        %1320 = vmatpush1.bf16.msra.mxu0 0
        %1321 = vmatprep.subr.bf16.mxu0 0
        %1322 = vmatpush1.bf16.msra.mxu0 0
        %1323 = vmatprep.subr.bf16.mxu0 0
        %1324 = vmatpush1.bf16.msra.mxu0 0
        %1325 = vmatprep.subr.bf16.mxu0 0
        %1326 = vmatpush1.bf16.msra.mxu0 0
        %1327 = vmatprep.subr.bf16.mxu0 0
        %1328 = vmatpush1.bf16.msra.mxu0 %v1311
        %1329 = vmatprep.subr.bf16.mxu0 0
        %1330 = vmatpush2.bf16.msra.mxu0 0
        %1331 = vmatprep.subr.bf16.mxu0 0
        %1332 = vmatpush2.bf16.msra.mxu0 0
        %1333 = vmatprep.subr.bf16.mxu0 0
        %1334 = vmatpush2.bf16.msra.mxu0 0
        %1335 = vmatprep.subr.bf16.mxu0 0
        %1336 = vmatpush2.bf16.msra.mxu0 0
        %1337 = vmatprep.subr.bf16.mxu0 0
        %1338 = vmatpush2.bf16.msra.mxu0 0
        %1339 = vmatprep.subr.bf16.mxu0 0
        %1340 = vmatpush2.bf16.msra.mxu0 0
        %1341 = vmatprep.subr.bf16.mxu0 0
        %1342 = vmatpush2.bf16.msra.mxu0 0
        %1343 = vmatprep.subr.bf16.mxu0 0
        %1344 = vmatpush2.bf16.msra.mxu0 0
        %1345 = vmatprep.mubr.bf16.mxu0 0
        %1346 = vmatmul.mubr.bf16.gmra.mxu0 %v841
        %v1347 = vpop.f32.mrf.mxu0
        %v1348 = vadd.f32 0.0, %v1347
        %v1349 = vpop.f32.mrf.mxu0
        %v1350 = vpop.f32.mrf.mxu0
        %v1351 = vadd.f32 0.0, %v1350
        %v1352 = vpop.f32.mrf.mxu0
        %1353 = vmatprep.mubr.bf16.mxu0 0
        %1354 = vmatmul.mubr.bf16.gmra.mxu0 %v844
        %v1355 = vpop.f32.mrf.mxu0
        %v1356 = vadd.f32 0.0, %v1355
        %v1357 = vpop.f32.mrf.mxu0
        %v1358 = vpop.f32.mrf.mxu0
        %v1359 = vadd.f32 0.0, %v1358
        %v1360 = vpop.f32.mrf.mxu0
        %1361 = vmatprep.mubr.bf16.mxu0 0
        %1362 = vmatmul.mubr.bf16.gmra.mxu0 %v847
        %v1363 = vpop.f32.mrf.mxu0
        %v1364 = vadd.f32 0.0, %v1363
        %v1365 = vpop.f32.mrf.mxu0
        %v1366 = vpop.f32.mrf.mxu0
        %v1367 = vadd.f32 0.0, %v1366
        %v1368 = vpop.f32.mrf.mxu0
        %1369 = vmatprep.mubr.bf16.mxu0 0
        %1370 = vmatmul.mubr.bf16.gmra.mxu0 %v850
        %v1371 = vpop.f32.mrf.mxu0
        %v1372 = vadd.f32 0.0, %v1371
        %v1373 = vpop.f32.mrf.mxu0
        %v1374 = vpop.f32.mrf.mxu0
        %v1375 = vadd.f32 0.0, %v1374
        %v1376 = vpop.f32.mrf.mxu0
        %1377 = vmatprep.mubr.bf16.mxu0 0
        %1378 = vmatmul.mubr.bf16.gmra.mxu0 %v853
        %v1379 = vpop.f32.mrf.mxu0
        %v1380 = vadd.f32 0.0, %v1379
        %v1381 = vpop.f32.mrf.mxu0
        %v1382 = vpop.f32.mrf.mxu0
        %v1383 = vadd.f32 0.0, %v1382
        %v1384 = vpop.f32.mrf.mxu0
        %1385 = vmatprep.mubr.bf16.mxu0 0
        %1386 = vmatmul.mubr.bf16.gmra.mxu0 %v856
        %v1387 = vpop.f32.mrf.mxu0
        %v1388 = vadd.f32 0.0, %v1387
        %v1389 = vpop.f32.mrf.mxu0
        %v1390 = vpop.f32.mrf.mxu0
        %v1391 = vadd.f32 0.0, %v1390
        %v1392 = vpop.f32.mrf.mxu0
        %1393 = vmatprep.mubr.bf16.mxu0 0
        %1394 = vmatmul.mubr.bf16.gmra.mxu0 %v859
        %v1395 = vpop.f32.mrf.mxu0
        %v1396 = vadd.f32 0.0, %v1395
        %v1397 = vpop.f32.mrf.mxu0
        %v1398 = vpop.f32.mrf.mxu0
        %v1399 = vadd.f32 0.0, %v1398
        %v1400 = vpop.f32.mrf.mxu0
        %1401 = vmatprep.mubr.bf16.mxu0 0
        %1402 = vmatmul.mubr.bf16.gmra.mxu0 %v862
        %v1403 = vpop.f32.mrf.mxu0
        %v1404 = vadd.f32 0.0, %v1403
        %v1405 = vpop.f32.mrf.mxu0
        %v1406 = vpop.f32.mrf.mxu0
        %v1407 = vadd.f32 0.0, %v1406
        %v1408 = vpop.f32.mrf.mxu0
        %1409 = vdwg.mxu0
        %v1410 = vmul.f32 %v1348, %v740
        %v1411 = vmul.f32 %v1351, %v741
        %v1412 = vmul.f32 %v1356, %v742
        %v1413 = vmul.f32 %v1359, %v743
        %v1414 = vmul.f32 %v1364, %v744
        %v1415 = vmul.f32 %v1367, %v745
        %v1416 = vmul.f32 %v1372, %v746
        %v1417 = vmul.f32 %v1375, %v747
        %v1418 = vmul.f32 %v1380, %v748
        %v1419 = vmul.f32 %v1383, %v749
        %v1420 = vmul.f32 %v1388, %v750
        %v1421 = vmul.f32 %v1391, %v751
        %v1422 = vmul.f32 %v1396, %v752
        %v1423 = vmul.f32 %v1399, %v753
        %v1424 = vmul.f32 %v1404, %v754
        %v1425 = vmul.f32 %v1407, %v755
        %v1426 = vpack.c.bf16 %v1305, %v1304
        %v1427 = vpack.c.bf16 %v1307, %v1306
        %v1429 = vsel %vm675, %v1228, 0
        %1431 = vmatprep.subr.bf16.mxu0 0
        %1432 = vmatpush1.bf16.msra.mxu0 0
        %1433 = vmatprep.subr.bf16.mxu0 0
        %1434 = vmatpush1.bf16.msra.mxu0 0
        %1435 = vmatprep.subr.bf16.mxu0 0
        %1436 = vmatpush1.bf16.msra.mxu0 0
        %1437 = vmatprep.subr.bf16.mxu0 0
        %1438 = vmatpush1.bf16.msra.mxu0 0
        %1439 = vmatprep.subr.bf16.mxu0 0
        %1440 = vmatpush1.bf16.msra.mxu0 0
        %1441 = vmatprep.subr.bf16.mxu0 0
        %1442 = vmatpush1.bf16.msra.mxu0 0
        %1443 = vmatprep.subr.bf16.mxu0 0
        %1444 = vmatpush1.bf16.msra.mxu0 %v1427
        %1445 = vmatprep.subr.bf16.mxu0 0
        %1446 = vmatpush1.bf16.msra.mxu0 %v1426
        %1447 = vmatprep.subr.bf16.mxu0 0
        %1448 = vmatpush2.bf16.msra.mxu0 0
        %1449 = vmatprep.subr.bf16.mxu0 0
        %1450 = vmatpush2.bf16.msra.mxu0 0
        %1451 = vmatprep.subr.bf16.mxu0 0
        %1452 = vmatpush2.bf16.msra.mxu0 0
        %1453 = vmatprep.subr.bf16.mxu0 0
        %1454 = vmatpush2.bf16.msra.mxu0 0
        %1455 = vmatprep.subr.bf16.mxu0 0
        %1456 = vmatpush2.bf16.msra.mxu0 0
        %1457 = vmatprep.subr.bf16.mxu0 0
        %1458 = vmatpush2.bf16.msra.mxu0 0
        %1459 = vmatprep.subr.bf16.mxu0 0
        %1460 = vmatpush2.bf16.msra.mxu0 0
        %1461 = vmatprep.subr.bf16.mxu0 0
        %1462 = vmatpush2.bf16.msra.mxu0 0
        %1463 = vmatprep.mubr.bf16.mxu0 0
        %1464 = vmatmul.mubr.bf16.gmra.mxu0 %v1429
        %v1465 = vpop.f32.mrf.mxu0
        %v1466 = vadd.f32 0.0, %v1465
        %v1467 = vpop.f32.mrf.mxu0
        %v1468 = vpop.f32.mrf.mxu0
        %v1469 = vpop.f32.mrf.mxu0
        %1470 = vdwg.mxu0
        %v1471 = vmul.f32 %v1466, 0.70710677
        %1472 = vmax.xlane.f32.xlu0 %v1471
        %v1473 = vpop.xlane.xlu0 %1472
        %v1474 = vsub.f32 %v1471, %v1473
        %v1475 = vmul.f32 %v1474, 1.442695
        %v1476 = vpow.pop %v1475
        %v1477 = vpack.c.bf16 %v1476, %v1476
        %1478 = vmatprep.subr.bf16.mxu0 0
        %1479 = vmatpush1.bf16.msra.mxu0 %v1127
        %1480 = vmatprep.subr.bf16.mxu0 0
        %1481 = vmatpush1.bf16.msra.mxu0 %v1126
        %1482 = vmatprep.subr.bf16.mxu0 0
        %1483 = vmatpush1.bf16.msra.mxu0 %v1125
        %1484 = vmatprep.subr.bf16.mxu0 0
        %1485 = vmatpush1.bf16.msra.mxu0 %v1124
        %1486 = vmatprep.subr.bf16.mxu0 0
        %1487 = vmatpush1.bf16.msra.mxu0 %v1123
        %1488 = vmatprep.subr.bf16.mxu0 0
        %1489 = vmatpush1.bf16.msra.mxu0 %v1122
        %1490 = vmatprep.subr.bf16.mxu0 0
        %1491 = vmatpush1.bf16.msra.mxu0 %v1121
        %1492 = vmatprep.subr.bf16.mxu0 0
        %1493 = vmatpush1.bf16.msra.mxu0 %v1120
        %1494 = vmatprep.subr.bf16.mxu0 0
        %1495 = vmatpush2.bf16.msra.mxu0 0
        %1496 = vmatprep.subr.bf16.mxu0 0
        %1497 = vmatpush2.bf16.msra.mxu0 0
        %1498 = vmatprep.subr.bf16.mxu0 0
        %1499 = vmatpush2.bf16.msra.mxu0 0
        %1500 = vmatprep.subr.bf16.mxu0 0
        %1501 = vmatpush2.bf16.msra.mxu0 0
        %1502 = vmatprep.subr.bf16.mxu0 0
        %1503 = vmatpush2.bf16.msra.mxu0 0
        %1504 = vmatprep.subr.bf16.mxu0 0
        %1505 = vmatpush2.bf16.msra.mxu0 0
        %1506 = vmatprep.subr.bf16.mxu0 0
        %1507 = vmatpush2.bf16.msra.mxu0 0
        %1508 = vmatprep.subr.bf16.mxu0 0
        %1509 = vmatpush2.bf16.msra.mxu0 0
        %1510 = vmatprep.mubr.bf16.mxu0 0
        %1511 = vmatmul.mubr.bf16.gmra.mxu0 %v1477
        %v1512 = vpop.f32.mrf.mxu0
        %v1513 = vadd.f32 0.0, %v1512
        %v1514 = vpop.f32.mrf.mxu0
        %v1515 = vpop.f32.mrf.mxu0
        %v1516 = vpop.f32.mrf.mxu0
        %1517 = vdwg.mxu0
        %v1518 = vrcp.pop %v1513
        %v1519 = vmul.f32 %v1476, %v1518
        %v1520 = vpack.c.bf16 %v1519, %v1519
        %v1521 = vpack.c.bf16 %v1411, %v1410
        %v1522 = vpack.c.bf16 %v1413, %v1412
        %v1523 = vpack.c.bf16 %v1415, %v1414
        %v1524 = vpack.c.bf16 %v1417, %v1416
        %v1525 = vpack.c.bf16 %v1419, %v1418
        %v1526 = vpack.c.bf16 %v1421, %v1420
        %v1527 = vpack.c.bf16 %v1423, %v1422
        %v1528 = vpack.c.bf16 %v1425, %v1424
        %1529 = vmatprep.subr.bf16.mxu0 0
        %1530 = vmatpush1.bf16.msra.mxu0 %v1528
        %1531 = vmatprep.subr.bf16.mxu0 0
        %1532 = vmatpush1.bf16.msra.mxu0 %v1527
        %1533 = vmatprep.subr.bf16.mxu0 0
        %1534 = vmatpush1.bf16.msra.mxu0 %v1526
        %1535 = vmatprep.subr.bf16.mxu0 0
        %1536 = vmatpush1.bf16.msra.mxu0 %v1525
        %1537 = vmatprep.subr.bf16.mxu0 0
        %1538 = vmatpush1.bf16.msra.mxu0 %v1524
        %1539 = vmatprep.subr.bf16.mxu0 0
        %1540 = vmatpush1.bf16.msra.mxu0 %v1523
        %1541 = vmatprep.subr.bf16.mxu0 0
        %1542 = vmatpush1.bf16.msra.mxu0 %v1522
        %1543 = vmatprep.subr.bf16.mxu0 0
        %1544 = vmatpush1.bf16.msra.mxu0 %v1521
        %1545 = vmatprep.subr.bf16.mxu0 0
        %1546 = vmatpush2.bf16.msra.mxu0 0
        %1547 = vmatprep.subr.bf16.mxu0 0
        %1548 = vmatpush2.bf16.msra.mxu0 0
        %1549 = vmatprep.subr.bf16.mxu0 0
        %1550 = vmatpush2.bf16.msra.mxu0 0
        %1551 = vmatprep.subr.bf16.mxu0 0
        %1552 = vmatpush2.bf16.msra.mxu0 0
        %1553 = vmatprep.subr.bf16.mxu0 0
        %1554 = vmatpush2.bf16.msra.mxu0 0
        %1555 = vmatprep.subr.bf16.mxu0 0
        %1556 = vmatpush2.bf16.msra.mxu0 0
        %1557 = vmatprep.subr.bf16.mxu0 0
        %1558 = vmatpush2.bf16.msra.mxu0 0
        %1559 = vmatprep.subr.bf16.mxu0 0
        %1560 = vmatpush2.bf16.msra.mxu0 0
        %1561 = vmatprep.mubr.bf16.mxu0 0
        %1562 = vmatmul.mubr.bf16.gmra.mxu0 %v1520
        %v1563 = vpop.f32.mrf.mxu0
        %v1564 = vadd.f32 0.0, %v1563
        %v1565 = vpop.f32.mrf.mxu0
        %v1566 = vpop.f32.mrf.mxu0
        %v1567 = vpop.f32.mrf.mxu0
        %1568 = vdwg.mxu0
        %1569 = vst.msk [vmem:[#allocation3 + $0x8] sm:$0xff] %vm675, %v1564
        %v1570 = vld [vmem:[#allocation3] sm:$0xff]
        %v1571 = vld [vmem:[#allocation3 + $0x8] sm:$0xff]
        %s1572 = smul.addr %s647, 4
        %s1573 = scalar_lea.vmem %s3, %s1572
        %v1574 = vld [vmem:[%s1573] sm:$0xf]
        %v1575 = vld [vmem:[%s1573 + $0x4] sm:$0xf]
        %v1576 = vld [vmem:[%s1573 + $0x8] sm:$0xf]
        %v1577 = vld [vmem:[%s1573 + $0xc] sm:$0xf]
        %v1578 = vpack.c.bf16 %v1571, %v1570
        %s1579 = scalar_lea.vmem %s4, %s37
        %v1580 = vld [vmem:[%s1579] sm:$0x1]
        %v1582 = vlaneseq
        %v1583 = vshrl.u32 %v1582, 7
        %v1584 = vsub.s32 0, %v1583
        %v1585 = vrot.slane %v1580, %v1584
        %v1591 = vunpack.c.l.b16 %v1574
        %v1592 = vunpack.c.l.b16 %v1575
        %v1593 = vunpack.c.l.b16 %v1576
        %v1594 = vunpack.c.l.b16 %v1577
        %v1595 = vpack.c.b16 %v1592, %v1591
        %v1596 = vpack.c.b16 %v1594, %v1593
        %v1600 = vsel %vm675, %v1578, 0
        %1602 = vmatprep.subr.bf16.mxu0 0
        %1603 = vmatpush1.bf16.msra.mxu0 0
        %1604 = vmatprep.subr.bf16.mxu0 0
        %1605 = vmatpush1.bf16.msra.mxu0 0
        %1606 = vmatprep.subr.bf16.mxu0 0
        %1607 = vmatpush1.bf16.msra.mxu0 0
        %1608 = vmatprep.subr.bf16.mxu0 0
        %1609 = vmatpush1.bf16.msra.mxu0 0
        %1610 = vmatprep.subr.bf16.mxu0 0
        %1611 = vmatpush1.bf16.msra.mxu0 0
        %1612 = vmatprep.subr.bf16.mxu0 0
        %1613 = vmatpush1.bf16.msra.mxu0 0
        %1614 = vmatprep.subr.bf16.mxu0 0
        %1615 = vmatpush1.bf16.msra.mxu0 %v1596
        %1616 = vmatprep.subr.bf16.mxu0 0
        %1617 = vmatpush1.bf16.msra.mxu0 %v1595
        %1618 = vmatprep.subr.bf16.mxu0 0
        %1619 = vmatpush2.bf16.msra.mxu0 0
        %1620 = vmatprep.subr.bf16.mxu0 0
        %1621 = vmatpush2.bf16.msra.mxu0 0
        %1622 = vmatprep.subr.bf16.mxu0 0
        %1623 = vmatpush2.bf16.msra.mxu0 0
        %1624 = vmatprep.subr.bf16.mxu0 0
        %1625 = vmatpush2.bf16.msra.mxu0 0
        %1626 = vmatprep.subr.bf16.mxu0 0
        %1627 = vmatpush2.bf16.msra.mxu0 0
        %1628 = vmatprep.subr.bf16.mxu0 0
        %1629 = vmatpush2.bf16.msra.mxu0 0
        %1630 = vmatprep.subr.bf16.mxu0 0
        %1631 = vmatpush2.bf16.msra.mxu0 0
        %1632 = vmatprep.subr.bf16.mxu0 0
        %1633 = vmatpush2.bf16.msra.mxu0 0
        %1634 = vmatprep.mubr.bf16.mxu0 0
        %1635 = vmatmul.mubr.bf16.gmra.mxu0 %v1600
        %v1636 = vpop.f32.mrf.mxu0
        %v1637 = vadd.f32 %v1585, %v1636
        %v1638 = vpop.f32.mrf.mxu0
        %v1639 = vpop.f32.mrf.mxu0
        %v1640 = vadd.f32 %v1585, %v1639
        %v1641 = vpop.f32.mrf.mxu0
        %1642 = vdwg.mxu0
        %v1643 = vadd.f32 %v645, %v1637
        %v1644 = vadd.f32 %v646, %v1640
        %s1645 = scalar_lea.vmem %s9, %s37
        %v1646 = vld [vmem:[%s1645] sm:$0x1]
        %s1647 = scalar_lea.vmem %s10, %s37
        %v1648 = vld [vmem:[%s1647] sm:$0x1]
        %v1649 = vsel %vm675, %v1643, 0.0
        %1650 = vadd.xlane.f32.xlu0 %v1649
        %v1651 = vpop.xlane.xlu0 %1650
        %v1652 = vsel %vm675, %v1644, 0.0
        %1653 = vadd.xlane.f32.xlu0 %v1652
        %v1654 = vpop.xlane.xlu0 %1653
        %v1655 = vrcp.pop 32.0
        %v1656 = vmul.f32 %v1651, %v1655
        %v1657 = vmul.f32 %v1654, %v1655
        %v1658 = vsub.f32 %v1643, %v1656
        %v1659 = vsub.f32 %v1644, %v1657
        %v1660 = vmul.f32 %v1658, %v1658
        %v1661 = vmul.f32 %v1659, %v1659
        %v1662 = vsel %vm675, %v1660, 0.0
        %1663 = vadd.xlane.f32.xlu0 %v1662
        %v1664 = vpop.xlane.xlu0 %1663
        %v1665 = vsel %vm675, %v1661, 0.0
        %1666 = vadd.xlane.f32.xlu0 %v1665
        %v1667 = vpop.xlane.xlu0 %1666
        %v1668 = vmul.f32 %v1664, %v1655
        %v1669 = vmul.f32 %v1667, %v1655
        %v1670 = vadd.f32 %v1668, 1e-05
        %v1671 = vadd.f32 %v1669, 1e-05
        %v1672 = vrsqrt.pop %v1670
        %v1673 = vrsqrt.pop %v1671
        %v1674 = vmul.f32 %v1658, %v1672
        %v1675 = vmul.f32 %v1659, %v1673
        %v1677 = vlaneseq
        %v1678 = vshrl.u32 %v1677, 7
        %v1679 = vsub.s32 0, %v1678
        %v1680 = vrot.slane %v1646, %v1679
        %v1682 = vmul.f32 %v1674, %v1680
        %v1683 = vmul.f32 %v1675, %v1680
        %v1685 = vlaneseq
        %v1686 = vshrl.u32 %v1685, 7
        %v1687 = vsub.s32 0, %v1686
        %v1688 = vrot.slane %v1648, %v1687
        %v1690 = vadd.f32 %v1682, %v1688
        %v1691 = vadd.f32 %v1683, %v1688
        %s1692 = smul.u32 %s37, 64
        %s1693 = smul.addr %s1692, 4
        %s1694 = scalar_lea.vmem %s5, %s1693
        %v1695 = vld [vmem:[%s1694] sm:$0xff]
        %v1696 = vld [vmem:[%s1694 + $0x8] sm:$0xff]
        %v1697 = vld [vmem:[%s1694 + $0x10] sm:$0xff]
        %v1698 = vld [vmem:[%s1694 + $0x18] sm:$0xff]
        %v1699 = vld [vmem:[%s1694 + $0x20] sm:$0xff]
        %v1700 = vld [vmem:[%s1694 + $0x28] sm:$0xff]
        %v1701 = vld [vmem:[%s1694 + $0x30] sm:$0xff]
        %v1702 = vld [vmem:[%s1694 + $0x38] sm:$0xff]
        %v1703 = vld [vmem:[%s1694 + $0x40] sm:$0xff]
        %v1704 = vld [vmem:[%s1694 + $0x48] sm:$0xff]
        %v1705 = vld [vmem:[%s1694 + $0x50] sm:$0xff]
        %v1706 = vld [vmem:[%s1694 + $0x58] sm:$0xff]
        %v1707 = vld [vmem:[%s1694 + $0x60] sm:$0xff]
        %v1708 = vld [vmem:[%s1694 + $0x68] sm:$0xff]
        %v1709 = vld [vmem:[%s1694 + $0x70] sm:$0xff]
        %v1710 = vld [vmem:[%s1694 + $0x78] sm:$0xff]
        %v1711 = vld [vmem:[%s1694 + $0x80] sm:$0xff]
        %v1712 = vld [vmem:[%s1694 + $0x88] sm:$0xff]
        %v1713 = vld [vmem:[%s1694 + $0x90] sm:$0xff]
        %v1714 = vld [vmem:[%s1694 + $0x98] sm:$0xff]
        %v1715 = vld [vmem:[%s1694 + $0xa0] sm:$0xff]
        %v1716 = vld [vmem:[%s1694 + $0xa8] sm:$0xff]
        %v1717 = vld [vmem:[%s1694 + $0xb0] sm:$0xff]
        %v1718 = vld [vmem:[%s1694 + $0xb8] sm:$0xff]
        %v1719 = vld [vmem:[%s1694 + $0xc0] sm:$0xff]
        %v1720 = vld [vmem:[%s1694 + $0xc8] sm:$0xff]
        %v1721 = vld [vmem:[%s1694 + $0xd0] sm:$0xff]
        %v1722 = vld [vmem:[%s1694 + $0xd8] sm:$0xff]
        %v1723 = vld [vmem:[%s1694 + $0xe0] sm:$0xff]
        %v1724 = vld [vmem:[%s1694 + $0xe8] sm:$0xff]
        %v1725 = vld [vmem:[%s1694 + $0xf0] sm:$0xff]
        %v1726 = vld [vmem:[%s1694 + $0xf8] sm:$0xff]
        %v1727 = vpack.c.bf16 %v1691, %v1690
        %s1728 = smul.u32 %s37, 16
        %s1729 = scalar_lea.vmem %s6, %s1728
        %v1730 = vld [vmem:[%s1729] sm:$0xff]
        %v1731 = vld [vmem:[%s1729 + $0x8] sm:$0xff]
        %v1734 = vlaneseq
        %v1735 = vshrl.u32 %v1734, 7
        %v1736 = vsub.s32 0, %v1735
        %v1737 = vrot.slane %v1730, %v1736
        %v1738 = vlaneseq
        %v1739 = vshrl.u32 %v1738, 7
        %v1740 = vsub.s32 1, %v1739
        %v1741 = vrot.slane %v1730, %v1740
        %v1742 = vlaneseq
        %v1743 = vshrl.u32 %v1742, 7
        %v1744 = vsub.s32 2, %v1743
        %v1745 = vrot.slane %v1730, %v1744
        %v1746 = vlaneseq
        %v1747 = vshrl.u32 %v1746, 7
        %v1748 = vsub.s32 3, %v1747
        %v1749 = vrot.slane %v1730, %v1748
        %v1750 = vlaneseq
        %v1751 = vshrl.u32 %v1750, 7
        %v1752 = vsub.s32 4, %v1751
        %v1753 = vrot.slane %v1730, %v1752
        %v1754 = vlaneseq
        %v1755 = vshrl.u32 %v1754, 7
        %v1756 = vsub.s32 5, %v1755
        %v1757 = vrot.slane %v1730, %v1756
        %v1758 = vlaneseq
        %v1759 = vshrl.u32 %v1758, 7
        %v1760 = vsub.s32 6, %v1759
        %v1761 = vrot.slane %v1730, %v1760
        %v1762 = vlaneseq
        %v1763 = vshrl.u32 %v1762, 7
        %v1764 = vsub.s32 7, %v1763
        %v1765 = vrot.slane %v1730, %v1764
        %v1766 = vlaneseq
        %v1767 = vshrl.u32 %v1766, 7
        %v1768 = vsub.s32 0, %v1767
        %v1769 = vrot.slane %v1731, %v1768
        %v1770 = vlaneseq
        %v1771 = vshrl.u32 %v1770, 7
        %v1772 = vsub.s32 1, %v1771
        %v1773 = vrot.slane %v1731, %v1772
        %v1774 = vlaneseq
        %v1775 = vshrl.u32 %v1774, 7
        %v1776 = vsub.s32 2, %v1775
        %v1777 = vrot.slane %v1731, %v1776
        %v1778 = vlaneseq
        %v1779 = vshrl.u32 %v1778, 7
        %v1780 = vsub.s32 3, %v1779
        %v1781 = vrot.slane %v1731, %v1780
        %v1782 = vlaneseq
        %v1783 = vshrl.u32 %v1782, 7
        %v1784 = vsub.s32 4, %v1783
        %v1785 = vrot.slane %v1731, %v1784
        %v1786 = vlaneseq
        %v1787 = vshrl.u32 %v1786, 7
        %v1788 = vsub.s32 5, %v1787
        %v1789 = vrot.slane %v1731, %v1788
        %v1790 = vlaneseq
        %v1791 = vshrl.u32 %v1790, 7
        %v1792 = vsub.s32 6, %v1791
        %v1793 = vrot.slane %v1731, %v1792
        %v1794 = vlaneseq
        %v1795 = vshrl.u32 %v1794, 7
        %v1796 = vsub.s32 7, %v1795
        %v1797 = vrot.slane %v1731, %v1796
        %v1846 = vunpack.c.l.b16 %v1695
        %v1847 = vunpack.c.h.b16 %v1695
        %v1848 = vunpack.c.l.b16 %v1696
        %v1849 = vunpack.c.h.b16 %v1696
        %v1850 = vunpack.c.l.b16 %v1697
        %v1851 = vunpack.c.h.b16 %v1697
        %v1852 = vunpack.c.l.b16 %v1698
        %v1853 = vunpack.c.h.b16 %v1698
        %v1854 = vunpack.c.l.b16 %v1699
        %v1855 = vunpack.c.h.b16 %v1699
        %v1856 = vunpack.c.l.b16 %v1700
        %v1857 = vunpack.c.h.b16 %v1700
        %v1858 = vunpack.c.l.b16 %v1701
        %v1859 = vunpack.c.h.b16 %v1701
        %v1860 = vunpack.c.l.b16 %v1702
        %v1861 = vunpack.c.h.b16 %v1702
        %v1862 = vunpack.c.l.b16 %v1703
        %v1863 = vunpack.c.h.b16 %v1703
        %v1864 = vunpack.c.l.b16 %v1704
        %v1865 = vunpack.c.h.b16 %v1704
        %v1866 = vunpack.c.l.b16 %v1705
        %v1867 = vunpack.c.h.b16 %v1705
        %v1868 = vunpack.c.l.b16 %v1706
        %v1869 = vunpack.c.h.b16 %v1706
        %v1870 = vunpack.c.l.b16 %v1707
        %v1871 = vunpack.c.h.b16 %v1707
        %v1872 = vunpack.c.l.b16 %v1708
        %v1873 = vunpack.c.h.b16 %v1708
        %v1874 = vunpack.c.l.b16 %v1709
        %v1875 = vunpack.c.h.b16 %v1709
        %v1876 = vunpack.c.l.b16 %v1710
        %v1877 = vunpack.c.h.b16 %v1710
        %v1878 = vunpack.c.l.b16 %v1711
        %v1879 = vunpack.c.h.b16 %v1711
        %v1880 = vunpack.c.l.b16 %v1712
        %v1881 = vunpack.c.h.b16 %v1712
        %v1882 = vunpack.c.l.b16 %v1713
        %v1883 = vunpack.c.h.b16 %v1713
        %v1884 = vunpack.c.l.b16 %v1714
        %v1885 = vunpack.c.h.b16 %v1714
        %v1886 = vunpack.c.l.b16 %v1715
        %v1887 = vunpack.c.h.b16 %v1715
        %v1888 = vunpack.c.l.b16 %v1716
        %v1889 = vunpack.c.h.b16 %v1716
        %v1890 = vunpack.c.l.b16 %v1717
        %v1891 = vunpack.c.h.b16 %v1717
        %v1892 = vunpack.c.l.b16 %v1718
        %v1893 = vunpack.c.h.b16 %v1718
        %v1894 = vunpack.c.l.b16 %v1719
        %v1895 = vunpack.c.h.b16 %v1719
        %v1896 = vunpack.c.l.b16 %v1720
        %v1897 = vunpack.c.h.b16 %v1720
        %v1898 = vunpack.c.l.b16 %v1721
        %v1899 = vunpack.c.h.b16 %v1721
        %v1900 = vunpack.c.l.b16 %v1722
        %v1901 = vunpack.c.h.b16 %v1722
        %v1902 = vunpack.c.l.b16 %v1723
        %v1903 = vunpack.c.h.b16 %v1723
        %v1904 = vunpack.c.l.b16 %v1724
        %v1905 = vunpack.c.h.b16 %v1724
        %v1906 = vunpack.c.l.b16 %v1725
        %v1907 = vunpack.c.h.b16 %v1725
        %v1908 = vunpack.c.l.b16 %v1726
        %v1909 = vunpack.c.h.b16 %v1726
        %v1910 = vpack.c.b16 %v1862, %v1846
        %v1911 = vpack.c.b16 %v1863, %v1847
        %v1912 = vpack.c.b16 %v1864, %v1848
        %v1913 = vpack.c.b16 %v1865, %v1849
        %v1914 = vpack.c.b16 %v1866, %v1850
        %v1915 = vpack.c.b16 %v1867, %v1851
        %v1916 = vpack.c.b16 %v1868, %v1852
        %v1917 = vpack.c.b16 %v1869, %v1853
        %v1918 = vpack.c.b16 %v1870, %v1854
        %v1919 = vpack.c.b16 %v1871, %v1855
        %v1920 = vpack.c.b16 %v1872, %v1856
        %v1921 = vpack.c.b16 %v1873, %v1857
        %v1922 = vpack.c.b16 %v1874, %v1858
        %v1923 = vpack.c.b16 %v1875, %v1859
        %v1924 = vpack.c.b16 %v1876, %v1860
        %v1925 = vpack.c.b16 %v1877, %v1861
        %v1926 = vpack.c.b16 %v1894, %v1878
        %v1927 = vpack.c.b16 %v1895, %v1879
        %v1928 = vpack.c.b16 %v1896, %v1880
        %v1929 = vpack.c.b16 %v1897, %v1881
        %v1930 = vpack.c.b16 %v1898, %v1882
        %v1931 = vpack.c.b16 %v1899, %v1883
        %v1932 = vpack.c.b16 %v1900, %v1884
        %v1933 = vpack.c.b16 %v1901, %v1885
        %v1934 = vpack.c.b16 %v1902, %v1886
        %v1935 = vpack.c.b16 %v1903, %v1887
        %v1936 = vpack.c.b16 %v1904, %v1888
        %v1937 = vpack.c.b16 %v1905, %v1889
        %v1938 = vpack.c.b16 %v1906, %v1890
        %v1939 = vpack.c.b16 %v1907, %v1891
        %v1940 = vpack.c.b16 %v1908, %v1892
        %v1941 = vpack.c.b16 %v1909, %v1893
        %v1975 = vsel %vm675, %v1727, 0
        %1977 = vmatprep.subr.bf16.mxu0 0
        %1978 = vmatpush1.bf16.msra.mxu0 0
        %1979 = vmatprep.subr.bf16.mxu0 0
        %1980 = vmatpush1.bf16.msra.mxu0 0
        %1981 = vmatprep.subr.bf16.mxu0 0
        %1982 = vmatpush1.bf16.msra.mxu0 0
        %1983 = vmatprep.subr.bf16.mxu0 0
        %1984 = vmatpush1.bf16.msra.mxu0 0
        %1985 = vmatprep.subr.bf16.mxu0 0
        %1986 = vmatpush1.bf16.msra.mxu0 0
        %1987 = vmatprep.subr.bf16.mxu0 0
        %1988 = vmatpush1.bf16.msra.mxu0 0
        %1989 = vmatprep.subr.bf16.mxu0 %v1927
        %1990 = vmatpush1.bf16.msra.mxu0 %v1926
        %1991 = vmatprep.subr.bf16.mxu0 %v1911
        %1992 = vmatpush1.bf16.msra.mxu0 %v1910
        %1993 = vmatprep.subr.bf16.mxu0 0
        %1994 = vmatpush2.bf16.msra.mxu0 0
        %1995 = vmatprep.subr.bf16.mxu0 0
        %1996 = vmatpush2.bf16.msra.mxu0 0
        %1997 = vmatprep.subr.bf16.mxu0 0
        %1998 = vmatpush2.bf16.msra.mxu0 0
        %1999 = vmatprep.subr.bf16.mxu0 0
        %2000 = vmatpush2.bf16.msra.mxu0 0
        %2001 = vmatprep.subr.bf16.mxu0 0
        %2002 = vmatpush2.bf16.msra.mxu0 0
        %2003 = vmatprep.subr.bf16.mxu0 0
        %2004 = vmatpush2.bf16.msra.mxu0 0
        %2005 = vmatprep.subr.bf16.mxu0 0
        %2006 = vmatpush2.bf16.msra.mxu0 0
        %2007 = vmatprep.subr.bf16.mxu0 0
        %2008 = vmatpush2.bf16.msra.mxu0 0
        %2009 = vmatprep.mubr.bf16.mxu0 0
        %2010 = vmatmul.mubr.bf16.gmra.mxu0 %v1975
        %v2011 = vpop.f32.mrf.mxu0
        %v2012 = vadd.f32 %v1737, %v2011
        %v2013 = vpop.f32.mrf.mxu0
        %v2014 = vadd.f32 %v1741, %v2013
        %v2015 = vpop.f32.mrf.mxu0
        %v2016 = vadd.f32 %v1737, %v2015
        %v2017 = vpop.f32.mrf.mxu0
        %v2018 = vadd.f32 %v1741, %v2017
        %2019 = vdwg.mxu0
        %2020 = vmatprep.subr.bf16.mxu0 0
        %2021 = vmatpush1.bf16.msra.mxu0 0
        %2022 = vmatprep.subr.bf16.mxu0 0
        %2023 = vmatpush1.bf16.msra.mxu0 0
        %2024 = vmatprep.subr.bf16.mxu0 0
        %2025 = vmatpush1.bf16.msra.mxu0 0
        %2026 = vmatprep.subr.bf16.mxu0 0
        %2027 = vmatpush1.bf16.msra.mxu0 0
        %2028 = vmatprep.subr.bf16.mxu0 0
        %2029 = vmatpush1.bf16.msra.mxu0 0
        %2030 = vmatprep.subr.bf16.mxu0 0
        %2031 = vmatpush1.bf16.msra.mxu0 0
        %2032 = vmatprep.subr.bf16.mxu0 %v1929
        %2033 = vmatpush1.bf16.msra.mxu0 %v1928
        %2034 = vmatprep.subr.bf16.mxu0 %v1913
        %2035 = vmatpush1.bf16.msra.mxu0 %v1912
        %2036 = vmatprep.subr.bf16.mxu0 0
        %2037 = vmatpush2.bf16.msra.mxu0 0
        %2038 = vmatprep.subr.bf16.mxu0 0
        %2039 = vmatpush2.bf16.msra.mxu0 0
        %2040 = vmatprep.subr.bf16.mxu0 0
        %2041 = vmatpush2.bf16.msra.mxu0 0
        %2042 = vmatprep.subr.bf16.mxu0 0
        %2043 = vmatpush2.bf16.msra.mxu0 0
        %2044 = vmatprep.subr.bf16.mxu0 0
        %2045 = vmatpush2.bf16.msra.mxu0 0
        %2046 = vmatprep.subr.bf16.mxu0 0
        %2047 = vmatpush2.bf16.msra.mxu0 0
        %2048 = vmatprep.subr.bf16.mxu0 0
        %2049 = vmatpush2.bf16.msra.mxu0 0
        %2050 = vmatprep.subr.bf16.mxu0 0
        %2051 = vmatpush2.bf16.msra.mxu0 0
        %2052 = vmatprep.mubr.bf16.mxu0 0
        %2053 = vmatmul.mubr.bf16.gmra.mxu0 %v1975
        %v2054 = vpop.f32.mrf.mxu0
        %v2055 = vadd.f32 %v1745, %v2054
        %v2056 = vpop.f32.mrf.mxu0
        %v2057 = vadd.f32 %v1749, %v2056
        %v2058 = vpop.f32.mrf.mxu0
        %v2059 = vadd.f32 %v1745, %v2058
        %v2060 = vpop.f32.mrf.mxu0
        %v2061 = vadd.f32 %v1749, %v2060
        %2062 = vdwg.mxu0
        %2063 = vmatprep.subr.bf16.mxu0 0
        %2064 = vmatpush1.bf16.msra.mxu0 0
        %2065 = vmatprep.subr.bf16.mxu0 0
        %2066 = vmatpush1.bf16.msra.mxu0 0
        %2067 = vmatprep.subr.bf16.mxu0 0
        %2068 = vmatpush1.bf16.msra.mxu0 0
        %2069 = vmatprep.subr.bf16.mxu0 0
        %2070 = vmatpush1.bf16.msra.mxu0 0
        %2071 = vmatprep.subr.bf16.mxu0 0
        %2072 = vmatpush1.bf16.msra.mxu0 0
        %2073 = vmatprep.subr.bf16.mxu0 0
        %2074 = vmatpush1.bf16.msra.mxu0 0
        %2075 = vmatprep.subr.bf16.mxu0 %v1931
        %2076 = vmatpush1.bf16.msra.mxu0 %v1930
        %2077 = vmatprep.subr.bf16.mxu0 %v1915
        %2078 = vmatpush1.bf16.msra.mxu0 %v1914
        %2079 = vmatprep.subr.bf16.mxu0 0
        %2080 = vmatpush2.bf16.msra.mxu0 0
        %2081 = vmatprep.subr.bf16.mxu0 0
        %2082 = vmatpush2.bf16.msra.mxu0 0
        %2083 = vmatprep.subr.bf16.mxu0 0
        %2084 = vmatpush2.bf16.msra.mxu0 0
        %2085 = vmatprep.subr.bf16.mxu0 0
        %2086 = vmatpush2.bf16.msra.mxu0 0
        %2087 = vmatprep.subr.bf16.mxu0 0
        %2088 = vmatpush2.bf16.msra.mxu0 0
        %2089 = vmatprep.subr.bf16.mxu0 0
        %2090 = vmatpush2.bf16.msra.mxu0 0
        %2091 = vmatprep.subr.bf16.mxu0 0
        %2092 = vmatpush2.bf16.msra.mxu0 0
        %2093 = vmatprep.subr.bf16.mxu0 0
        %2094 = vmatpush2.bf16.msra.mxu0 0
        %2095 = vmatprep.mubr.bf16.mxu0 0
        %2096 = vmatmul.mubr.bf16.gmra.mxu0 %v1975
        %v2097 = vpop.f32.mrf.mxu0
        %v2098 = vadd.f32 %v1753, %v2097
        %v2099 = vpop.f32.mrf.mxu0
        %v2100 = vadd.f32 %v1757, %v2099
        %v2101 = vpop.f32.mrf.mxu0
        %v2102 = vadd.f32 %v1753, %v2101
        %v2103 = vpop.f32.mrf.mxu0
        %v2104 = vadd.f32 %v1757, %v2103
        %2105 = vdwg.mxu0
        %2106 = vmatprep.subr.bf16.mxu0 0
        %2107 = vmatpush1.bf16.msra.mxu0 0
        %2108 = vmatprep.subr.bf16.mxu0 0
        %2109 = vmatpush1.bf16.msra.mxu0 0
        %2110 = vmatprep.subr.bf16.mxu0 0
        %2111 = vmatpush1.bf16.msra.mxu0 0
        %2112 = vmatprep.subr.bf16.mxu0 0
        %2113 = vmatpush1.bf16.msra.mxu0 0
        %2114 = vmatprep.subr.bf16.mxu0 0
        %2115 = vmatpush1.bf16.msra.mxu0 0
        %2116 = vmatprep.subr.bf16.mxu0 0
        %2117 = vmatpush1.bf16.msra.mxu0 0
        %2118 = vmatprep.subr.bf16.mxu0 %v1933
        %2119 = vmatpush1.bf16.msra.mxu0 %v1932
        %2120 = vmatprep.subr.bf16.mxu0 %v1917
        %2121 = vmatpush1.bf16.msra.mxu0 %v1916
        %2122 = vmatprep.subr.bf16.mxu0 0
        %2123 = vmatpush2.bf16.msra.mxu0 0
        %2124 = vmatprep.subr.bf16.mxu0 0
        %2125 = vmatpush2.bf16.msra.mxu0 0
        %2126 = vmatprep.subr.bf16.mxu0 0
        %2127 = vmatpush2.bf16.msra.mxu0 0
        %2128 = vmatprep.subr.bf16.mxu0 0
        %2129 = vmatpush2.bf16.msra.mxu0 0
        %2130 = vmatprep.subr.bf16.mxu0 0
        %2131 = vmatpush2.bf16.msra.mxu0 0
        %2132 = vmatprep.subr.bf16.mxu0 0
        %2133 = vmatpush2.bf16.msra.mxu0 0
        %2134 = vmatprep.subr.bf16.mxu0 0
        %2135 = vmatpush2.bf16.msra.mxu0 0
        %2136 = vmatprep.subr.bf16.mxu0 0
        %2137 = vmatpush2.bf16.msra.mxu0 0
        %2138 = vmatprep.mubr.bf16.mxu0 0
        %2139 = vmatmul.mubr.bf16.gmra.mxu0 %v1975
        %v2140 = vpop.f32.mrf.mxu0
        %v2141 = vadd.f32 %v1761, %v2140
        %v2142 = vpop.f32.mrf.mxu0
        %v2143 = vadd.f32 %v1765, %v2142
        %v2144 = vpop.f32.mrf.mxu0
        %v2145 = vadd.f32 %v1761, %v2144
        %v2146 = vpop.f32.mrf.mxu0
        %v2147 = vadd.f32 %v1765, %v2146
        %2148 = vdwg.mxu0
        %2149 = vmatprep.subr.bf16.mxu0 0
        %2150 = vmatpush1.bf16.msra.mxu0 0
        %2151 = vmatprep.subr.bf16.mxu0 0
        %2152 = vmatpush1.bf16.msra.mxu0 0
        %2153 = vmatprep.subr.bf16.mxu0 0
        %2154 = vmatpush1.bf16.msra.mxu0 0
        %2155 = vmatprep.subr.bf16.mxu0 0
        %2156 = vmatpush1.bf16.msra.mxu0 0
        %2157 = vmatprep.subr.bf16.mxu0 0
        %2158 = vmatpush1.bf16.msra.mxu0 0
        %2159 = vmatprep.subr.bf16.mxu0 0
        %2160 = vmatpush1.bf16.msra.mxu0 0
        %2161 = vmatprep.subr.bf16.mxu0 %v1935
        %2162 = vmatpush1.bf16.msra.mxu0 %v1934
        %2163 = vmatprep.subr.bf16.mxu0 %v1919
        %2164 = vmatpush1.bf16.msra.mxu0 %v1918
        %2165 = vmatprep.subr.bf16.mxu0 0
        %2166 = vmatpush2.bf16.msra.mxu0 0
        %2167 = vmatprep.subr.bf16.mxu0 0
        %2168 = vmatpush2.bf16.msra.mxu0 0
        %2169 = vmatprep.subr.bf16.mxu0 0
        %2170 = vmatpush2.bf16.msra.mxu0 0
        %2171 = vmatprep.subr.bf16.mxu0 0
        %2172 = vmatpush2.bf16.msra.mxu0 0
        %2173 = vmatprep.subr.bf16.mxu0 0
        %2174 = vmatpush2.bf16.msra.mxu0 0
        %2175 = vmatprep.subr.bf16.mxu0 0
        %2176 = vmatpush2.bf16.msra.mxu0 0
        %2177 = vmatprep.subr.bf16.mxu0 0
        %2178 = vmatpush2.bf16.msra.mxu0 0
        %2179 = vmatprep.subr.bf16.mxu0 0
        %2180 = vmatpush2.bf16.msra.mxu0 0
        %2181 = vmatprep.mubr.bf16.mxu0 0
        %2182 = vmatmul.mubr.bf16.gmra.mxu0 %v1975
        %v2183 = vpop.f32.mrf.mxu0
        %v2184 = vadd.f32 %v1769, %v2183
        %v2185 = vpop.f32.mrf.mxu0
        %v2186 = vadd.f32 %v1773, %v2185
        %v2187 = vpop.f32.mrf.mxu0
        %v2188 = vadd.f32 %v1769, %v2187
        %v2189 = vpop.f32.mrf.mxu0
        %v2190 = vadd.f32 %v1773, %v2189
        %2191 = vdwg.mxu0
        %2192 = vmatprep.subr.bf16.mxu0 0
        %2193 = vmatpush1.bf16.msra.mxu0 0
        %2194 = vmatprep.subr.bf16.mxu0 0
        %2195 = vmatpush1.bf16.msra.mxu0 0
        %2196 = vmatprep.subr.bf16.mxu0 0
        %2197 = vmatpush1.bf16.msra.mxu0 0
        %2198 = vmatprep.subr.bf16.mxu0 0
        %2199 = vmatpush1.bf16.msra.mxu0 0
        %2200 = vmatprep.subr.bf16.mxu0 0
        %2201 = vmatpush1.bf16.msra.mxu0 0
        %2202 = vmatprep.subr.bf16.mxu0 0
        %2203 = vmatpush1.bf16.msra.mxu0 0
        %2204 = vmatprep.subr.bf16.mxu0 %v1937
        %2205 = vmatpush1.bf16.msra.mxu0 %v1936
        %2206 = vmatprep.subr.bf16.mxu0 %v1921
        %2207 = vmatpush1.bf16.msra.mxu0 %v1920
        %2208 = vmatprep.subr.bf16.mxu0 0
        %2209 = vmatpush2.bf16.msra.mxu0 0
        %2210 = vmatprep.subr.bf16.mxu0 0
        %2211 = vmatpush2.bf16.msra.mxu0 0
        %2212 = vmatprep.subr.bf16.mxu0 0
        %2213 = vmatpush2.bf16.msra.mxu0 0
        %2214 = vmatprep.subr.bf16.mxu0 0
        %2215 = vmatpush2.bf16.msra.mxu0 0
        %2216 = vmatprep.subr.bf16.mxu0 0
        %2217 = vmatpush2.bf16.msra.mxu0 0
        %2218 = vmatprep.subr.bf16.mxu0 0
        %2219 = vmatpush2.bf16.msra.mxu0 0
        %2220 = vmatprep.subr.bf16.mxu0 0
        %2221 = vmatpush2.bf16.msra.mxu0 0
        %2222 = vmatprep.subr.bf16.mxu0 0
        %2223 = vmatpush2.bf16.msra.mxu0 0
        %2224 = vmatprep.mubr.bf16.mxu0 0
        %2225 = vmatmul.mubr.bf16.gmra.mxu0 %v1975
        %v2226 = vpop.f32.mrf.mxu0
        %v2227 = vadd.f32 %v1777, %v2226
        %v2228 = vpop.f32.mrf.mxu0
        %v2229 = vadd.f32 %v1781, %v2228
        %v2230 = vpop.f32.mrf.mxu0
        %v2231 = vadd.f32 %v1777, %v2230
        %v2232 = vpop.f32.mrf.mxu0
        %v2233 = vadd.f32 %v1781, %v2232
        %2234 = vdwg.mxu0
        %2235 = vmatprep.subr.bf16.mxu0 0
        %2236 = vmatpush1.bf16.msra.mxu0 0
        %2237 = vmatprep.subr.bf16.mxu0 0
        %2238 = vmatpush1.bf16.msra.mxu0 0
        %2239 = vmatprep.subr.bf16.mxu0 0
        %2240 = vmatpush1.bf16.msra.mxu0 0
        %2241 = vmatprep.subr.bf16.mxu0 0
        %2242 = vmatpush1.bf16.msra.mxu0 0
        %2243 = vmatprep.subr.bf16.mxu0 0
        %2244 = vmatpush1.bf16.msra.mxu0 0
        %2245 = vmatprep.subr.bf16.mxu0 0
        %2246 = vmatpush1.bf16.msra.mxu0 0
        %2247 = vmatprep.subr.bf16.mxu0 %v1939
        %2248 = vmatpush1.bf16.msra.mxu0 %v1938
        %2249 = vmatprep.subr.bf16.mxu0 %v1923
        %2250 = vmatpush1.bf16.msra.mxu0 %v1922
        %2251 = vmatprep.subr.bf16.mxu0 0
        %2252 = vmatpush2.bf16.msra.mxu0 0
        %2253 = vmatprep.subr.bf16.mxu0 0
        %2254 = vmatpush2.bf16.msra.mxu0 0
        %2255 = vmatprep.subr.bf16.mxu0 0
        %2256 = vmatpush2.bf16.msra.mxu0 0
        %2257 = vmatprep.subr.bf16.mxu0 0
        %2258 = vmatpush2.bf16.msra.mxu0 0
        %2259 = vmatprep.subr.bf16.mxu0 0
        %2260 = vmatpush2.bf16.msra.mxu0 0
        %2261 = vmatprep.subr.bf16.mxu0 0
        %2262 = vmatpush2.bf16.msra.mxu0 0
        %2263 = vmatprep.subr.bf16.mxu0 0
        %2264 = vmatpush2.bf16.msra.mxu0 0
        %2265 = vmatprep.subr.bf16.mxu0 0
        %2266 = vmatpush2.bf16.msra.mxu0 0
        %2267 = vmatprep.mubr.bf16.mxu0 0
        %2268 = vmatmul.mubr.bf16.gmra.mxu0 %v1975
        %v2269 = vpop.f32.mrf.mxu0
        %v2270 = vadd.f32 %v1785, %v2269
        %v2271 = vpop.f32.mrf.mxu0
        %v2272 = vadd.f32 %v1789, %v2271
        %v2273 = vpop.f32.mrf.mxu0
        %v2274 = vadd.f32 %v1785, %v2273
        %v2275 = vpop.f32.mrf.mxu0
        %v2276 = vadd.f32 %v1789, %v2275
        %2277 = vdwg.mxu0
        %2278 = vmatprep.subr.bf16.mxu0 0
        %2279 = vmatpush1.bf16.msra.mxu0 0
        %2280 = vmatprep.subr.bf16.mxu0 0
        %2281 = vmatpush1.bf16.msra.mxu0 0
        %2282 = vmatprep.subr.bf16.mxu0 0
        %2283 = vmatpush1.bf16.msra.mxu0 0
        %2284 = vmatprep.subr.bf16.mxu0 0
        %2285 = vmatpush1.bf16.msra.mxu0 0
        %2286 = vmatprep.subr.bf16.mxu0 0
        %2287 = vmatpush1.bf16.msra.mxu0 0
        %2288 = vmatprep.subr.bf16.mxu0 0
        %2289 = vmatpush1.bf16.msra.mxu0 0
        %2290 = vmatprep.subr.bf16.mxu0 %v1941
        %2291 = vmatpush1.bf16.msra.mxu0 %v1940
        %2292 = vmatprep.subr.bf16.mxu0 %v1925
        %2293 = vmatpush1.bf16.msra.mxu0 %v1924
        %2294 = vmatprep.subr.bf16.mxu0 0
        %2295 = vmatpush2.bf16.msra.mxu0 0
        %2296 = vmatprep.subr.bf16.mxu0 0
        %2297 = vmatpush2.bf16.msra.mxu0 0
        %2298 = vmatprep.subr.bf16.mxu0 0
        %2299 = vmatpush2.bf16.msra.mxu0 0
        %2300 = vmatprep.subr.bf16.mxu0 0
        %2301 = vmatpush2.bf16.msra.mxu0 0
        %2302 = vmatprep.subr.bf16.mxu0 0
        %2303 = vmatpush2.bf16.msra.mxu0 0
        %2304 = vmatprep.subr.bf16.mxu0 0
        %2305 = vmatpush2.bf16.msra.mxu0 0
        %2306 = vmatprep.subr.bf16.mxu0 0
        %2307 = vmatpush2.bf16.msra.mxu0 0
        %2308 = vmatprep.subr.bf16.mxu0 0
        %2309 = vmatpush2.bf16.msra.mxu0 0
        %2310 = vmatprep.mubr.bf16.mxu0 0
        %2311 = vmatmul.mubr.bf16.gmra.mxu0 %v1975
        %v2312 = vpop.f32.mrf.mxu0
        %v2313 = vadd.f32 %v1793, %v2312
        %v2314 = vpop.f32.mrf.mxu0
        %v2315 = vadd.f32 %v1797, %v2314
        %v2316 = vpop.f32.mrf.mxu0
        %v2317 = vadd.f32 %v1793, %v2316
        %v2318 = vpop.f32.mrf.mxu0
        %v2319 = vadd.f32 %v1797, %v2318
        %2320 = vdwg.mxu0
        %v2321 = vmax.f32 %v2012, 0.0
        %v2322 = vmax.f32 %v2014, 0.0
        %v2323 = vmax.f32 %v2055, 0.0
        %v2324 = vmax.f32 %v2057, 0.0
        %v2325 = vmax.f32 %v2098, 0.0
        %v2326 = vmax.f32 %v2100, 0.0
        %v2327 = vmax.f32 %v2141, 0.0
        %v2328 = vmax.f32 %v2143, 0.0
        %v2329 = vmax.f32 %v2184, 0.0
        %v2330 = vmax.f32 %v2186, 0.0
        %v2331 = vmax.f32 %v2227, 0.0
        %v2332 = vmax.f32 %v2229, 0.0
        %v2333 = vmax.f32 %v2270, 0.0
        %v2334 = vmax.f32 %v2272, 0.0
        %v2335 = vmax.f32 %v2313, 0.0
        %v2336 = vmax.f32 %v2315, 0.0
        %v2337 = vmax.f32 %v2016, 0.0
        %v2338 = vmax.f32 %v2018, 0.0
        %v2339 = vmax.f32 %v2059, 0.0
        %v2340 = vmax.f32 %v2061, 0.0
        %v2341 = vmax.f32 %v2102, 0.0
        %v2342 = vmax.f32 %v2104, 0.0
        %v2343 = vmax.f32 %v2145, 0.0
        %v2344 = vmax.f32 %v2147, 0.0
        %v2345 = vmax.f32 %v2188, 0.0
        %v2346 = vmax.f32 %v2190, 0.0
        %v2347 = vmax.f32 %v2231, 0.0
        %v2348 = vmax.f32 %v2233, 0.0
        %v2349 = vmax.f32 %v2274, 0.0
        %v2350 = vmax.f32 %v2276, 0.0
        %v2351 = vmax.f32 %v2317, 0.0
        %v2352 = vmax.f32 %v2319, 0.0
        %s2353 = smul.u32 %s37, 256
        %s2354 = smul.addr %s2353, 4
        %s2355 = scalar_lea.vmem %s7, %s2354
        %v2356 = vld [vmem:[%s2355] sm:$0xf]
        %v2357 = vld [vmem:[%s2355 + $0x4] sm:$0xf]
        %v2358 = vld [vmem:[%s2355 + $0x8] sm:$0xf]
        %v2359 = vld [vmem:[%s2355 + $0xc] sm:$0xf]
        %v2360 = vld [vmem:[%s2355 + $0x10] sm:$0xf]
        %v2361 = vld [vmem:[%s2355 + $0x14] sm:$0xf]
        %v2362 = vld [vmem:[%s2355 + $0x18] sm:$0xf]
        %v2363 = vld [vmem:[%s2355 + $0x1c] sm:$0xf]
        %v2364 = vld [vmem:[%s2355 + $0x20] sm:$0xf]
        %v2365 = vld [vmem:[%s2355 + $0x24] sm:$0xf]
        %v2366 = vld [vmem:[%s2355 + $0x28] sm:$0xf]
        %v2367 = vld [vmem:[%s2355 + $0x2c] sm:$0xf]
        %v2368 = vld [vmem:[%s2355 + $0x30] sm:$0xf]
        %v2369 = vld [vmem:[%s2355 + $0x34] sm:$0xf]
        %v2370 = vld [vmem:[%s2355 + $0x38] sm:$0xf]
        %v2371 = vld [vmem:[%s2355 + $0x3c] sm:$0xf]
        %v2372 = vld [vmem:[%s2355 + $0x40] sm:$0xf]
        %v2373 = vld [vmem:[%s2355 + $0x44] sm:$0xf]
        %v2374 = vld [vmem:[%s2355 + $0x48] sm:$0xf]
        %v2375 = vld [vmem:[%s2355 + $0x4c] sm:$0xf]
        %v2376 = vld [vmem:[%s2355 + $0x50] sm:$0xf]
        %v2377 = vld [vmem:[%s2355 + $0x54] sm:$0xf]
        %v2378 = vld [vmem:[%s2355 + $0x58] sm:$0xf]
        %v2379 = vld [vmem:[%s2355 + $0x5c] sm:$0xf]
        %v2380 = vld [vmem:[%s2355 + $0x60] sm:$0xf]
        %v2381 = vld [vmem:[%s2355 + $0x64] sm:$0xf]
        %v2382 = vld [vmem:[%s2355 + $0x68] sm:$0xf]
        %v2383 = vld [vmem:[%s2355 + $0x6c] sm:$0xf]
        %v2384 = vld [vmem:[%s2355 + $0x70] sm:$0xf]
        %v2385 = vld [vmem:[%s2355 + $0x74] sm:$0xf]
        %v2386 = vld [vmem:[%s2355 + $0x78] sm:$0xf]
        %v2387 = vld [vmem:[%s2355 + $0x7c] sm:$0xf]
        %v2388 = vld [vmem:[%s2355 + $0x80] sm:$0xf]
        %v2389 = vld [vmem:[%s2355 + $0x84] sm:$0xf]
        %v2390 = vld [vmem:[%s2355 + $0x88] sm:$0xf]
        %v2391 = vld [vmem:[%s2355 + $0x8c] sm:$0xf]
        %v2392 = vld [vmem:[%s2355 + $0x90] sm:$0xf]
        %v2393 = vld [vmem:[%s2355 + $0x94] sm:$0xf]
        %v2394 = vld [vmem:[%s2355 + $0x98] sm:$0xf]
        %v2395 = vld [vmem:[%s2355 + $0x9c] sm:$0xf]
        %v2396 = vld [vmem:[%s2355 + $0xa0] sm:$0xf]
        %v2397 = vld [vmem:[%s2355 + $0xa4] sm:$0xf]
        %v2398 = vld [vmem:[%s2355 + $0xa8] sm:$0xf]
        %v2399 = vld [vmem:[%s2355 + $0xac] sm:$0xf]
        %v2400 = vld [vmem:[%s2355 + $0xb0] sm:$0xf]
        %v2401 = vld [vmem:[%s2355 + $0xb4] sm:$0xf]
        %v2402 = vld [vmem:[%s2355 + $0xb8] sm:$0xf]
        %v2403 = vld [vmem:[%s2355 + $0xbc] sm:$0xf]
        %v2404 = vld [vmem:[%s2355 + $0xc0] sm:$0xf]
        %v2405 = vld [vmem:[%s2355 + $0xc4] sm:$0xf]
        %v2406 = vld [vmem:[%s2355 + $0xc8] sm:$0xf]
        %v2407 = vld [vmem:[%s2355 + $0xcc] sm:$0xf]
        %v2408 = vld [vmem:[%s2355 + $0xd0] sm:$0xf]
        %v2409 = vld [vmem:[%s2355 + $0xd4] sm:$0xf]
        %v2410 = vld [vmem:[%s2355 + $0xd8] sm:$0xf]
        %v2411 = vld [vmem:[%s2355 + $0xdc] sm:$0xf]
        %v2412 = vld [vmem:[%s2355 + $0xe0] sm:$0xf]
        %v2413 = vld [vmem:[%s2355 + $0xe4] sm:$0xf]
        %v2414 = vld [vmem:[%s2355 + $0xe8] sm:$0xf]
        %v2415 = vld [vmem:[%s2355 + $0xec] sm:$0xf]
        %v2416 = vld [vmem:[%s2355 + $0xf0] sm:$0xf]
        %v2417 = vld [vmem:[%s2355 + $0xf4] sm:$0xf]
        %v2418 = vld [vmem:[%s2355 + $0xf8] sm:$0xf]
        %v2419 = vld [vmem:[%s2355 + $0xfc] sm:$0xf]
        %v2420 = vld [vmem:[%s2355 + $0x100] sm:$0xf]
        %v2421 = vld [vmem:[%s2355 + $0x104] sm:$0xf]
        %v2422 = vld [vmem:[%s2355 + $0x108] sm:$0xf]
        %v2423 = vld [vmem:[%s2355 + $0x10c] sm:$0xf]
        %v2424 = vld [vmem:[%s2355 + $0x110] sm:$0xf]
        %v2425 = vld [vmem:[%s2355 + $0x114] sm:$0xf]
        %v2426 = vld [vmem:[%s2355 + $0x118] sm:$0xf]
        %v2427 = vld [vmem:[%s2355 + $0x11c] sm:$0xf]
        %v2428 = vld [vmem:[%s2355 + $0x120] sm:$0xf]
        %v2429 = vld [vmem:[%s2355 + $0x124] sm:$0xf]
        %v2430 = vld [vmem:[%s2355 + $0x128] sm:$0xf]
        %v2431 = vld [vmem:[%s2355 + $0x12c] sm:$0xf]
        %v2432 = vld [vmem:[%s2355 + $0x130] sm:$0xf]
        %v2433 = vld [vmem:[%s2355 + $0x134] sm:$0xf]
        %v2434 = vld [vmem:[%s2355 + $0x138] sm:$0xf]
        %v2435 = vld [vmem:[%s2355 + $0x13c] sm:$0xf]
        %v2436 = vld [vmem:[%s2355 + $0x140] sm:$0xf]
        %v2437 = vld [vmem:[%s2355 + $0x144] sm:$0xf]
        %v2438 = vld [vmem:[%s2355 + $0x148] sm:$0xf]
        %v2439 = vld [vmem:[%s2355 + $0x14c] sm:$0xf]
        %v2440 = vld [vmem:[%s2355 + $0x150] sm:$0xf]
        %v2441 = vld [vmem:[%s2355 + $0x154] sm:$0xf]
        %v2442 = vld [vmem:[%s2355 + $0x158] sm:$0xf]
        %v2443 = vld [vmem:[%s2355 + $0x15c] sm:$0xf]
        %v2444 = vld [vmem:[%s2355 + $0x160] sm:$0xf]
        %v2445 = vld [vmem:[%s2355 + $0x164] sm:$0xf]
        %v2446 = vld [vmem:[%s2355 + $0x168] sm:$0xf]
        %v2447 = vld [vmem:[%s2355 + $0x16c] sm:$0xf]
        %v2448 = vld [vmem:[%s2355 + $0x170] sm:$0xf]
        %v2449 = vld [vmem:[%s2355 + $0x174] sm:$0xf]
        %v2450 = vld [vmem:[%s2355 + $0x178] sm:$0xf]
        %v2451 = vld [vmem:[%s2355 + $0x17c] sm:$0xf]
        %v2452 = vld [vmem:[%s2355 + $0x180] sm:$0xf]
        %v2453 = vld [vmem:[%s2355 + $0x184] sm:$0xf]
        %v2454 = vld [vmem:[%s2355 + $0x188] sm:$0xf]
        %v2455 = vld [vmem:[%s2355 + $0x18c] sm:$0xf]
        %v2456 = vld [vmem:[%s2355 + $0x190] sm:$0xf]
        %v2457 = vld [vmem:[%s2355 + $0x194] sm:$0xf]
        %v2458 = vld [vmem:[%s2355 + $0x198] sm:$0xf]
        %v2459 = vld [vmem:[%s2355 + $0x19c] sm:$0xf]
        %v2460 = vld [vmem:[%s2355 + $0x1a0] sm:$0xf]
        %v2461 = vld [vmem:[%s2355 + $0x1a4] sm:$0xf]
        %v2462 = vld [vmem:[%s2355 + $0x1a8] sm:$0xf]
        %v2463 = vld [vmem:[%s2355 + $0x1ac] sm:$0xf]
        %v2464 = vld [vmem:[%s2355 + $0x1b0] sm:$0xf]
        %v2465 = vld [vmem:[%s2355 + $0x1b4] sm:$0xf]
        %v2466 = vld [vmem:[%s2355 + $0x1b8] sm:$0xf]
        %v2467 = vld [vmem:[%s2355 + $0x1bc] sm:$0xf]
        %v2468 = vld [vmem:[%s2355 + $0x1c0] sm:$0xf]
        %v2469 = vld [vmem:[%s2355 + $0x1c4] sm:$0xf]
        %v2470 = vld [vmem:[%s2355 + $0x1c8] sm:$0xf]
        %v2471 = vld [vmem:[%s2355 + $0x1cc] sm:$0xf]
        %v2472 = vld [vmem:[%s2355 + $0x1d0] sm:$0xf]
        %v2473 = vld [vmem:[%s2355 + $0x1d4] sm:$0xf]
        %v2474 = vld [vmem:[%s2355 + $0x1d8] sm:$0xf]
        %v2475 = vld [vmem:[%s2355 + $0x1dc] sm:$0xf]
        %v2476 = vld [vmem:[%s2355 + $0x1e0] sm:$0xf]
        %v2477 = vld [vmem:[%s2355 + $0x1e4] sm:$0xf]
        %v2478 = vld [vmem:[%s2355 + $0x1e8] sm:$0xf]
        %v2479 = vld [vmem:[%s2355 + $0x1ec] sm:$0xf]
        %v2480 = vld [vmem:[%s2355 + $0x1f0] sm:$0xf]
        %v2481 = vld [vmem:[%s2355 + $0x1f4] sm:$0xf]
        %v2482 = vld [vmem:[%s2355 + $0x1f8] sm:$0xf]
        %v2483 = vld [vmem:[%s2355 + $0x1fc] sm:$0xf]
        %v2484 = vld [vmem:[%s2355 + $0x200] sm:$0xf]
        %v2485 = vld [vmem:[%s2355 + $0x204] sm:$0xf]
        %v2486 = vld [vmem:[%s2355 + $0x208] sm:$0xf]
        %v2487 = vld [vmem:[%s2355 + $0x20c] sm:$0xf]
        %v2488 = vld [vmem:[%s2355 + $0x210] sm:$0xf]
        %v2489 = vld [vmem:[%s2355 + $0x214] sm:$0xf]
        %v2490 = vld [vmem:[%s2355 + $0x218] sm:$0xf]
        %v2491 = vld [vmem:[%s2355 + $0x21c] sm:$0xf]
        %v2492 = vld [vmem:[%s2355 + $0x220] sm:$0xf]
        %v2493 = vld [vmem:[%s2355 + $0x224] sm:$0xf]
        %v2494 = vld [vmem:[%s2355 + $0x228] sm:$0xf]
        %v2495 = vld [vmem:[%s2355 + $0x22c] sm:$0xf]
        %v2496 = vld [vmem:[%s2355 + $0x230] sm:$0xf]
        %v2497 = vld [vmem:[%s2355 + $0x234] sm:$0xf]
        %v2498 = vld [vmem:[%s2355 + $0x238] sm:$0xf]
        %v2499 = vld [vmem:[%s2355 + $0x23c] sm:$0xf]
        %v2500 = vld [vmem:[%s2355 + $0x240] sm:$0xf]
        %v2501 = vld [vmem:[%s2355 + $0x244] sm:$0xf]
        %v2502 = vld [vmem:[%s2355 + $0x248] sm:$0xf]
        %v2503 = vld [vmem:[%s2355 + $0x24c] sm:$0xf]
        %v2504 = vld [vmem:[%s2355 + $0x250] sm:$0xf]
        %v2505 = vld [vmem:[%s2355 + $0x254] sm:$0xf]
        %v2506 = vld [vmem:[%s2355 + $0x258] sm:$0xf]
        %v2507 = vld [vmem:[%s2355 + $0x25c] sm:$0xf]
        %v2508 = vld [vmem:[%s2355 + $0x260] sm:$0xf]
        %v2509 = vld [vmem:[%s2355 + $0x264] sm:$0xf]
        %v2510 = vld [vmem:[%s2355 + $0x268] sm:$0xf]
        %v2511 = vld [vmem:[%s2355 + $0x26c] sm:$0xf]
        %v2512 = vld [vmem:[%s2355 + $0x270] sm:$0xf]
        %v2513 = vld [vmem:[%s2355 + $0x274] sm:$0xf]
        %v2514 = vld [vmem:[%s2355 + $0x278] sm:$0xf]
        %v2515 = vld [vmem:[%s2355 + $0x27c] sm:$0xf]
        %v2516 = vld [vmem:[%s2355 + $0x280] sm:$0xf]
        %v2517 = vld [vmem:[%s2355 + $0x284] sm:$0xf]
        %v2518 = vld [vmem:[%s2355 + $0x288] sm:$0xf]
        %v2519 = vld [vmem:[%s2355 + $0x28c] sm:$0xf]
        %v2520 = vld [vmem:[%s2355 + $0x290] sm:$0xf]
        %v2521 = vld [vmem:[%s2355 + $0x294] sm:$0xf]
        %v2522 = vld [vmem:[%s2355 + $0x298] sm:$0xf]
        %v2523 = vld [vmem:[%s2355 + $0x29c] sm:$0xf]
        %v2524 = vld [vmem:[%s2355 + $0x2a0] sm:$0xf]
        %v2525 = vld [vmem:[%s2355 + $0x2a4] sm:$0xf]
        %v2526 = vld [vmem:[%s2355 + $0x2a8] sm:$0xf]
        %v2527 = vld [vmem:[%s2355 + $0x2ac] sm:$0xf]
        %v2528 = vld [vmem:[%s2355 + $0x2b0] sm:$0xf]
        %v2529 = vld [vmem:[%s2355 + $0x2b4] sm:$0xf]
        %v2530 = vld [vmem:[%s2355 + $0x2b8] sm:$0xf]
        %v2531 = vld [vmem:[%s2355 + $0x2bc] sm:$0xf]
        %v2532 = vld [vmem:[%s2355 + $0x2c0] sm:$0xf]
        %v2533 = vld [vmem:[%s2355 + $0x2c4] sm:$0xf]
        %v2534 = vld [vmem:[%s2355 + $0x2c8] sm:$0xf]
        %v2535 = vld [vmem:[%s2355 + $0x2cc] sm:$0xf]
        %v2536 = vld [vmem:[%s2355 + $0x2d0] sm:$0xf]
        %v2537 = vld [vmem:[%s2355 + $0x2d4] sm:$0xf]
        %v2538 = vld [vmem:[%s2355 + $0x2d8] sm:$0xf]
        %v2539 = vld [vmem:[%s2355 + $0x2dc] sm:$0xf]
        %v2540 = vld [vmem:[%s2355 + $0x2e0] sm:$0xf]
        %v2541 = vld [vmem:[%s2355 + $0x2e4] sm:$0xf]
        %v2542 = vld [vmem:[%s2355 + $0x2e8] sm:$0xf]
        %v2543 = vld [vmem:[%s2355 + $0x2ec] sm:$0xf]
        %v2544 = vld [vmem:[%s2355 + $0x2f0] sm:$0xf]
        %v2545 = vld [vmem:[%s2355 + $0x2f4] sm:$0xf]
        %v2546 = vld [vmem:[%s2355 + $0x2f8] sm:$0xf]
        %v2547 = vld [vmem:[%s2355 + $0x2fc] sm:$0xf]
        %v2548 = vld [vmem:[%s2355 + $0x300] sm:$0xf]
        %v2549 = vld [vmem:[%s2355 + $0x304] sm:$0xf]
        %v2550 = vld [vmem:[%s2355 + $0x308] sm:$0xf]
        %v2551 = vld [vmem:[%s2355 + $0x30c] sm:$0xf]
        %v2552 = vld [vmem:[%s2355 + $0x310] sm:$0xf]
        %v2553 = vld [vmem:[%s2355 + $0x314] sm:$0xf]
        %v2554 = vld [vmem:[%s2355 + $0x318] sm:$0xf]
        %v2555 = vld [vmem:[%s2355 + $0x31c] sm:$0xf]
        %v2556 = vld [vmem:[%s2355 + $0x320] sm:$0xf]
        %v2557 = vld [vmem:[%s2355 + $0x324] sm:$0xf]
        %v2558 = vld [vmem:[%s2355 + $0x328] sm:$0xf]
        %v2559 = vld [vmem:[%s2355 + $0x32c] sm:$0xf]
        %v2560 = vld [vmem:[%s2355 + $0x330] sm:$0xf]
        %v2561 = vld [vmem:[%s2355 + $0x334] sm:$0xf]
        %v2562 = vld [vmem:[%s2355 + $0x338] sm:$0xf]
        %v2563 = vld [vmem:[%s2355 + $0x33c] sm:$0xf]
        %v2564 = vld [vmem:[%s2355 + $0x340] sm:$0xf]
        %v2565 = vld [vmem:[%s2355 + $0x344] sm:$0xf]
        %v2566 = vld [vmem:[%s2355 + $0x348] sm:$0xf]
        %v2567 = vld [vmem:[%s2355 + $0x34c] sm:$0xf]
        %v2568 = vld [vmem:[%s2355 + $0x350] sm:$0xf]
        %v2569 = vld [vmem:[%s2355 + $0x354] sm:$0xf]
        %v2570 = vld [vmem:[%s2355 + $0x358] sm:$0xf]
        %v2571 = vld [vmem:[%s2355 + $0x35c] sm:$0xf]
        %v2572 = vld [vmem:[%s2355 + $0x360] sm:$0xf]
        %v2573 = vld [vmem:[%s2355 + $0x364] sm:$0xf]
        %v2574 = vld [vmem:[%s2355 + $0x368] sm:$0xf]
        %v2575 = vld [vmem:[%s2355 + $0x36c] sm:$0xf]
        %v2576 = vld [vmem:[%s2355 + $0x370] sm:$0xf]
        %v2577 = vld [vmem:[%s2355 + $0x374] sm:$0xf]
        %v2578 = vld [vmem:[%s2355 + $0x378] sm:$0xf]
        %v2579 = vld [vmem:[%s2355 + $0x37c] sm:$0xf]
        %v2580 = vld [vmem:[%s2355 + $0x380] sm:$0xf]
        %v2581 = vld [vmem:[%s2355 + $0x384] sm:$0xf]
        %v2582 = vld [vmem:[%s2355 + $0x388] sm:$0xf]
        %v2583 = vld [vmem:[%s2355 + $0x38c] sm:$0xf]
        %v2584 = vld [vmem:[%s2355 + $0x390] sm:$0xf]
        %v2585 = vld [vmem:[%s2355 + $0x394] sm:$0xf]
        %v2586 = vld [vmem:[%s2355 + $0x398] sm:$0xf]
        %v2587 = vld [vmem:[%s2355 + $0x39c] sm:$0xf]
        %v2588 = vld [vmem:[%s2355 + $0x3a0] sm:$0xf]
        %v2589 = vld [vmem:[%s2355 + $0x3a4] sm:$0xf]
        %v2590 = vld [vmem:[%s2355 + $0x3a8] sm:$0xf]
        %v2591 = vld [vmem:[%s2355 + $0x3ac] sm:$0xf]
        %v2592 = vld [vmem:[%s2355 + $0x3b0] sm:$0xf]
        %v2593 = vld [vmem:[%s2355 + $0x3b4] sm:$0xf]
        %v2594 = vld [vmem:[%s2355 + $0x3b8] sm:$0xf]
        %v2595 = vld [vmem:[%s2355 + $0x3bc] sm:$0xf]
        %v2596 = vld [vmem:[%s2355 + $0x3c0] sm:$0xf]
        %v2597 = vld [vmem:[%s2355 + $0x3c4] sm:$0xf]
        %v2598 = vld [vmem:[%s2355 + $0x3c8] sm:$0xf]
        %v2599 = vld [vmem:[%s2355 + $0x3cc] sm:$0xf]
        %v2600 = vld [vmem:[%s2355 + $0x3d0] sm:$0xf]
        %v2601 = vld [vmem:[%s2355 + $0x3d4] sm:$0xf]
        %v2602 = vld [vmem:[%s2355 + $0x3d8] sm:$0xf]
        %v2603 = vld [vmem:[%s2355 + $0x3dc] sm:$0xf]
        %v2604 = vld [vmem:[%s2355 + $0x3e0] sm:$0xf]
        %v2605 = vld [vmem:[%s2355 + $0x3e4] sm:$0xf]
        %v2606 = vld [vmem:[%s2355 + $0x3e8] sm:$0xf]
        %v2607 = vld [vmem:[%s2355 + $0x3ec] sm:$0xf]
        %v2608 = vld [vmem:[%s2355 + $0x3f0] sm:$0xf]
        %v2609 = vld [vmem:[%s2355 + $0x3f4] sm:$0xf]
        %v2610 = vld [vmem:[%s2355 + $0x3f8] sm:$0xf]
        %v2611 = vld [vmem:[%s2355 + $0x3fc] sm:$0xf]
        %v2612 = vpack.c.bf16 %v2337, %v2321
        %v2613 = vpack.c.bf16 %v2338, %v2322
        %v2614 = vpack.c.bf16 %v2339, %v2323
        %v2615 = vpack.c.bf16 %v2340, %v2324
        %v2616 = vpack.c.bf16 %v2341, %v2325
        %v2617 = vpack.c.bf16 %v2342, %v2326
        %v2618 = vpack.c.bf16 %v2343, %v2327
        %v2619 = vpack.c.bf16 %v2344, %v2328
        %v2620 = vpack.c.bf16 %v2345, %v2329
        %v2621 = vpack.c.bf16 %v2346, %v2330
        %v2622 = vpack.c.bf16 %v2347, %v2331
        %v2623 = vpack.c.bf16 %v2348, %v2332
        %v2624 = vpack.c.bf16 %v2349, %v2333
        %v2625 = vpack.c.bf16 %v2350, %v2334
        %v2626 = vpack.c.bf16 %v2351, %v2335
        %v2627 = vpack.c.bf16 %v2352, %v2336
        %s2628 = scalar_lea.vmem %s8, %s37
        %v2629 = vld [vmem:[%s2628] sm:$0x1]
        %v2631 = vlaneseq
        %v2632 = vshrl.u32 %v2631, 7
        %v2633 = vsub.s32 0, %v2632
        %v2634 = vrot.slane %v2629, %v2633
        %v2892 = vunpack.c.l.b16 %v2356
        %v2893 = vunpack.c.l.b16 %v2357
        %v2894 = vunpack.c.l.b16 %v2358
        %v2895 = vunpack.c.l.b16 %v2359
        %v2896 = vunpack.c.l.b16 %v2360
        %v2897 = vunpack.c.l.b16 %v2361
        %v2898 = vunpack.c.l.b16 %v2362
        %v2899 = vunpack.c.l.b16 %v2363
        %v2900 = vunpack.c.l.b16 %v2364
        %v2901 = vunpack.c.l.b16 %v2365
        %v2902 = vunpack.c.l.b16 %v2366
        %v2903 = vunpack.c.l.b16 %v2367
        %v2904 = vunpack.c.l.b16 %v2368
        %v2905 = vunpack.c.l.b16 %v2369
        %v2906 = vunpack.c.l.b16 %v2370
        %v2907 = vunpack.c.l.b16 %v2371
        %v2908 = vunpack.c.l.b16 %v2372
        %v2909 = vunpack.c.l.b16 %v2373
        %v2910 = vunpack.c.l.b16 %v2374
        %v2911 = vunpack.c.l.b16 %v2375
        %v2912 = vunpack.c.l.b16 %v2376
        %v2913 = vunpack.c.l.b16 %v2377
        %v2914 = vunpack.c.l.b16 %v2378
        %v2915 = vunpack.c.l.b16 %v2379
        %v2916 = vunpack.c.l.b16 %v2380
        %v2917 = vunpack.c.l.b16 %v2381
        %v2918 = vunpack.c.l.b16 %v2382
        %v2919 = vunpack.c.l.b16 %v2383
        %v2920 = vunpack.c.l.b16 %v2384
        %v2921 = vunpack.c.l.b16 %v2385
        %v2922 = vunpack.c.l.b16 %v2386
        %v2923 = vunpack.c.l.b16 %v2387
        %v2924 = vunpack.c.l.b16 %v2388
        %v2925 = vunpack.c.l.b16 %v2389
        %v2926 = vunpack.c.l.b16 %v2390
        %v2927 = vunpack.c.l.b16 %v2391
        %v2928 = vunpack.c.l.b16 %v2392
        %v2929 = vunpack.c.l.b16 %v2393
        %v2930 = vunpack.c.l.b16 %v2394
        %v2931 = vunpack.c.l.b16 %v2395
        %v2932 = vunpack.c.l.b16 %v2396
        %v2933 = vunpack.c.l.b16 %v2397
        %v2934 = vunpack.c.l.b16 %v2398
        %v2935 = vunpack.c.l.b16 %v2399
        %v2936 = vunpack.c.l.b16 %v2400
        %v2937 = vunpack.c.l.b16 %v2401
        %v2938 = vunpack.c.l.b16 %v2402
        %v2939 = vunpack.c.l.b16 %v2403
        %v2940 = vunpack.c.l.b16 %v2404
        %v2941 = vunpack.c.l.b16 %v2405
        %v2942 = vunpack.c.l.b16 %v2406
        %v2943 = vunpack.c.l.b16 %v2407
        %v2944 = vunpack.c.l.b16 %v2408
        %v2945 = vunpack.c.l.b16 %v2409
        %v2946 = vunpack.c.l.b16 %v2410
        %v2947 = vunpack.c.l.b16 %v2411
        %v2948 = vunpack.c.l.b16 %v2412
        %v2949 = vunpack.c.l.b16 %v2413
        %v2950 = vunpack.c.l.b16 %v2414
        %v2951 = vunpack.c.l.b16 %v2415
        %v2952 = vunpack.c.l.b16 %v2416
        %v2953 = vunpack.c.l.b16 %v2417
        %v2954 = vunpack.c.l.b16 %v2418
        %v2955 = vunpack.c.l.b16 %v2419
        %v2956 = vunpack.c.l.b16 %v2420
        %v2957 = vunpack.c.l.b16 %v2421
        %v2958 = vunpack.c.l.b16 %v2422
        %v2959 = vunpack.c.l.b16 %v2423
        %v2960 = vunpack.c.l.b16 %v2424
        %v2961 = vunpack.c.l.b16 %v2425
        %v2962 = vunpack.c.l.b16 %v2426
        %v2963 = vunpack.c.l.b16 %v2427
        %v2964 = vunpack.c.l.b16 %v2428
        %v2965 = vunpack.c.l.b16 %v2429
        %v2966 = vunpack.c.l.b16 %v2430
        %v2967 = vunpack.c.l.b16 %v2431
        %v2968 = vunpack.c.l.b16 %v2432
        %v2969 = vunpack.c.l.b16 %v2433
        %v2970 = vunpack.c.l.b16 %v2434
        %v2971 = vunpack.c.l.b16 %v2435
        %v2972 = vunpack.c.l.b16 %v2436
        %v2973 = vunpack.c.l.b16 %v2437
        %v2974 = vunpack.c.l.b16 %v2438
        %v2975 = vunpack.c.l.b16 %v2439
        %v2976 = vunpack.c.l.b16 %v2440
        %v2977 = vunpack.c.l.b16 %v2441
        %v2978 = vunpack.c.l.b16 %v2442
        %v2979 = vunpack.c.l.b16 %v2443
        %v2980 = vunpack.c.l.b16 %v2444
        %v2981 = vunpack.c.l.b16 %v2445
        %v2982 = vunpack.c.l.b16 %v2446
        %v2983 = vunpack.c.l.b16 %v2447
        %v2984 = vunpack.c.l.b16 %v2448
        %v2985 = vunpack.c.l.b16 %v2449
        %v2986 = vunpack.c.l.b16 %v2450
        %v2987 = vunpack.c.l.b16 %v2451
        %v2988 = vunpack.c.l.b16 %v2452
        %v2989 = vunpack.c.l.b16 %v2453
        %v2990 = vunpack.c.l.b16 %v2454
        %v2991 = vunpack.c.l.b16 %v2455
        %v2992 = vunpack.c.l.b16 %v2456
        %v2993 = vunpack.c.l.b16 %v2457
        %v2994 = vunpack.c.l.b16 %v2458
        %v2995 = vunpack.c.l.b16 %v2459
        %v2996 = vunpack.c.l.b16 %v2460
        %v2997 = vunpack.c.l.b16 %v2461
        %v2998 = vunpack.c.l.b16 %v2462
        %v2999 = vunpack.c.l.b16 %v2463
        %v3000 = vunpack.c.l.b16 %v2464
        %v3001 = vunpack.c.l.b16 %v2465
        %v3002 = vunpack.c.l.b16 %v2466
        %v3003 = vunpack.c.l.b16 %v2467
        %v3004 = vunpack.c.l.b16 %v2468
        %v3005 = vunpack.c.l.b16 %v2469
        %v3006 = vunpack.c.l.b16 %v2470
        %v3007 = vunpack.c.l.b16 %v2471
        %v3008 = vunpack.c.l.b16 %v2472
        %v3009 = vunpack.c.l.b16 %v2473
        %v3010 = vunpack.c.l.b16 %v2474
        %v3011 = vunpack.c.l.b16 %v2475
        %v3012 = vunpack.c.l.b16 %v2476
        %v3013 = vunpack.c.l.b16 %v2477
        %v3014 = vunpack.c.l.b16 %v2478
        %v3015 = vunpack.c.l.b16 %v2479
        %v3016 = vunpack.c.l.b16 %v2480
        %v3017 = vunpack.c.l.b16 %v2481
        %v3018 = vunpack.c.l.b16 %v2482
        %v3019 = vunpack.c.l.b16 %v2483
        %v3020 = vunpack.c.l.b16 %v2484
        %v3021 = vunpack.c.l.b16 %v2485
        %v3022 = vunpack.c.l.b16 %v2486
        %v3023 = vunpack.c.l.b16 %v2487
        %v3024 = vunpack.c.l.b16 %v2488
        %v3025 = vunpack.c.l.b16 %v2489
        %v3026 = vunpack.c.l.b16 %v2490
        %v3027 = vunpack.c.l.b16 %v2491
        %v3028 = vunpack.c.l.b16 %v2492
        %v3029 = vunpack.c.l.b16 %v2493
        %v3030 = vunpack.c.l.b16 %v2494
        %v3031 = vunpack.c.l.b16 %v2495
        %v3032 = vunpack.c.l.b16 %v2496
        %v3033 = vunpack.c.l.b16 %v2497
        %v3034 = vunpack.c.l.b16 %v2498
        %v3035 = vunpack.c.l.b16 %v2499
        %v3036 = vunpack.c.l.b16 %v2500
        %v3037 = vunpack.c.l.b16 %v2501
        %v3038 = vunpack.c.l.b16 %v2502
        %v3039 = vunpack.c.l.b16 %v2503
        %v3040 = vunpack.c.l.b16 %v2504
        %v3041 = vunpack.c.l.b16 %v2505
        %v3042 = vunpack.c.l.b16 %v2506
        %v3043 = vunpack.c.l.b16 %v2507
        %v3044 = vunpack.c.l.b16 %v2508
        %v3045 = vunpack.c.l.b16 %v2509
        %v3046 = vunpack.c.l.b16 %v2510
        %v3047 = vunpack.c.l.b16 %v2511
        %v3048 = vunpack.c.l.b16 %v2512
        %v3049 = vunpack.c.l.b16 %v2513
        %v3050 = vunpack.c.l.b16 %v2514
        %v3051 = vunpack.c.l.b16 %v2515
        %v3052 = vunpack.c.l.b16 %v2516
        %v3053 = vunpack.c.l.b16 %v2517
        %v3054 = vunpack.c.l.b16 %v2518
        %v3055 = vunpack.c.l.b16 %v2519
        %v3056 = vunpack.c.l.b16 %v2520
        %v3057 = vunpack.c.l.b16 %v2521
        %v3058 = vunpack.c.l.b16 %v2522
        %v3059 = vunpack.c.l.b16 %v2523
        %v3060 = vunpack.c.l.b16 %v2524
        %v3061 = vunpack.c.l.b16 %v2525
        %v3062 = vunpack.c.l.b16 %v2526
        %v3063 = vunpack.c.l.b16 %v2527
        %v3064 = vunpack.c.l.b16 %v2528
        %v3065 = vunpack.c.l.b16 %v2529
        %v3066 = vunpack.c.l.b16 %v2530
        %v3067 = vunpack.c.l.b16 %v2531
        %v3068 = vunpack.c.l.b16 %v2532
        %v3069 = vunpack.c.l.b16 %v2533
        %v3070 = vunpack.c.l.b16 %v2534
        %v3071 = vunpack.c.l.b16 %v2535
        %v3072 = vunpack.c.l.b16 %v2536
        %v3073 = vunpack.c.l.b16 %v2537
        %v3074 = vunpack.c.l.b16 %v2538
        %v3075 = vunpack.c.l.b16 %v2539
        %v3076 = vunpack.c.l.b16 %v2540
        %v3077 = vunpack.c.l.b16 %v2541
        %v3078 = vunpack.c.l.b16 %v2542
        %v3079 = vunpack.c.l.b16 %v2543
        %v3080 = vunpack.c.l.b16 %v2544
        %v3081 = vunpack.c.l.b16 %v2545
        %v3082 = vunpack.c.l.b16 %v2546
        %v3083 = vunpack.c.l.b16 %v2547
        %v3084 = vunpack.c.l.b16 %v2548
        %v3085 = vunpack.c.l.b16 %v2549
        %v3086 = vunpack.c.l.b16 %v2550
        %v3087 = vunpack.c.l.b16 %v2551
        %v3088 = vunpack.c.l.b16 %v2552
        %v3089 = vunpack.c.l.b16 %v2553
        %v3090 = vunpack.c.l.b16 %v2554
        %v3091 = vunpack.c.l.b16 %v2555
        %v3092 = vunpack.c.l.b16 %v2556
        %v3093 = vunpack.c.l.b16 %v2557
        %v3094 = vunpack.c.l.b16 %v2558
        %v3095 = vunpack.c.l.b16 %v2559
        %v3096 = vunpack.c.l.b16 %v2560
        %v3097 = vunpack.c.l.b16 %v2561
        %v3098 = vunpack.c.l.b16 %v2562
        %v3099 = vunpack.c.l.b16 %v2563
        %v3100 = vunpack.c.l.b16 %v2564
        %v3101 = vunpack.c.l.b16 %v2565
        %v3102 = vunpack.c.l.b16 %v2566
        %v3103 = vunpack.c.l.b16 %v2567
        %v3104 = vunpack.c.l.b16 %v2568
        %v3105 = vunpack.c.l.b16 %v2569
        %v3106 = vunpack.c.l.b16 %v2570
        %v3107 = vunpack.c.l.b16 %v2571
        %v3108 = vunpack.c.l.b16 %v2572
        %v3109 = vunpack.c.l.b16 %v2573
        %v3110 = vunpack.c.l.b16 %v2574
        %v3111 = vunpack.c.l.b16 %v2575
        %v3112 = vunpack.c.l.b16 %v2576
        %v3113 = vunpack.c.l.b16 %v2577
        %v3114 = vunpack.c.l.b16 %v2578
        %v3115 = vunpack.c.l.b16 %v2579
        %v3116 = vunpack.c.l.b16 %v2580
        %v3117 = vunpack.c.l.b16 %v2581
        %v3118 = vunpack.c.l.b16 %v2582
        %v3119 = vunpack.c.l.b16 %v2583
        %v3120 = vunpack.c.l.b16 %v2584
        %v3121 = vunpack.c.l.b16 %v2585
        %v3122 = vunpack.c.l.b16 %v2586
        %v3123 = vunpack.c.l.b16 %v2587
        %v3124 = vunpack.c.l.b16 %v2588
        %v3125 = vunpack.c.l.b16 %v2589
        %v3126 = vunpack.c.l.b16 %v2590
        %v3127 = vunpack.c.l.b16 %v2591
        %v3128 = vunpack.c.l.b16 %v2592
        %v3129 = vunpack.c.l.b16 %v2593
        %v3130 = vunpack.c.l.b16 %v2594
        %v3131 = vunpack.c.l.b16 %v2595
        %v3132 = vunpack.c.l.b16 %v2596
        %v3133 = vunpack.c.l.b16 %v2597
        %v3134 = vunpack.c.l.b16 %v2598
        %v3135 = vunpack.c.l.b16 %v2599
        %v3136 = vunpack.c.l.b16 %v2600
        %v3137 = vunpack.c.l.b16 %v2601
        %v3138 = vunpack.c.l.b16 %v2602
        %v3139 = vunpack.c.l.b16 %v2603
        %v3140 = vunpack.c.l.b16 %v2604
        %v3141 = vunpack.c.l.b16 %v2605
        %v3142 = vunpack.c.l.b16 %v2606
        %v3143 = vunpack.c.l.b16 %v2607
        %v3144 = vunpack.c.l.b16 %v2608
        %v3145 = vunpack.c.l.b16 %v2609
        %v3146 = vunpack.c.l.b16 %v2610
        %v3147 = vunpack.c.l.b16 %v2611
        %v3148 = vpack.c.b16 %v2893, %v2892
        %v3149 = vpack.c.b16 %v2895, %v2894
        %v3150 = vpack.c.b16 %v2897, %v2896
        %v3151 = vpack.c.b16 %v2899, %v2898
        %v3152 = vpack.c.b16 %v2901, %v2900
        %v3153 = vpack.c.b16 %v2903, %v2902
        %v3154 = vpack.c.b16 %v2905, %v2904
        %v3155 = vpack.c.b16 %v2907, %v2906
        %v3156 = vpack.c.b16 %v2909, %v2908
        %v3157 = vpack.c.b16 %v2911, %v2910
        %v3158 = vpack.c.b16 %v2913, %v2912
        %v3159 = vpack.c.b16 %v2915, %v2914
        %v3160 = vpack.c.b16 %v2917, %v2916
        %v3161 = vpack.c.b16 %v2919, %v2918
        %v3162 = vpack.c.b16 %v2921, %v2920
        %v3163 = vpack.c.b16 %v2923, %v2922
        %v3164 = vpack.c.b16 %v2925, %v2924
        %v3165 = vpack.c.b16 %v2927, %v2926
        %v3166 = vpack.c.b16 %v2929, %v2928
        %v3167 = vpack.c.b16 %v2931, %v2930
        %v3168 = vpack.c.b16 %v2933, %v2932
        %v3169 = vpack.c.b16 %v2935, %v2934
        %v3170 = vpack.c.b16 %v2937, %v2936
        %v3171 = vpack.c.b16 %v2939, %v2938
        %v3172 = vpack.c.b16 %v2941, %v2940
        %v3173 = vpack.c.b16 %v2943, %v2942
        %v3174 = vpack.c.b16 %v2945, %v2944
        %v3175 = vpack.c.b16 %v2947, %v2946
        %v3176 = vpack.c.b16 %v2949, %v2948
        %v3177 = vpack.c.b16 %v2951, %v2950
        %v3178 = vpack.c.b16 %v2953, %v2952
        %v3179 = vpack.c.b16 %v2955, %v2954
        %v3180 = vpack.c.b16 %v2957, %v2956
        %v3181 = vpack.c.b16 %v2959, %v2958
        %v3182 = vpack.c.b16 %v2961, %v2960
        %v3183 = vpack.c.b16 %v2963, %v2962
        %v3184 = vpack.c.b16 %v2965, %v2964
        %v3185 = vpack.c.b16 %v2967, %v2966
        %v3186 = vpack.c.b16 %v2969, %v2968
        %v3187 = vpack.c.b16 %v2971, %v2970
        %v3188 = vpack.c.b16 %v2973, %v2972
        %v3189 = vpack.c.b16 %v2975, %v2974
        %v3190 = vpack.c.b16 %v2977, %v2976
        %v3191 = vpack.c.b16 %v2979, %v2978
        %v3192 = vpack.c.b16 %v2981, %v2980
        %v3193 = vpack.c.b16 %v2983, %v2982
        %v3194 = vpack.c.b16 %v2985, %v2984
        %v3195 = vpack.c.b16 %v2987, %v2986
        %v3196 = vpack.c.b16 %v2989, %v2988
        %v3197 = vpack.c.b16 %v2991, %v2990
        %v3198 = vpack.c.b16 %v2993, %v2992
        %v3199 = vpack.c.b16 %v2995, %v2994
        %v3200 = vpack.c.b16 %v2997, %v2996
        %v3201 = vpack.c.b16 %v2999, %v2998
        %v3202 = vpack.c.b16 %v3001, %v3000
        %v3203 = vpack.c.b16 %v3003, %v3002
        %v3204 = vpack.c.b16 %v3005, %v3004
        %v3205 = vpack.c.b16 %v3007, %v3006
        %v3206 = vpack.c.b16 %v3009, %v3008
        %v3207 = vpack.c.b16 %v3011, %v3010
        %v3208 = vpack.c.b16 %v3013, %v3012
        %v3209 = vpack.c.b16 %v3015, %v3014
        %v3210 = vpack.c.b16 %v3017, %v3016
        %v3211 = vpack.c.b16 %v3019, %v3018
        %v3212 = vpack.c.b16 %v3021, %v3020
        %v3213 = vpack.c.b16 %v3023, %v3022
        %v3214 = vpack.c.b16 %v3025, %v3024
        %v3215 = vpack.c.b16 %v3027, %v3026
        %v3216 = vpack.c.b16 %v3029, %v3028
        %v3217 = vpack.c.b16 %v3031, %v3030
        %v3218 = vpack.c.b16 %v3033, %v3032
        %v3219 = vpack.c.b16 %v3035, %v3034
        %v3220 = vpack.c.b16 %v3037, %v3036
        %v3221 = vpack.c.b16 %v3039, %v3038
        %v3222 = vpack.c.b16 %v3041, %v3040
        %v3223 = vpack.c.b16 %v3043, %v3042
        %v3224 = vpack.c.b16 %v3045, %v3044
        %v3225 = vpack.c.b16 %v3047, %v3046
        %v3226 = vpack.c.b16 %v3049, %v3048
        %v3227 = vpack.c.b16 %v3051, %v3050
        %v3228 = vpack.c.b16 %v3053, %v3052
        %v3229 = vpack.c.b16 %v3055, %v3054
        %v3230 = vpack.c.b16 %v3057, %v3056
        %v3231 = vpack.c.b16 %v3059, %v3058
        %v3232 = vpack.c.b16 %v3061, %v3060
        %v3233 = vpack.c.b16 %v3063, %v3062
        %v3234 = vpack.c.b16 %v3065, %v3064
        %v3235 = vpack.c.b16 %v3067, %v3066
        %v3236 = vpack.c.b16 %v3069, %v3068
        %v3237 = vpack.c.b16 %v3071, %v3070
        %v3238 = vpack.c.b16 %v3073, %v3072
        %v3239 = vpack.c.b16 %v3075, %v3074
        %v3240 = vpack.c.b16 %v3077, %v3076
        %v3241 = vpack.c.b16 %v3079, %v3078
        %v3242 = vpack.c.b16 %v3081, %v3080
        %v3243 = vpack.c.b16 %v3083, %v3082
        %v3244 = vpack.c.b16 %v3085, %v3084
        %v3245 = vpack.c.b16 %v3087, %v3086
        %v3246 = vpack.c.b16 %v3089, %v3088
        %v3247 = vpack.c.b16 %v3091, %v3090
        %v3248 = vpack.c.b16 %v3093, %v3092
        %v3249 = vpack.c.b16 %v3095, %v3094
        %v3250 = vpack.c.b16 %v3097, %v3096
        %v3251 = vpack.c.b16 %v3099, %v3098
        %v3252 = vpack.c.b16 %v3101, %v3100
        %v3253 = vpack.c.b16 %v3103, %v3102
        %v3254 = vpack.c.b16 %v3105, %v3104
        %v3255 = vpack.c.b16 %v3107, %v3106
        %v3256 = vpack.c.b16 %v3109, %v3108
        %v3257 = vpack.c.b16 %v3111, %v3110
        %v3258 = vpack.c.b16 %v3113, %v3112
        %v3259 = vpack.c.b16 %v3115, %v3114
        %v3260 = vpack.c.b16 %v3117, %v3116
        %v3261 = vpack.c.b16 %v3119, %v3118
        %v3262 = vpack.c.b16 %v3121, %v3120
        %v3263 = vpack.c.b16 %v3123, %v3122
        %v3264 = vpack.c.b16 %v3125, %v3124
        %v3265 = vpack.c.b16 %v3127, %v3126
        %v3266 = vpack.c.b16 %v3129, %v3128
        %v3267 = vpack.c.b16 %v3131, %v3130
        %v3268 = vpack.c.b16 %v3133, %v3132
        %v3269 = vpack.c.b16 %v3135, %v3134
        %v3270 = vpack.c.b16 %v3137, %v3136
        %v3271 = vpack.c.b16 %v3139, %v3138
        %v3272 = vpack.c.b16 %v3141, %v3140
        %v3273 = vpack.c.b16 %v3143, %v3142
        %v3274 = vpack.c.b16 %v3145, %v3144
        %v3275 = vpack.c.b16 %v3147, %v3146
        %3404 = vmatprep.subr.bf16.mxu0 0
        %3405 = vmatpush1.bf16.msra.mxu0 %v3155
        %3406 = vmatprep.subr.bf16.mxu0 0
        %3407 = vmatpush1.bf16.msra.mxu0 %v3154
        %3408 = vmatprep.subr.bf16.mxu0 0
        %3409 = vmatpush1.bf16.msra.mxu0 %v3153
        %3410 = vmatprep.subr.bf16.mxu0 0
        %3411 = vmatpush1.bf16.msra.mxu0 %v3152
        %3412 = vmatprep.subr.bf16.mxu0 0
        %3413 = vmatpush1.bf16.msra.mxu0 %v3151
        %3414 = vmatprep.subr.bf16.mxu0 0
        %3415 = vmatpush1.bf16.msra.mxu0 %v3150
        %3416 = vmatprep.subr.bf16.mxu0 0
        %3417 = vmatpush1.bf16.msra.mxu0 %v3149
        %3418 = vmatprep.subr.bf16.mxu0 0
        %3419 = vmatpush1.bf16.msra.mxu0 %v3148
        %3420 = vmatprep.subr.bf16.mxu0 0
        %3421 = vmatpush2.bf16.msra.mxu0 %v3163
        %3422 = vmatprep.subr.bf16.mxu0 0
        %3423 = vmatpush2.bf16.msra.mxu0 %v3162
        %3424 = vmatprep.subr.bf16.mxu0 0
        %3425 = vmatpush2.bf16.msra.mxu0 %v3161
        %3426 = vmatprep.subr.bf16.mxu0 0
        %3427 = vmatpush2.bf16.msra.mxu0 %v3160
        %3428 = vmatprep.subr.bf16.mxu0 0
        %3429 = vmatpush2.bf16.msra.mxu0 %v3159
        %3430 = vmatprep.subr.bf16.mxu0 0
        %3431 = vmatpush2.bf16.msra.mxu0 %v3158
        %3432 = vmatprep.subr.bf16.mxu0 0
        %3433 = vmatpush2.bf16.msra.mxu0 %v3157
        %3434 = vmatprep.subr.bf16.mxu0 0
        %3435 = vmatpush2.bf16.msra.mxu0 %v3156
        %3436 = vmatprep.mubr.bf16.mxu0 %v2613
        %3437 = vmatmul.mubr.bf16.gmra.mxu0 %v2612
        %v3438 = vpop.f32.mrf.mxu0
        %v3439 = vadd.f32 %v2634, %v3438
        %v3440 = vpop.f32.mrf.mxu0
        %v3441 = vpop.f32.mrf.mxu0
        %v3442 = vadd.f32 %v2634, %v3441
        %v3443 = vpop.f32.mrf.mxu0
        %3444 = vdwg.mxu0
        %3445 = vmatprep.subr.bf16.mxu0 0
        %3446 = vmatpush1.bf16.msra.mxu0 %v3171
        %3447 = vmatprep.subr.bf16.mxu0 0
        %3448 = vmatpush1.bf16.msra.mxu0 %v3170
        %3449 = vmatprep.subr.bf16.mxu0 0
        %3450 = vmatpush1.bf16.msra.mxu0 %v3169
        %3451 = vmatprep.subr.bf16.mxu0 0
        %3452 = vmatpush1.bf16.msra.mxu0 %v3168
        %3453 = vmatprep.subr.bf16.mxu0 0
        %3454 = vmatpush1.bf16.msra.mxu0 %v3167
        %3455 = vmatprep.subr.bf16.mxu0 0
        %3456 = vmatpush1.bf16.msra.mxu0 %v3166
        %3457 = vmatprep.subr.bf16.mxu0 0
        %3458 = vmatpush1.bf16.msra.mxu0 %v3165
        %3459 = vmatprep.subr.bf16.mxu0 0
        %3460 = vmatpush1.bf16.msra.mxu0 %v3164
        %3461 = vmatprep.subr.bf16.mxu0 0
        %3462 = vmatpush2.bf16.msra.mxu0 %v3179
        %3463 = vmatprep.subr.bf16.mxu0 0
        %3464 = vmatpush2.bf16.msra.mxu0 %v3178
        %3465 = vmatprep.subr.bf16.mxu0 0
        %3466 = vmatpush2.bf16.msra.mxu0 %v3177
        %3467 = vmatprep.subr.bf16.mxu0 0
        %3468 = vmatpush2.bf16.msra.mxu0 %v3176
        %3469 = vmatprep.subr.bf16.mxu0 0
        %3470 = vmatpush2.bf16.msra.mxu0 %v3175
        %3471 = vmatprep.subr.bf16.mxu0 0
        %3472 = vmatpush2.bf16.msra.mxu0 %v3174
        %3473 = vmatprep.subr.bf16.mxu0 0
        %3474 = vmatpush2.bf16.msra.mxu0 %v3173
        %3475 = vmatprep.subr.bf16.mxu0 0
        %3476 = vmatpush2.bf16.msra.mxu0 %v3172
        %3477 = vmatprep.mubr.bf16.mxu0 %v2615
        %3478 = vmatmul.mubr.bf16.gmra.mxu0 %v2614
        %v3479 = vpop.f32.mrf.mxu0
        %v3480 = vadd.f32 %v3439, %v3479
        %v3481 = vpop.f32.mrf.mxu0
        %v3482 = vpop.f32.mrf.mxu0
        %v3483 = vadd.f32 %v3442, %v3482
        %v3484 = vpop.f32.mrf.mxu0
        %3485 = vdwg.mxu0
        %3486 = vmatprep.subr.bf16.mxu0 0
        %3487 = vmatpush1.bf16.msra.mxu0 %v3187
        %3488 = vmatprep.subr.bf16.mxu0 0
        %3489 = vmatpush1.bf16.msra.mxu0 %v3186
        %3490 = vmatprep.subr.bf16.mxu0 0
        %3491 = vmatpush1.bf16.msra.mxu0 %v3185
        %3492 = vmatprep.subr.bf16.mxu0 0
        %3493 = vmatpush1.bf16.msra.mxu0 %v3184
        %3494 = vmatprep.subr.bf16.mxu0 0
        %3495 = vmatpush1.bf16.msra.mxu0 %v3183
        %3496 = vmatprep.subr.bf16.mxu0 0
        %3497 = vmatpush1.bf16.msra.mxu0 %v3182
        %3498 = vmatprep.subr.bf16.mxu0 0
        %3499 = vmatpush1.bf16.msra.mxu0 %v3181
        %3500 = vmatprep.subr.bf16.mxu0 0
        %3501 = vmatpush1.bf16.msra.mxu0 %v3180
        %3502 = vmatprep.subr.bf16.mxu0 0
        %3503 = vmatpush2.bf16.msra.mxu0 %v3195
        %3504 = vmatprep.subr.bf16.mxu0 0
        %3505 = vmatpush2.bf16.msra.mxu0 %v3194
        %3506 = vmatprep.subr.bf16.mxu0 0
        %3507 = vmatpush2.bf16.msra.mxu0 %v3193
        %3508 = vmatprep.subr.bf16.mxu0 0
        %3509 = vmatpush2.bf16.msra.mxu0 %v3192
        %3510 = vmatprep.subr.bf16.mxu0 0
        %3511 = vmatpush2.bf16.msra.mxu0 %v3191
        %3512 = vmatprep.subr.bf16.mxu0 0
        %3513 = vmatpush2.bf16.msra.mxu0 %v3190
        %3514 = vmatprep.subr.bf16.mxu0 0
        %3515 = vmatpush2.bf16.msra.mxu0 %v3189
        %3516 = vmatprep.subr.bf16.mxu0 0
        %3517 = vmatpush2.bf16.msra.mxu0 %v3188
        %3518 = vmatprep.mubr.bf16.mxu0 %v2617
        %3519 = vmatmul.mubr.bf16.gmra.mxu0 %v2616
        %v3520 = vpop.f32.mrf.mxu0
        %v3521 = vadd.f32 %v3480, %v3520
        %v3522 = vpop.f32.mrf.mxu0
        %v3523 = vpop.f32.mrf.mxu0
        %v3524 = vadd.f32 %v3483, %v3523
        %v3525 = vpop.f32.mrf.mxu0
        %3526 = vdwg.mxu0
        %3527 = vmatprep.subr.bf16.mxu0 0
        %3528 = vmatpush1.bf16.msra.mxu0 %v3203
        %3529 = vmatprep.subr.bf16.mxu0 0
        %3530 = vmatpush1.bf16.msra.mxu0 %v3202
        %3531 = vmatprep.subr.bf16.mxu0 0
        %3532 = vmatpush1.bf16.msra.mxu0 %v3201
        %3533 = vmatprep.subr.bf16.mxu0 0
        %3534 = vmatpush1.bf16.msra.mxu0 %v3200
        %3535 = vmatprep.subr.bf16.mxu0 0
        %3536 = vmatpush1.bf16.msra.mxu0 %v3199
        %3537 = vmatprep.subr.bf16.mxu0 0
        %3538 = vmatpush1.bf16.msra.mxu0 %v3198
        %3539 = vmatprep.subr.bf16.mxu0 0
        %3540 = vmatpush1.bf16.msra.mxu0 %v3197
        %3541 = vmatprep.subr.bf16.mxu0 0
        %3542 = vmatpush1.bf16.msra.mxu0 %v3196
        %3543 = vmatprep.subr.bf16.mxu0 0
        %3544 = vmatpush2.bf16.msra.mxu0 %v3211
        %3545 = vmatprep.subr.bf16.mxu0 0
        %3546 = vmatpush2.bf16.msra.mxu0 %v3210
        %3547 = vmatprep.subr.bf16.mxu0 0
        %3548 = vmatpush2.bf16.msra.mxu0 %v3209
        %3549 = vmatprep.subr.bf16.mxu0 0
        %3550 = vmatpush2.bf16.msra.mxu0 %v3208
        %3551 = vmatprep.subr.bf16.mxu0 0
        %3552 = vmatpush2.bf16.msra.mxu0 %v3207
        %3553 = vmatprep.subr.bf16.mxu0 0
        %3554 = vmatpush2.bf16.msra.mxu0 %v3206
        %3555 = vmatprep.subr.bf16.mxu0 0
        %3556 = vmatpush2.bf16.msra.mxu0 %v3205
        %3557 = vmatprep.subr.bf16.mxu0 0
        %3558 = vmatpush2.bf16.msra.mxu0 %v3204
        %3559 = vmatprep.mubr.bf16.mxu0 %v2619
        %3560 = vmatmul.mubr.bf16.gmra.mxu0 %v2618
        %v3561 = vpop.f32.mrf.mxu0
        %v3562 = vadd.f32 %v3521, %v3561
        %v3563 = vpop.f32.mrf.mxu0
        %v3564 = vpop.f32.mrf.mxu0
        %v3565 = vadd.f32 %v3524, %v3564
        %v3566 = vpop.f32.mrf.mxu0
        %3567 = vdwg.mxu0
        %3568 = vmatprep.subr.bf16.mxu0 0
        %3569 = vmatpush1.bf16.msra.mxu0 %v3219
        %3570 = vmatprep.subr.bf16.mxu0 0
        %3571 = vmatpush1.bf16.msra.mxu0 %v3218
        %3572 = vmatprep.subr.bf16.mxu0 0
        %3573 = vmatpush1.bf16.msra.mxu0 %v3217
        %3574 = vmatprep.subr.bf16.mxu0 0
        %3575 = vmatpush1.bf16.msra.mxu0 %v3216
        %3576 = vmatprep.subr.bf16.mxu0 0
        %3577 = vmatpush1.bf16.msra.mxu0 %v3215
        %3578 = vmatprep.subr.bf16.mxu0 0
        %3579 = vmatpush1.bf16.msra.mxu0 %v3214
        %3580 = vmatprep.subr.bf16.mxu0 0
        %3581 = vmatpush1.bf16.msra.mxu0 %v3213
        %3582 = vmatprep.subr.bf16.mxu0 0
        %3583 = vmatpush1.bf16.msra.mxu0 %v3212
        %3584 = vmatprep.subr.bf16.mxu0 0
        %3585 = vmatpush2.bf16.msra.mxu0 %v3227
        %3586 = vmatprep.subr.bf16.mxu0 0
        %3587 = vmatpush2.bf16.msra.mxu0 %v3226
        %3588 = vmatprep.subr.bf16.mxu0 0
        %3589 = vmatpush2.bf16.msra.mxu0 %v3225
        %3590 = vmatprep.subr.bf16.mxu0 0
        %3591 = vmatpush2.bf16.msra.mxu0 %v3224
        %3592 = vmatprep.subr.bf16.mxu0 0
        %3593 = vmatpush2.bf16.msra.mxu0 %v3223
        %3594 = vmatprep.subr.bf16.mxu0 0
        %3595 = vmatpush2.bf16.msra.mxu0 %v3222
        %3596 = vmatprep.subr.bf16.mxu0 0
        %3597 = vmatpush2.bf16.msra.mxu0 %v3221
        %3598 = vmatprep.subr.bf16.mxu0 0
        %3599 = vmatpush2.bf16.msra.mxu0 %v3220
        %3600 = vmatprep.mubr.bf16.mxu0 %v2621
        %3601 = vmatmul.mubr.bf16.gmra.mxu0 %v2620
        %v3602 = vpop.f32.mrf.mxu0
        %v3603 = vadd.f32 %v3562, %v3602
        %v3604 = vpop.f32.mrf.mxu0
        %v3605 = vpop.f32.mrf.mxu0
        %v3606 = vadd.f32 %v3565, %v3605
        %v3607 = vpop.f32.mrf.mxu0
        %3608 = vdwg.mxu0
        %3609 = vmatprep.subr.bf16.mxu0 0
        %3610 = vmatpush1.bf16.msra.mxu0 %v3235
        %3611 = vmatprep.subr.bf16.mxu0 0
        %3612 = vmatpush1.bf16.msra.mxu0 %v3234
        %3613 = vmatprep.subr.bf16.mxu0 0
        %3614 = vmatpush1.bf16.msra.mxu0 %v3233
        %3615 = vmatprep.subr.bf16.mxu0 0
        %3616 = vmatpush1.bf16.msra.mxu0 %v3232
        %3617 = vmatprep.subr.bf16.mxu0 0
        %3618 = vmatpush1.bf16.msra.mxu0 %v3231
        %3619 = vmatprep.subr.bf16.mxu0 0
        %3620 = vmatpush1.bf16.msra.mxu0 %v3230
        %3621 = vmatprep.subr.bf16.mxu0 0
        %3622 = vmatpush1.bf16.msra.mxu0 %v3229
        %3623 = vmatprep.subr.bf16.mxu0 0
        %3624 = vmatpush1.bf16.msra.mxu0 %v3228
        %3625 = vmatprep.subr.bf16.mxu0 0
        %3626 = vmatpush2.bf16.msra.mxu0 %v3243
        %3627 = vmatprep.subr.bf16.mxu0 0
        %3628 = vmatpush2.bf16.msra.mxu0 %v3242
        %3629 = vmatprep.subr.bf16.mxu0 0
        %3630 = vmatpush2.bf16.msra.mxu0 %v3241
        %3631 = vmatprep.subr.bf16.mxu0 0
        %3632 = vmatpush2.bf16.msra.mxu0 %v3240
        %3633 = vmatprep.subr.bf16.mxu0 0
        %3634 = vmatpush2.bf16.msra.mxu0 %v3239
        %3635 = vmatprep.subr.bf16.mxu0 0
        %3636 = vmatpush2.bf16.msra.mxu0 %v3238
        %3637 = vmatprep.subr.bf16.mxu0 0
        %3638 = vmatpush2.bf16.msra.mxu0 %v3237
        %3639 = vmatprep.subr.bf16.mxu0 0
        %3640 = vmatpush2.bf16.msra.mxu0 %v3236
        %3641 = vmatprep.mubr.bf16.mxu0 %v2623
        %3642 = vmatmul.mubr.bf16.gmra.mxu0 %v2622
        %v3643 = vpop.f32.mrf.mxu0
        %v3644 = vadd.f32 %v3603, %v3643
        %v3645 = vpop.f32.mrf.mxu0
        %v3646 = vpop.f32.mrf.mxu0
        %v3647 = vadd.f32 %v3606, %v3646
        %v3648 = vpop.f32.mrf.mxu0
        %3649 = vdwg.mxu0
        %3650 = vmatprep.subr.bf16.mxu0 0
        %3651 = vmatpush1.bf16.msra.mxu0 %v3251
        %3652 = vmatprep.subr.bf16.mxu0 0
        %3653 = vmatpush1.bf16.msra.mxu0 %v3250
        %3654 = vmatprep.subr.bf16.mxu0 0
        %3655 = vmatpush1.bf16.msra.mxu0 %v3249
        %3656 = vmatprep.subr.bf16.mxu0 0
        %3657 = vmatpush1.bf16.msra.mxu0 %v3248
        %3658 = vmatprep.subr.bf16.mxu0 0
        %3659 = vmatpush1.bf16.msra.mxu0 %v3247
        %3660 = vmatprep.subr.bf16.mxu0 0
        %3661 = vmatpush1.bf16.msra.mxu0 %v3246
        %3662 = vmatprep.subr.bf16.mxu0 0
        %3663 = vmatpush1.bf16.msra.mxu0 %v3245
        %3664 = vmatprep.subr.bf16.mxu0 0
        %3665 = vmatpush1.bf16.msra.mxu0 %v3244
        %3666 = vmatprep.subr.bf16.mxu0 0
        %3667 = vmatpush2.bf16.msra.mxu0 %v3259
        %3668 = vmatprep.subr.bf16.mxu0 0
        %3669 = vmatpush2.bf16.msra.mxu0 %v3258
        %3670 = vmatprep.subr.bf16.mxu0 0
        %3671 = vmatpush2.bf16.msra.mxu0 %v3257
        %3672 = vmatprep.subr.bf16.mxu0 0
        %3673 = vmatpush2.bf16.msra.mxu0 %v3256
        %3674 = vmatprep.subr.bf16.mxu0 0
        %3675 = vmatpush2.bf16.msra.mxu0 %v3255
        %3676 = vmatprep.subr.bf16.mxu0 0
        %3677 = vmatpush2.bf16.msra.mxu0 %v3254
        %3678 = vmatprep.subr.bf16.mxu0 0
        %3679 = vmatpush2.bf16.msra.mxu0 %v3253
        %3680 = vmatprep.subr.bf16.mxu0 0
        %3681 = vmatpush2.bf16.msra.mxu0 %v3252
        %3682 = vmatprep.mubr.bf16.mxu0 %v2625
        %3683 = vmatmul.mubr.bf16.gmra.mxu0 %v2624
        %v3684 = vpop.f32.mrf.mxu0
        %v3685 = vadd.f32 %v3644, %v3684
        %v3686 = vpop.f32.mrf.mxu0
        %v3687 = vpop.f32.mrf.mxu0
        %v3688 = vadd.f32 %v3647, %v3687
        %v3689 = vpop.f32.mrf.mxu0
        %3690 = vdwg.mxu0
        %3691 = vmatprep.subr.bf16.mxu0 0
        %3692 = vmatpush1.bf16.msra.mxu0 %v3267
        %3693 = vmatprep.subr.bf16.mxu0 0
        %3694 = vmatpush1.bf16.msra.mxu0 %v3266
        %3695 = vmatprep.subr.bf16.mxu0 0
        %3696 = vmatpush1.bf16.msra.mxu0 %v3265
        %3697 = vmatprep.subr.bf16.mxu0 0
        %3698 = vmatpush1.bf16.msra.mxu0 %v3264
        %3699 = vmatprep.subr.bf16.mxu0 0
        %3700 = vmatpush1.bf16.msra.mxu0 %v3263
        %3701 = vmatprep.subr.bf16.mxu0 0
        %3702 = vmatpush1.bf16.msra.mxu0 %v3262
        %3703 = vmatprep.subr.bf16.mxu0 0
        %3704 = vmatpush1.bf16.msra.mxu0 %v3261
        %3705 = vmatprep.subr.bf16.mxu0 0
        %3706 = vmatpush1.bf16.msra.mxu0 %v3260
        %3707 = vmatprep.subr.bf16.mxu0 0
        %3708 = vmatpush2.bf16.msra.mxu0 %v3275
        %3709 = vmatprep.subr.bf16.mxu0 0
        %3710 = vmatpush2.bf16.msra.mxu0 %v3274
        %3711 = vmatprep.subr.bf16.mxu0 0
        %3712 = vmatpush2.bf16.msra.mxu0 %v3273
        %3713 = vmatprep.subr.bf16.mxu0 0
        %3714 = vmatpush2.bf16.msra.mxu0 %v3272
        %3715 = vmatprep.subr.bf16.mxu0 0
        %3716 = vmatpush2.bf16.msra.mxu0 %v3271
        %3717 = vmatprep.subr.bf16.mxu0 0
        %3718 = vmatpush2.bf16.msra.mxu0 %v3270
        %3719 = vmatprep.subr.bf16.mxu0 0
        %3720 = vmatpush2.bf16.msra.mxu0 %v3269
        %3721 = vmatprep.subr.bf16.mxu0 0
        %3722 = vmatpush2.bf16.msra.mxu0 %v3268
        %3723 = vmatprep.mubr.bf16.mxu0 %v2627
        %3724 = vmatmul.mubr.bf16.gmra.mxu0 %v2626
        %v3725 = vpop.f32.mrf.mxu0
        %v3726 = vadd.f32 %v3685, %v3725
        %v3727 = vpop.f32.mrf.mxu0
        %v3728 = vpop.f32.mrf.mxu0
        %v3729 = vadd.f32 %v3688, %v3728
        %v3730 = vpop.f32.mrf.mxu0
        %3731 = vdwg.mxu0
        %v3732 = vadd.f32 %v1690, %v3726
        %v3733 = vadd.f32 %v1691, %v3729
        %s3734 = scalar_lea.vmem %s11, %s37
        %v3735 = vld [vmem:[%s3734] sm:$0x1]
        %s3736 = scalar_lea.vmem %s12, %s37
        %v3737 = vld [vmem:[%s3736] sm:$0x1]
        %v3738 = vsel %vm675, %v3732, 0.0
        %3739 = vadd.xlane.f32.xlu0 %v3738
        %v3740 = vpop.xlane.xlu0 %3739
        %v3741 = vsel %vm675, %v3733, 0.0
        %3742 = vadd.xlane.f32.xlu0 %v3741
        %v3743 = vpop.xlane.xlu0 %3742
        %v3744 = vmul.f32 %v3740, %v1655
        %v3745 = vmul.f32 %v3743, %v1655
        %v3746 = vsub.f32 %v3732, %v3744
        %v3747 = vsub.f32 %v3733, %v3745
        %v3748 = vmul.f32 %v3746, %v3746
        %v3749 = vmul.f32 %v3747, %v3747
        %v3750 = vsel %vm675, %v3748, 0.0
        %3751 = vadd.xlane.f32.xlu0 %v3750
        %v3752 = vpop.xlane.xlu0 %3751
        %v3753 = vsel %vm675, %v3749, 0.0
        %3754 = vadd.xlane.f32.xlu0 %v3753
        %v3755 = vpop.xlane.xlu0 %3754
        %v3756 = vmul.f32 %v3752, %v1655
        %v3757 = vmul.f32 %v3755, %v1655
        %v3758 = vadd.f32 %v3756, 1e-05
        %v3759 = vadd.f32 %v3757, 1e-05
        %v3760 = vrsqrt.pop %v3758
        %v3761 = vrsqrt.pop %v3759
        %v3762 = vmul.f32 %v3746, %v3760
        %v3763 = vmul.f32 %v3747, %v3761
        %v3765 = vlaneseq
        %v3766 = vshrl.u32 %v3765, 7
        %v3767 = vsub.s32 0, %v3766
        %v3768 = vrot.slane %v3735, %v3767
        %v3770 = vmul.f32 %v3762, %v3768
        %v3771 = vmul.f32 %v3763, %v3768
        %v3773 = vlaneseq
        %v3774 = vshrl.u32 %v3773, 7
        %v3775 = vsub.s32 0, %v3774
        %v3776 = vrot.slane %v3737, %v3775
        %v3778 = vadd.f32 %v3770, %v3776
        %v3779 = vadd.f32 %v3771, %v3776
        %3780 = vst.msk [vmem:[#allocation2] sm:$0xff] %vm675, %v3778
        %3781 = vst.msk [vmem:[#allocation2 + $0x8] sm:$0xff] %vm675, %v3779
        %p3782 = scmp.eq.s32.totalorder %s37, 7
        // Predicated region
        $region105: #{emotion_transformer_forward.1} parent=99 // pred_check
          %p3783 = pneg %p3782
        $region106: #{emotion_transformer_forward.1} parent=99 // pred_check_branch
          %3785 = sbr.rel (%p3783) target = $region108
        $region107: #{emotion_transformer_forward.1} parent=99 // pred_region
          %v3786 = vld [vmem:[%s19] sm:$0x3]
          %vm3787 = vcmask 130048
          %v3789 = vsel %vm3787, %v3786, 0
          %3791 = vmatprep.subr.mxu0 0.0
          %3792 = vmatpush1.msra.mxu0 0.0
          %3793 = vmatprep.subr.mxu0 0.0
          %3794 = vmatpush1.msra.mxu0 0.0
          %3795 = vmatprep.subr.mxu0 0.0
          %3796 = vmatpush1.msra.mxu0 0.0
          %3797 = vmatprep.subr.mxu0 0.0
          %3798 = vmatpush1.msra.mxu0 0.0
          %3799 = vmatprep.subr.mxu0 0.0
          %3800 = vmatpush1.msra.mxu0 0.0
          %3801 = vmatprep.subr.mxu0 0.0
          %3802 = vmatpush1.msra.mxu0 0.0
          %3803 = vmatprep.subr.mxu0 0.0
          %3804 = vmatpush1.msra.mxu0 0.0
          %3805 = vmatprep.subr.mxu0 0.0
          %3806 = vmatpush1.msra.mxu0 0.0
          %3807 = vmatprep.subr.mxu0 0.0
          %3808 = vmatpush1.msra.mxu0 0.0
          %3809 = vmatprep.subr.mxu0 0.0
          %3810 = vmatpush1.msra.mxu0 0.0
          %3811 = vmatprep.subr.mxu0 0.0
          %3812 = vmatpush1.msra.mxu0 0.0
          %3813 = vmatprep.subr.mxu0 0.0
          %3814 = vmatpush1.msra.mxu0 0.0
          %3815 = vmatprep.subr.mxu0 0.0
          %3816 = vmatpush1.msra.mxu0 0.0
          %3817 = vmatprep.subr.mxu0 0.0
          %3818 = vmatpush1.msra.mxu0 0.0
          %3819 = vmatprep.subr.mxu0 0.0
          %3820 = vmatpush1.msra.mxu0 %v3779
          %3821 = vmatprep.subr.mxu0 0.0
          %3822 = vmatpush1.msra.mxu0 %v3778
          %3823 = vmatprep.subr.mxu0 0.0
          %3824 = vmatpush2.msra.mxu0 0.0
          %3825 = vmatprep.subr.mxu0 0.0
          %3826 = vmatpush2.msra.mxu0 0.0
          %3827 = vmatprep.subr.mxu0 0.0
          %3828 = vmatpush2.msra.mxu0 0.0
          %3829 = vmatprep.subr.mxu0 0.0
          %3830 = vmatpush2.msra.mxu0 0.0
          %3831 = vmatprep.subr.mxu0 0.0
          %3832 = vmatpush2.msra.mxu0 0.0
          %3833 = vmatprep.subr.mxu0 0.0
          %3834 = vmatpush2.msra.mxu0 0.0
          %3835 = vmatprep.subr.mxu0 0.0
          %3836 = vmatpush2.msra.mxu0 0.0
          %3837 = vmatprep.subr.mxu0 0.0
          %3838 = vmatpush2.msra.mxu0 0.0
          %3839 = vmatprep.subr.mxu0 0.0
          %3840 = vmatpush2.msra.mxu0 0.0
          %3841 = vmatprep.subr.mxu0 0.0
          %3842 = vmatpush2.msra.mxu0 0.0
          %3843 = vmatprep.subr.mxu0 0.0
          %3844 = vmatpush2.msra.mxu0 0.0
          %3845 = vmatprep.subr.mxu0 0.0
          %3846 = vmatpush2.msra.mxu0 0.0
          %3847 = vmatprep.subr.mxu0 0.0
          %3848 = vmatpush2.msra.mxu0 0.0
          %3849 = vmatprep.subr.mxu0 0.0
          %3850 = vmatpush2.msra.mxu0 0.0
          %3851 = vmatprep.subr.mxu0 0.0
          %3852 = vmatpush2.msra.mxu0 0.0
          %3853 = vmatprep.subr.mxu0 0.0
          %3854 = vmatpush2.msra.mxu0 0.0
          %3855 = vmatprep.mubr.f32.mxu0 0.0
          %3856 = vmatmul.mubr.f32.gmra.mxu0 %v3789
          %v3857 = vpop.f32.mrf.mxu0
          %v3858 = vadd.f32 0.0, %v3857
          %v3859 = vpop.f32.mrf.mxu0
          %3860 = vdwg.mxu0
          %v3861 = vld [vmem:[%s13] sm:$0xff]
          %v3862 = vld [vmem:[%s13 + $0x8] sm:$0xff]
          %v3863 = vld [vmem:[%s13 + $0x10] sm:$0xff]
          %v3864 = vld [vmem:[%s13 + $0x18] sm:$0xff]
          %v3865 = vpack.c.bf16 %v3858, %v3858
          %v3866 = vpack.c.bf16 %v3862, %v3861
          %v3867 = vpack.c.bf16 %v3864, %v3863
          %v3868 = vld [vmem:[%s14] sm:$0x1]
          %v3870 = vlaneseq
          %v3871 = vshrl.u32 %v3870, 7
          %v3872 = vsub.s32 0, %v3871
          %v3873 = vrot.slane %v3868, %v3872
          %v3876 = vsel %vm675, %v3865, 0
          %3878 = vmatprep.subr.bf16.mxu0 0
          %3879 = vmatpush1.bf16.msra.mxu0 0
          %3880 = vmatprep.subr.bf16.mxu0 0
          %3881 = vmatpush1.bf16.msra.mxu0 0
          %3882 = vmatprep.subr.bf16.mxu0 0
          %3883 = vmatpush1.bf16.msra.mxu0 0
          %3884 = vmatprep.subr.bf16.mxu0 0
          %3885 = vmatpush1.bf16.msra.mxu0 0
          %3886 = vmatprep.subr.bf16.mxu0 0
          %3887 = vmatpush1.bf16.msra.mxu0 0
          %3888 = vmatprep.subr.bf16.mxu0 0
          %3889 = vmatpush1.bf16.msra.mxu0 0
          %3890 = vmatprep.subr.bf16.mxu0 0
          %3891 = vmatpush1.bf16.msra.mxu0 %v3867
          %3892 = vmatprep.subr.bf16.mxu0 0
          %3893 = vmatpush1.bf16.msra.mxu0 %v3866
          %3894 = vmatprep.subr.bf16.mxu0 0
          %3895 = vmatpush2.bf16.msra.mxu0 0
          %3896 = vmatprep.subr.bf16.mxu0 0
          %3897 = vmatpush2.bf16.msra.mxu0 0
          %3898 = vmatprep.subr.bf16.mxu0 0
          %3899 = vmatpush2.bf16.msra.mxu0 0
          %3900 = vmatprep.subr.bf16.mxu0 0
          %3901 = vmatpush2.bf16.msra.mxu0 0
          %3902 = vmatprep.subr.bf16.mxu0 0
          %3903 = vmatpush2.bf16.msra.mxu0 0
          %3904 = vmatprep.subr.bf16.mxu0 0
          %3905 = vmatpush2.bf16.msra.mxu0 0
          %3906 = vmatprep.subr.bf16.mxu0 0
          %3907 = vmatpush2.bf16.msra.mxu0 0
          %3908 = vmatprep.subr.bf16.mxu0 0
          %3909 = vmatpush2.bf16.msra.mxu0 0
          %3910 = vmatprep.mubr.bf16.mxu0 0
          %3911 = vmatmul.mubr.bf16.gmra.mxu0 %v3876
          %v3912 = vpop.f32.mrf.mxu0
          %v3913 = vadd.f32 %v3873, %v3912
          %v3914 = vpop.f32.mrf.mxu0
          %v3915 = vpop.f32.mrf.mxu0
          %v3916 = vpop.f32.mrf.mxu0
          %3917 = vdwg.mxu0
          %vm3918 = vcmask 50176
          %3919 = vst.msk [vmem:[#allocation4] sm:$0x3] %vm3918, %v3913
        $region108: #{emotion_transformer_forward.1} parent=99 // pred_fallthru
          _
        // Predicated region
        $region109: #{emotion_transformer_forward.1} parent=99 // pred_check
          %p3920 = pneg %p487
        $region110: #{emotion_transformer_forward.1} parent=99 // pred_check_branch
          %3922 = sbr.rel (%p3920) target = $region112
        $region111: #{emotion_transformer_forward.1} parent=99 // pred_region
          %s3924 = ssub.s32 32, 32
          %3925 = vsyncadd [#allocation5], %s3924
          %s3926 = smul.addr %s36, 32
          %s3927 = scalar_lea.hbm %s20, %s3926
          %s3929 = sshll.u32 [#allocation4], 4
          %s3930 = int_to_ptr.vmem [resolvable:$true] %s3929
          %3932 = dma.vmem_to_hbm [thread:$0]  %s3930, 32, %s3927, [#allocation5]
        $region112: #{emotion_transformer_forward.1} parent=99 // pred_fallthru
          _
        // Predicated region
        $region113: #{emotion_transformer_forward.1} parent=99 // pred_check
          %p3933 = pneg %p487
        $region114: #{emotion_transformer_forward.1} parent=99 // pred_check_branch
          %3935 = sbr.rel (%p3933) target = $region116
        $region115: #{emotion_transformer_forward.1} parent=99 // pred_region
          %3936 = dma.done [#allocation5], 32
        $region116: #{emotion_transformer_forward.1} parent=99 // pred_fallthru
          _
      $region100: #{emotion_transformer_forward.1} parent=5 // pred_fallthru
        _
      %p3937 = scmp.le.s32.totalorder 2, %s27
      // Predicated region
      $region117: #{emotion_transformer_forward.1} parent=5 // pred_check
        %p3938 = pneg %p3937
      $region118: #{emotion_transformer_forward.1} parent=5 // pred_check_branch
        %3940 = sbr.rel (%p3938) target = $region120
      $region119: #{emotion_transformer_forward.1} parent=5 // pred_region
        %s3941 = ssub.s32 %s27, 2
      $region120: #{emotion_transformer_forward.1} parent=5 // pred_fallthru
        _
    $region6: #{emotion_transformer_forward.1} parent=1 // loop_footer
      %s31 = sadd.s32 1, %s27
    $region7: #{emotion_transformer_forward.1} parent=1 // loop_footer_branch
      %26 = sbr.rel target = $region3
    $region8: #{emotion_transformer_forward.1} parent=1 // loop_exit
      _
    %3942 = vsyncpa [#allocation5], 1
    %s3943 = scalar_lea.sflag [#allocation5], 1
    %3944 = vsyncpa %s3943, 1

</llo_original>
